<compile_context>
chip_gen: v7x
topology: tpu7x:2x2x1
jax: 0.10.0
libtpu: 0.0.40
codegen_flags: <defaults>
</compile_context>

<pallas_src>
import math

import jax
import jax.numpy as jnp
from jax.experimental import pallas as pl
from jax.experimental.pallas import tpu as pltpu

# ----------------------------- model configuration -----------------------------
N_STEPS = 8          # n_steps / seq_len  (chosen so ProbAttention == dense attention)
N_FEATURES = 4       # n_features
N_LAYERS = 2         # n_layers
N_HEADS = 2          # n_heads
D_MODEL = 32         # d_model
D_FFN = 64           # d_ffn
FACTOR = 5           # ProbAttention factor
D_K = D_MODEL // N_HEADS
EPS_LN = 1e-5        # PyTorch nn.LayerNorm default eps

# ----------------------------- VMEM sizing model --------------------------------
PER_ROW_LIVE_BYTES = 4096        # conservative live f32+bf16 bytes per (batch, time) row
WEIGHT_VMEM_BYTES = 512 * 1024   # all weights (~100 KB) with generous slack
MAX_ROWS = 8192                  # larger M buys nothing at these tiny K/N dims


def _layer_norm(x, gamma, beta):
    mu = jnp.mean(x, axis=-1, keepdims=True)
    var = jnp.mean((x - mu) ** 2, axis=-1, keepdims=True)
    return (x - mu) * jax.lax.rsqrt(var + EPS_LN) * gamma + beta


def _informer_kernel(xm_ref, wtok_ref, pe_ref, wqkv_ref, wo_ref,
                     w1_ref, b1_ref, w2_ref, b2_ref,
                     g1_ref, be1_ref, g2_ref, be2_ref,
                     gf_ref, bf_ref, wp_ref, bp_ref,
                     out_ref):
    Bt, L, C2 = xm_ref.shape        # static block shape
    C = C2 // 2
    xm = xm_ref[...]                # (Bt, L, 2C) packed [X | missing_mask]
    x = xm[:, :, :C]                # (Bt, L, C) original X rows for this step
    m = xm[:, :, C:]                # (Bt, L, C) missing mask

    # ---- DataEmbedding: TokenEmbedding (circular conv1d, k=3, no bias) + positional enc
    # circular time neighbours via XLU sublane rotates (co-issue with VPU/MXU work)
    x_m1 = pltpu.roll(x, shift=1, axis=1)        # x[t-1] (circular)
    x_p1 = pltpu.roll(x, shift=L - 1, axis=1)    # x[t+1] (circular)
    x_circ = jnp.concatenate([x_m1, x, x_p1], axis=-1).reshape(Bt * L, 3 * C)

    # single (Bt*L, 3C) @ (3C, D) bf16 matmul, f32 accumulation
    emb = jnp.dot(x_circ.astype(jnp.bfloat16), wtok_ref[...],
                  preferred_element_type=jnp.float32)            # (Bt*L, D) f32
    # positional encoding added via broadcast of the native (L, D) table (hoisted once)
    h = (emb.reshape(Bt, L, D_MODEL) + pe_ref[...][None, :, :]).reshape(Bt * L, D_MODEL)
    # dropout: identity (eval semantics)

    scale = 1.0 / math.sqrt(D_K)

    for l in range(N_LAYERS):
        # ---- MultiHeadAttention with ProbAttention(mask_flag=False)
        # TODO(synk): the general ProbAttention sparse path (random key sampling +
        # top-u query selection + scatter update) is not implemented; at these shapes
        # (factor*ceil(ln L) >= L, asserted in the wrapper) it reduces exactly to
        # dense softmax attention.
        h_bf = h.astype(jnp.bfloat16)
        qkv = jnp.dot(h_bf, wqkv_ref[l], preferred_element_type=jnp.float32)  # (Bt*L, 3D)
        q = qkv[:, :D_MODEL].reshape(Bt, L, D_MODEL)
        k = qkv[:, D_MODEL:2 * D_MODEL].reshape(Bt, L, D_MODEL)
        v = qkv[:, 2 * D_MODEL:].reshape(Bt, L, D_MODEL)

        # Merged-head einsum ('bqhd,bkhd->bhqk') would need a rank-4 dot_general that
        # Mosaic does not lower; heads remain a tiny static loop (H=2).
        ctx_heads = []
        for hh in range(N_HEADS):
            sl = slice(hh * D_K, (hh + 1) * D_K)
            qh = q[:, :, sl].astype(jnp.bfloat16)
            kh = k[:, :, sl].astype(jnp.bfloat16)
            vh = v[:, :, sl].astype(jnp.bfloat16)
            s = jnp.einsum('bqd,bkd->bqk', qh, kh,
                           preferred_element_type=jnp.float32) * scale       # f32 scores
            s = s - jnp.max(s, axis=-1, keepdims=True)
            p = jnp.exp(s)
            p = p * pl.reciprocal(jnp.sum(p, axis=-1, keepdims=True), approx=True)
            ctx_heads.append(jnp.einsum('bqk,bkd->bqd', p.astype(jnp.bfloat16), vh,
                                        preferred_element_type=jnp.float32))
        ctx = jnp.concatenate(ctx_heads, axis=-1).reshape(Bt * L, D_MODEL)
        attn_out = jnp.dot(ctx.astype(jnp.bfloat16), wo_ref[l],
                           preferred_element_type=jnp.float32)

        # ---- residual + norm1 (f32)
        xres = h + attn_out
        xn = _layer_norm(xres, g1_ref[pl.ds(l, 1), :], be1_ref[pl.ds(l, 1), :])

        # ---- position-wise FFN (conv1d kernel-size-1 == linear), relu activation
        y = jnp.dot(xn.astype(jnp.bfloat16), w1_ref[l],
                    preferred_element_type=jnp.float32) + b1_ref[pl.ds(l, 1), :]
        y = jnp.maximum(y, 0.0)
        y = jnp.dot(y.astype(jnp.bfloat16), w2_ref[l],
                    preferred_element_type=jnp.float32) + b2_ref[pl.ds(l, 1), :]

        # ---- residual + norm2 (f32)
        h = _layer_norm(xn + y, g2_ref[pl.ds(l, 1), :], be2_ref[pl.ds(l, 1), :])

    # ---- final encoder LayerNorm
    h = _layer_norm(h, gf_ref[...], bf_ref[...])

    # ---- projection back to feature space
    dec = (jnp.dot(h.astype(jnp.bfloat16), wp_ref[...],
                   preferred_element_type=jnp.float32)
           + bp_ref[...]).reshape(Bt, L, C)

    # ---- imputation mix: masks * X + (1 - masks) * dec_out
    imputed = m * x + (1.0 - m) * dec

    # single merged output slab (imputed | dec) -> half as many narrow output stores
    out_ref[...] = jnp.concatenate([imputed, dec], axis=-1)


# ----------------------------- chip-aware tiling ---------------------------------
def _tensorcores_per_chip():
    """TensorCores one Pallas program can spread a 'parallel' grid axis over."""
    try:
        kind = jax.devices()[0].device_kind.lower()
    except Exception:
        return 1
    if "v7" in kind:
        return 2                                   # v7x: 2 TCs per chip
    if ("v4" in kind or "v5p" in kind) and "lite" not in kind:
        return 2                                   # v4 / v5p megacore
    return 1                                       # v2/v3/v5e/v6e: single TC


def _vmem_budget_bytes():
    try:
        kind = jax.devices()[0].device_kind.lower()
    except Exception:
        kind = ""
    phys = (64 if "v7" in kind else 128) * 1024 * 1024
    return int(phys * 0.75)                        # headroom for compiler scratch


def _choose_block_batch(B, L, n_cores, vmem_budget):
    """Largest per-step batch Bt (divisor of B) within the VMEM row budget, preferring
    exactly one grid step per TensorCore (grid=1 on 1-TC chips, grid=2 on v7x)."""
    max_rows = max(L, (vmem_budget - WEIGHT_VMEM_BYTES) // PER_ROW_LIVE_BYTES)
    max_rows = min(max_rows, MAX_ROWS)
    cands = [bt for bt in range(1, B + 1) if B % bt == 0 and bt * L <= max_rows]
    if not cands:
        return 1
    exact = [bt for bt in cands if B // bt == n_cores]
    if exact:
        return max(exact)
    ge = [bt for bt in cands if B // bt >= n_cores]
    return max(ge) if ge else max(cands)


def informer_forward(X, missing_mask, params):
    B, L, C = X.shape

    # ProbAttention == dense attention only while factor*ceil(ln L) >= L.
    assert FACTOR * math.ceil(math.log(L)) >= L, (
        "ProbAttention top-u selection would be sparse at this sequence length; "
        "the dense-attention shortcut in the kernel is invalid.")

    n_cores = _tensorcores_per_chip()
    budget = _vmem_budget_bytes()
    Bt = _choose_block_batch(B, L, n_cores, budget)
    grid = B // Bt

    # conservative footprint estimate -> scoped VMEM limit (never below 32 MiB default)
    io_bytes = 4 * (Bt * L * 2 * C * 4)            # packed in + out blocks, 2x buffered
    est = Bt * L * PER_ROW_LIVE_BYTES + 2 * WEIGHT_VMEM_BYTES + io_bytes
    vmem_limit = int(min(budget, max(32 * 1024 * 1024, est)))

    # pack X and mask into one input slab -> one small DMA per step instead of two
    xm = jnp.concatenate([X, missing_mask], axis=-1)            # (B, L, 2C)

    bf16 = jnp.bfloat16
    # fused Q/K/V projection weight: (N_LAYERS, D_MODEL, 3*D_MODEL), bf16 MXU operands
    wqkv = jnp.concatenate([params["wq"], params["wk"], params["wv"]],
                           axis=-1).astype(bf16)

    weight_args = [params["w_tok"].astype(bf16), params["pe"], wqkv,
                   params["wo"].astype(bf16),
                   params["w1"].astype(bf16), params["b1"],
                   params["w2"].astype(bf16), params["b2"],
                   params["g1"], params["be1"], params["g2"], params["be2"],
                   params["gf"], params["bf"],
                   params["wp"].astype(bf16), params["bp"]]

    def full_spec(shape):
        return pl.BlockSpec(shape, lambda b, _n=len(shape): (0,) * _n)

    in_specs = [pl.BlockSpec((Bt, L, 2 * C), lambda b: (b, 0, 0))] + \
               [full_spec(w.shape) for w in weight_args]

    out = pl.pallas_call(
        _informer_kernel,
        grid=(grid,),
        in_specs=in_specs,
        out_specs=pl.BlockSpec((Bt, L, 2 * C), lambda b: (b, 0, 0)),
        out_shape=jax.ShapeDtypeStruct((B, L, 2 * C), jnp.float32),
        compiler_params=pltpu.CompilerParams(
            dimension_semantics=("parallel",),
            vmem_limit_bytes=vmem_limit),
    )(xm, *weight_args)

    imputed = out[..., :C]
    dec = out[..., C:]
    return imputed, dec


def _sinusoidal_pe(n_steps, d_model):
    pos = jnp.arange(n_steps, dtype=jnp.float32)[:, None]
    div = jnp.exp(jnp.arange(0, d_model, 2, dtype=jnp.float32)
                  * (-math.log(10000.0) / d_model))
    pe = jnp.zeros((n_steps, d_model), jnp.float32)
    pe = pe.at[:, 0::2].set(jnp.sin(pos * div))
    pe = pe.at[:, 1::2].set(jnp.cos(pos * div))
    return pe


def init_params(key):
    ks = jax.random.split(key, 8)
    s = 0.1

    def nrm(k, shape):
        return s * jax.random.normal(k, shape, dtype=jnp.float32)

    params = {
        # TokenEmbedding conv weight (d_model, C, 3) reshaped kernel-tap-major to (3*C, d_model)
        "w_tok": nrm(ks[0], (3 * N_FEATURES, D_MODEL)),
        "pe": _sinusoidal_pe(N_STEPS, D_MODEL),
        # attention projections (no bias, per pypots MultiHeadAttention)
        "wq": nrm(ks[1], (N_LAYERS, D_MODEL, N_HEADS * D_K)),
        "wk": nrm(ks[2], (N_LAYERS, D_MODEL, N_HEADS * D_K)),
        "wv": nrm(ks[3], (N_LAYERS, D_MODEL, N_HEADS * D_K)),
        "wo": nrm(ks[4], (N_LAYERS, N_HEADS * D_K, D_MODEL)),
        # FFN (conv1d kernel-size-1) weights + biases
        "w1": nrm(ks[5], (N_LAYERS, D_MODEL, D_FFN)),
        "b1": jnp.zeros((N_LAYERS, D_FFN), jnp.float32),
        "w2": nrm(ks[6], (N_LAYERS, D_FFN, D_MODEL)),
        "b2": jnp.zeros((N_LAYERS, D_MODEL), jnp.float32),
        # LayerNorm params (PyTorch default init: gamma=1, beta=0)
        "g1": jnp.ones((N_LAYERS, D_MODEL), jnp.float32),
        "be1": jnp.zeros((N_LAYERS, D_MODEL), jnp.float32),
        "g2": jnp.ones((N_LAYERS, D_MODEL), jnp.float32),
        "be2": jnp.zeros((N_LAYERS, D_MODEL), jnp.float32),
        "gf": jnp.ones((1, D_MODEL), jnp.float32),
        "bf": jnp.zeros((1, D_MODEL), jnp.float32),
        # final projection
        "wp": nrm(ks[7], (D_MODEL, N_FEATURES)),
        "bp": jnp.zeros((1, N_FEATURES), jnp.float32),
    }
    return params


if __name__ == "__main__":
    key = jax.random.PRNGKey(0)
    k1, k2, k3, kp = jax.random.split(key, 4)
    B = 8   # grid=1 (Bt=8) on 1-TC v5e/v6e; grid=2 (Bt=4) on 2-TC v7x / megacore

    X_ori = jax.random.normal(k1, (B, N_STEPS, N_FEATURES), dtype=jnp.float32)
    missing_mask = (jax.random.uniform(k2, (B, N_STEPS, N_FEATURES)) > 0.3
                    ).astype(jnp.float32)
    indicating_mask = ((jax.random.uniform(k3, (B, N_STEPS, N_FEATURES)) > 0.5
                        ).astype(jnp.float32) * (1.0 - missing_mask))
    X = X_ori * missing_mask

    params = init_params(kp)

    imputed_data, dec_out = informer_forward(X, missing_mask, params)

    # training=True branch: loss = calc_mse(dec_out, X_ori, indicating_mask)
    # (cheap masked-MSE reduction kept as JAX glue)
    loss = jnp.sum(indicating_mask * (dec_out - X_ori) ** 2) / \
        (jnp.sum(indicating_mask) + 1e-12)

    results = {"imputed_data": imputed_data, "loss": loss}
    jax.block_until_ready(results)
    assert results["imputed_data"].shape == (B, N_STEPS, N_FEATURES)
    print("KERNEL_OK")
</pallas_src>

<mosaic_0001>
module attributes {stable_mosaic.version = 11 : i64} {
  func.func @_informer_kernel(%arg0: i32, %arg1: memref<8x8x8xf32, #tpu.memory_space<vmem>>, %arg2: memref<12x32xbf16, #tpu.memory_space<vmem>>, %arg3: memref<8x32xf32, #tpu.memory_space<vmem>>, %arg4: memref<2x32x96xbf16, #tpu.memory_space<vmem>>, %arg5: memref<2x32x32xbf16, #tpu.memory_space<vmem>>, %arg6: memref<2x32x64xbf16, #tpu.memory_space<vmem>>, %arg7: memref<2x64xf32, #tpu.memory_space<vmem>>, %arg8: memref<2x64x32xbf16, #tpu.memory_space<vmem>>, %arg9: memref<2x32xf32, #tpu.memory_space<vmem>>, %arg10: memref<2x32xf32, #tpu.memory_space<vmem>>, %arg11: memref<2x32xf32, #tpu.memory_space<vmem>>, %arg12: memref<2x32xf32, #tpu.memory_space<vmem>>, %arg13: memref<2x32xf32, #tpu.memory_space<vmem>>, %arg14: memref<1x32xf32, #tpu.memory_space<vmem>>, %arg15: memref<1x32xf32, #tpu.memory_space<vmem>>, %arg16: memref<32x4xbf16, #tpu.memory_space<vmem>>, %arg17: memref<1x4xf32, #tpu.memory_space<vmem>>, %arg18: memref<8x8x8xf32, #tpu.memory_space<vmem>>) attributes {dimension_semantics = [#tpu.dimension_semantics<parallel>], iteration_bounds = array<i64: 1>, scalar_prefetch = 0 : i64, scratch_operands = 0 : i64, tpu.core_type = #tpu.core_type<tc>, window_params = [{transform_indices = @transform_0, window_bounds = array<i64: 8, 8, 8>}, {pipeline_mode = #tpu.pipeline_mode<synchronous>, transform_indices = @transform_1, window_bounds = array<i64: 12, 32>}, {pipeline_mode = #tpu.pipeline_mode<synchronous>, transform_indices = @transform_2, window_bounds = array<i64: 8, 32>}, {pipeline_mode = #tpu.pipeline_mode<synchronous>, transform_indices = @transform_3, window_bounds = array<i64: 2, 32, 96>}, {pipeline_mode = #tpu.pipeline_mode<synchronous>, transform_indices = @transform_4, window_bounds = array<i64: 2, 32, 32>}, {pipeline_mode = #tpu.pipeline_mode<synchronous>, transform_indices = @transform_5, window_bounds = array<i64: 2, 32, 64>}, {pipeline_mode = #tpu.pipeline_mode<synchronous>, transform_indices = @transform_6, window_bounds = array<i64: 2, 64>}, {pipeline_mode = #tpu.pipeline_mode<synchronous>, transform_indices = @transform_7, window_bounds = array<i64: 2, 64, 32>}, {pipeline_mode = #tpu.pipeline_mode<synchronous>, transform_indices = @transform_8, window_bounds = array<i64: 2, 32>}, {pipeline_mode = #tpu.pipeline_mode<synchronous>, transform_indices = @transform_9, window_bounds = array<i64: 2, 32>}, {pipeline_mode = #tpu.pipeline_mode<synchronous>, transform_indices = @transform_10, window_bounds = array<i64: 2, 32>}, {pipeline_mode = #tpu.pipeline_mode<synchronous>, transform_indices = @transform_11, window_bounds = array<i64: 2, 32>}, {pipeline_mode = #tpu.pipeline_mode<synchronous>, transform_indices = @transform_12, window_bounds = array<i64: 2, 32>}, {pipeline_mode = #tpu.pipeline_mode<synchronous>, transform_indices = @transform_13, window_bounds = array<i64: 1, 32>}, {pipeline_mode = #tpu.pipeline_mode<synchronous>, transform_indices = @transform_14, window_bounds = array<i64: 1, 32>}, {pipeline_mode = #tpu.pipeline_mode<synchronous>, transform_indices = @transform_15, window_bounds = array<i64: 32, 4>}, {pipeline_mode = #tpu.pipeline_mode<synchronous>, transform_indices = @transform_16, window_bounds = array<i64: 1, 4>}, {transform_indices = @transform_17, window_bounds = array<i64: 8, 8, 8>}]} {
    %c0 = arith.constant 0 : index
    %c0_0 = arith.constant 0 : index
    %c0_1 = arith.constant 0 : index
    %0 = vector.load %arg1[%c0, %c0_0, %c0_1] : memref<8x8x8xf32, #tpu.memory_space<vmem>>, vector<8x8x8xf32>
    %1 = vector.extract_strided_slice %0 {offsets = [0, 0, 0], sizes = [8, 8, 4], strides = [1, 1, 1]} : vector<8x8x8xf32> to vector<8x8x4xf32>
    %2 = vector.extract_strided_slice %0 {offsets = [0, 0, 4], sizes = [8, 8, 4], strides = [1, 1, 1]} : vector<8x8x8xf32> to vector<8x8x4xf32>
    %c1_i32 = arith.constant 1 : i32
    %3 = tpu.dynamic_rotate %1 by %c1_i32 dim 1 : vector<8x8x4xf32>, i32 -> vector<8x8x4xf32>
    %c7_i32 = arith.constant 7 : i32
    %4 = tpu.dynamic_rotate %1 by %c7_i32 dim 1 : vector<8x8x4xf32>, i32 -> vector<8x8x4xf32>
    %5 = tpu.concatenate %3, %1, %4 in 2 : vector<8x8x4xf32>, vector<8x8x4xf32>, vector<8x8x4xf32> -> vector<8x8x12xf32>
    %6 = vector.shape_cast %5 : vector<8x8x12xf32> to vector<64x12xf32>
    %7 = arith.truncf %6 : vector<64x12xf32> to vector<64x12xbf16>
    %c0_2 = arith.constant 0 : index
    %c0_3 = arith.constant 0 : index
    %8 = vector.load %arg2[%c0_2, %c0_3] : memref<12x32xbf16, #tpu.memory_space<vmem>>, vector<12x32xbf16>
    %cst = arith.constant dense<0.000000e+00> : vector<64x32xf32>
    %9 = tpu.matmul %7, %8, %cst {dimension_numbers = #tpu.dot_dimension_numbers<[1], [0], [0], [1], [0, 0, 1, 1], [], []>} : vector<64x12xbf16>, vector<12x32xbf16>, vector<64x32xf32> -> vector<64x32xf32>
    %10 = vector.shape_cast %9 : vector<64x32xf32> to vector<8x8x32xf32>
    %c0_4 = arith.constant 0 : index
    %c0_5 = arith.constant 0 : index
    %11 = vector.load %arg3[%c0_4, %c0_5] : memref<8x32xf32, #tpu.memory_space<vmem>>, vector<8x32xf32>
    %12 = vector.shape_cast %11 : vector<8x32xf32> to vector<1x8x32xf32>
    %13 = vector.broadcast %12 : vector<1x8x32xf32> to vector<8x8x32xf32>
    %14 = arith.addf %10, %13 : vector<8x8x32xf32>
    %15 = vector.shape_cast %14 : vector<8x8x32xf32> to vector<64x32xf32>
    %16 = arith.truncf %15 : vector<64x32xf32> to vector<64x32xbf16>
    %c0_6 = arith.constant 0 : index
    %c0_7 = arith.constant 0 : index
    %c0_8 = arith.constant 0 : index
    %17 = vector.load %arg4[%c0_6, %c0_7, %c0_8] : memref<2x32x96xbf16, #tpu.memory_space<vmem>>, vector<1x32x96xbf16>
    %18 = vector.shape_cast %17 : vector<1x32x96xbf16> to vector<32x96xbf16>
    %cst_9 = arith.constant dense<0.000000e+00> : vector<64x96xf32>
    %19 = tpu.matmul %16, %18, %cst_9 {dimension_numbers = #tpu.dot_dimension_numbers<[1], [0], [0], [1], [0, 0, 1, 1], [], []>} : vector<64x32xbf16>, vector<32x96xbf16>, vector<64x96xf32> -> vector<64x96xf32>
    %20 = vector.extract_strided_slice %19 {offsets = [0, 0], sizes = [64, 32], strides = [1, 1]} : vector<64x96xf32> to vector<64x32xf32>
    %21 = vector.shape_cast %20 : vector<64x32xf32> to vector<8x8x32xf32>
    %22 = vector.extract_strided_slice %19 {offsets = [0, 32], sizes = [64, 32], strides = [1, 1]} : vector<64x96xf32> to vector<64x32xf32>
    %23 = vector.shape_cast %22 : vector<64x32xf32> to vector<8x8x32xf32>
    %24 = vector.extract_strided_slice %19 {offsets = [0, 64], sizes = [64, 32], strides = [1, 1]} : vector<64x96xf32> to vector<64x32xf32>
    %25 = vector.shape_cast %24 : vector<64x32xf32> to vector<8x8x32xf32>
    %26 = vector.extract_strided_slice %21 {offsets = [0, 0, 0], sizes = [8, 8, 16], strides = [1, 1, 1]} : vector<8x8x32xf32> to vector<8x8x16xf32>
    %27 = arith.truncf %26 : vector<8x8x16xf32> to vector<8x8x16xbf16>
    %28 = vector.extract_strided_slice %23 {offsets = [0, 0, 0], sizes = [8, 8, 16], strides = [1, 1, 1]} : vector<8x8x32xf32> to vector<8x8x16xf32>
    %29 = arith.truncf %28 : vector<8x8x16xf32> to vector<8x8x16xbf16>
    %30 = vector.extract_strided_slice %25 {offsets = [0, 0, 0], sizes = [8, 8, 16], strides = [1, 1, 1]} : vector<8x8x32xf32> to vector<8x8x16xf32>
    %31 = arith.truncf %30 : vector<8x8x16xf32> to vector<8x8x16xbf16>
    "tpu.trace_start"() <{level = 10 : i32, message = "bqd,bkd->bqk"}> : () -> ()
    %cst_10 = arith.constant dense<0.000000e+00> : vector<8x8x8xf32>
    %32 = tpu.matmul %27, %29, %cst_10 {dimension_numbers = #tpu.dot_dimension_numbers<[2], [2], [1], [1], [0, 0, 0, 1, 1, 1], [0], [0]>} : vector<8x8x16xbf16>, vector<8x8x16xbf16>, vector<8x8x8xf32> -> vector<8x8x8xf32>
    "tpu.trace_stop"() : () -> ()
    %cst_11 = arith.constant 2.500000e-01 : f32
    %33 = vector.broadcast %cst_11 : f32 to vector<8x8x8xf32>
    %34 = arith.mulf %32, %33 : vector<8x8x8xf32>
    %cst_12 = arith.constant dense<0xFF800000> : vector<8x8xf32>
    %35 = vector.multi_reduction <maximumf>, %34, %cst_12 [2] : vector<8x8x8xf32> to vector<8x8xf32>
    %36 = vector.shape_cast %35 : vector<8x8xf32> to vector<8x8x1xf32>
    %37 = vector.broadcast %36 : vector<8x8x1xf32> to vector<8x8x8xf32>
    %38 = arith.subf %34, %37 : vector<8x8x8xf32>
    %39 = math.exp %38 : vector<8x8x8xf32>
    %cst_13 = arith.constant dense<0.000000e+00> : vector<8x8xf32>
    %40 = vector.multi_reduction <add>, %39, %cst_13 [2] : vector<8x8x8xf32> to vector<8x8xf32>
    %41 = vector.shape_cast %40 : vector<8x8xf32> to vector<8x8x1xf32>
    %42 = tpu.reciprocal %41 {approx = true} : vector<8x8x1xf32> -> vector<8x8x1xf32>
    %43 = vector.broadcast %42 : vector<8x8x1xf32> to vector<8x8x8xf32>
    %44 = arith.mulf %39, %43 : vector<8x8x8xf32>
    %45 = arith.truncf %44 : vector<8x8x8xf32> to vector<8x8x8xbf16>
    "tpu.trace_start"() <{level = 10 : i32, message = "bqk,bkd->bqd"}> : () -> ()
    %cst_14 = arith.constant dense<0.000000e+00> : vector<8x8x16xf32>
    %46 = tpu.matmul %45, %31, %cst_14 {dimension_numbers = #tpu.dot_dimension_numbers<[2], [1], [1], [2], [0, 0, 0, 1, 1, 2], [0], [0]>} : vector<8x8x8xbf16>, vector<8x8x16xbf16>, vector<8x8x16xf32> -> vector<8x8x16xf32>
    "tpu.trace_stop"() : () -> ()
    %47 = vector.extract_strided_slice %21 {offsets = [0, 0, 16], sizes = [8, 8, 16], strides = [1, 1, 1]} : vector<8x8x32xf32> to vector<8x8x16xf32>
    %48 = arith.truncf %47 : vector<8x8x16xf32> to vector<8x8x16xbf16>
    %49 = vector.extract_strided_slice %23 {offsets = [0, 0, 16], sizes = [8, 8, 16], strides = [1, 1, 1]} : vector<8x8x32xf32> to vector<8x8x16xf32>
    %50 = arith.truncf %49 : vector<8x8x16xf32> to vector<8x8x16xbf16>
    %51 = vector.extract_strided_slice %25 {offsets = [0, 0, 16], sizes = [8, 8, 16], strides = [1, 1, 1]} : vector<8x8x32xf32> to vector<8x8x16xf32>
    %52 = arith.truncf %51 : vector<8x8x16xf32> to vector<8x8x16xbf16>
    "tpu.trace_start"() <{level = 10 : i32, message = "bqd,bkd->bqk"}> : () -> ()
    %cst_15 = arith.constant dense<0.000000e+00> : vector<8x8x8xf32>
    %53 = tpu.matmul %48, %50, %cst_15 {dimension_numbers = #tpu.dot_dimension_numbers<[2], [2], [1], [1], [0, 0, 0, 1, 1, 1], [0], [0]>} : vector<8x8x16xbf16>, vector<8x8x16xbf16>, vector<8x8x8xf32> -> vector<8x8x8xf32>
    "tpu.trace_stop"() : () -> ()
    %cst_16 = arith.constant 2.500000e-01 : f32
    %54 = vector.broadcast %cst_16 : f32 to vector<8x8x8xf32>
    %55 = arith.mulf %53, %54 : vector<8x8x8xf32>
    %cst_17 = arith.constant dense<0xFF800000> : vector<8x8xf32>
    %56 = vector.multi_reduction <maximumf>, %55, %cst_17 [2] : vector<8x8x8xf32> to vector<8x8xf32>
    %57 = vector.shape_cast %56 : vector<8x8xf32> to vector<8x8x1xf32>
    %58 = vector.broadcast %57 : vector<8x8x1xf32> to vector<8x8x8xf32>
    %59 = arith.subf %55, %58 : vector<8x8x8xf32>
    %60 = math.exp %59 : vector<8x8x8xf32>
    %cst_18 = arith.constant dense<0.000000e+00> : vector<8x8xf32>
    %61 = vector.multi_reduction <add>, %60, %cst_18 [2] : vector<8x8x8xf32> to vector<8x8xf32>
    %62 = vector.shape_cast %61 : vector<8x8xf32> to vector<8x8x1xf32>
    %63 = tpu.reciprocal %62 {approx = true} : vector<8x8x1xf32> -> vector<8x8x1xf32>
    %64 = vector.broadcast %63 : vector<8x8x1xf32> to vector<8x8x8xf32>
    %65 = arith.mulf %60, %64 : vector<8x8x8xf32>
    %66 = arith.truncf %65 : vector<8x8x8xf32> to vector<8x8x8xbf16>
    "tpu.trace_start"() <{level = 10 : i32, message = "bqk,bkd->bqd"}> : () -> ()
    %cst_19 = arith.constant dense<0.000000e+00> : vector<8x8x16xf32>
    %67 = tpu.matmul %66, %52, %cst_19 {dimension_numbers = #tpu.dot_dimension_numbers<[2], [1], [1], [2], [0, 0, 0, 1, 1, 2], [0], [0]>} : vector<8x8x8xbf16>, vector<8x8x16xbf16>, vector<8x8x16xf32> -> vector<8x8x16xf32>
    "tpu.trace_stop"() : () -> ()
    %68 = tpu.concatenate %46, %67 in 2 : vector<8x8x16xf32>, vector<8x8x16xf32> -> vector<8x8x32xf32>
    %69 = vector.shape_cast %68 : vector<8x8x32xf32> to vector<64x32xf32>
    %70 = arith.truncf %69 : vector<64x32xf32> to vector<64x32xbf16>
    %c0_20 = arith.constant 0 : index
    %c0_21 = arith.constant 0 : index
    %c0_22 = arith.constant 0 : index
    %71 = vector.load %arg5[%c0_20, %c0_21, %c0_22] : memref<2x32x32xbf16, #tpu.memory_space<vmem>>, vector<1x32x32xbf16>
    %72 = vector.shape_cast %71 : vector<1x32x32xbf16> to vector<32x32xbf16>
    %cst_23 = arith.constant dense<0.000000e+00> : vector<64x32xf32>
    %73 = tpu.matmul %70, %72, %cst_23 {dimension_numbers = #tpu.dot_dimension_numbers<[1], [0], [0], [1], [0, 0, 1, 1], [], []>} : vector<64x32xbf16>, vector<32x32xbf16>, vector<64x32xf32> -> vector<64x32xf32>
    %74 = arith.addf %15, %73 : vector<64x32xf32>
    %c0_24 = arith.constant 0 : index
    %c0_25 = arith.constant 0 : index
    %75 = vector.load %arg10[%c0_24, %c0_25] : memref<2x32xf32, #tpu.memory_space<vmem>>, vector<1x32xf32>
    %c0_26 = arith.constant 0 : index
    %c0_27 = arith.constant 0 : index
    %76 = vector.load %arg11[%c0_26, %c0_27] : memref<2x32xf32, #tpu.memory_space<vmem>>, vector<1x32xf32>
    %cst_28 = arith.constant dense<0.000000e+00> : vector<64xf32>
    %77 = vector.multi_reduction <add>, %74, %cst_28 [1] : vector<64x32xf32> to vector<64xf32>
    %78 = vector.shape_cast %77 : vector<64xf32> to vector<64x1xf32>
    %cst_29 = arith.constant 3.200000e+01 : f32
    %79 = vector.broadcast %cst_29 : f32 to vector<64x1xf32>
    %80 = arith.divf %78, %79 : vector<64x1xf32>
    %81 = vector.broadcast %80 : vector<64x1xf32> to vector<64x32xf32>
    %82 = arith.subf %74, %81 : vector<64x32xf32>
    %83 = arith.mulf %82, %82 : vector<64x32xf32>
    %cst_30 = arith.constant dense<0.000000e+00> : vector<64xf32>
    %84 = vector.multi_reduction <add>, %83, %cst_30 [1] : vector<64x32xf32> to vector<64xf32>
    %85 = vector.shape_cast %84 : vector<64xf32> to vector<64x1xf32>
    %cst_31 = arith.constant 3.200000e+01 : f32
    %86 = vector.broadcast %cst_31 : f32 to vector<64x1xf32>
    %87 = arith.divf %85, %86 : vector<64x1xf32>
    %88 = vector.broadcast %80 : vector<64x1xf32> to vector<64x32xf32>
    %89 = arith.subf %74, %88 : vector<64x32xf32>
    %cst_32 = arith.constant 9.99999974E-6 : f32
    %90 = vector.broadcast %cst_32 : f32 to vector<64x1xf32>
    %91 = arith.addf %87, %90 : vector<64x1xf32>
    %92 = math.rsqrt %91 : vector<64x1xf32>
    %93 = vector.broadcast %92 : vector<64x1xf32> to vector<64x32xf32>
    %94 = arith.mulf %89, %93 : vector<64x32xf32>
    %95 = vector.broadcast %75 : vector<1x32xf32> to vector<64x32xf32>
    %96 = arith.mulf %94, %95 : vector<64x32xf32>
    %97 = vector.broadcast %76 : vector<1x32xf32> to vector<64x32xf32>
    %98 = arith.addf %96, %97 : vector<64x32xf32>
    %99 = arith.truncf %98 : vector<64x32xf32> to vector<64x32xbf16>
    %c0_33 = arith.constant 0 : index
    %c0_34 = arith.constant 0 : index
    %c0_35 = arith.constant 0 : index
    %100 = vector.load %arg6[%c0_33, %c0_34, %c0_35] : memref<2x32x64xbf16, #tpu.memory_space<vmem>>, vector<1x32x64xbf16>
    %101 = vector.shape_cast %100 : vector<1x32x64xbf16> to vector<32x64xbf16>
    %cst_36 = arith.constant dense<0.000000e+00> : vector<64x64xf32>
    %102 = tpu.matmul %99, %101, %cst_36 {dimension_numbers = #tpu.dot_dimension_numbers<[1], [0], [0], [1], [0, 0, 1, 1], [], []>} : vector<64x32xbf16>, vector<32x64xbf16>, vector<64x64xf32> -> vector<64x64xf32>
    %c0_37 = arith.constant 0 : index
    %c0_38 = arith.constant 0 : index
    %103 = vector.load %arg7[%c0_37, %c0_38] : memref<2x64xf32, #tpu.memory_space<vmem>>, vector<1x64xf32>
    %104 = vector.broadcast %103 : vector<1x64xf32> to vector<64x64xf32>
    %105 = arith.addf %102, %104 : vector<64x64xf32>
    %cst_39 = arith.constant 0.000000e+00 : f32
    %106 = vector.broadcast %cst_39 : f32 to vector<64x64xf32>
    %107 = arith.maximumf %105, %106 : vector<64x64xf32>
    %108 = arith.truncf %107 : vector<64x64xf32> to vector<64x64xbf16>
    %c0_40 = arith.constant 0 : index
    %c0_41 = arith.constant 0 : index
    %c0_42 = arith.constant 0 : index
    %109 = vector.load %arg8[%c0_40, %c0_41, %c0_42] : memref<2x64x32xbf16, #tpu.memory_space<vmem>>, vector<1x64x32xbf16>
    %110 = vector.shape_cast %109 : vector<1x64x32xbf16> to vector<64x32xbf16>
    %cst_43 = arith.constant dense<0.000000e+00> : vector<64x32xf32>
    %111 = tpu.matmul %108, %110, %cst_43 {dimension_numbers = #tpu.dot_dimension_numbers<[1], [0], [0], [1], [0, 0, 1, 1], [], []>} : vector<64x64xbf16>, vector<64x32xbf16>, vector<64x32xf32> -> vector<64x32xf32>
    %c0_44 = arith.constant 0 : index
    %c0_45 = arith.constant 0 : index
    %112 = vector.load %arg9[%c0_44, %c0_45] : memref<2x32xf32, #tpu.memory_space<vmem>>, vector<1x32xf32>
    %113 = vector.broadcast %112 : vector<1x32xf32> to vector<64x32xf32>
    %114 = arith.addf %111, %113 : vector<64x32xf32>
    %115 = arith.addf %98, %114 : vector<64x32xf32>
    %c0_46 = arith.constant 0 : index
    %c0_47 = arith.constant 0 : index
    %116 = vector.load %arg12[%c0_46, %c0_47] : memref<2x32xf32, #tpu.memory_space<vmem>>, vector<1x32xf32>
    %c0_48 = arith.constant 0 : index
    %c0_49 = arith.constant 0 : index
    %117 = vector.load %arg13[%c0_48, %c0_49] : memref<2x32xf32, #tpu.memory_space<vmem>>, vector<1x32xf32>
    %cst_50 = arith.constant dense<0.000000e+00> : vector<64xf32>
    %118 = vector.multi_reduction <add>, %115, %cst_50 [1] : vector<64x32xf32> to vector<64xf32>
    %119 = vector.shape_cast %118 : vector<64xf32> to vector<64x1xf32>
    %cst_51 = arith.constant 3.200000e+01 : f32
    %120 = vector.broadcast %cst_51 : f32 to vector<64x1xf32>
    %121 = arith.divf %119, %120 : vector<64x1xf32>
    %122 = vector.broadcast %121 : vector<64x1xf32> to vector<64x32xf32>
    %123 = arith.subf %115, %122 : vector<64x32xf32>
    %124 = arith.mulf %123, %123 : vector<64x32xf32>
    %cst_52 = arith.constant dense<0.000000e+00> : vector<64xf32>
    %125 = vector.multi_reduction <add>, %124, %cst_52 [1] : vector<64x32xf32> to vector<64xf32>
    %126 = vector.shape_cast %125 : vector<64xf32> to vector<64x1xf32>
    %cst_53 = arith.constant 3.200000e+01 : f32
    %127 = vector.broadcast %cst_53 : f32 to vector<64x1xf32>
    %128 = arith.divf %126, %127 : vector<64x1xf32>
    %129 = vector.broadcast %121 : vector<64x1xf32> to vector<64x32xf32>
    %130 = arith.subf %115, %129 : vector<64x32xf32>
    %cst_54 = arith.constant 9.99999974E-6 : f32
    %131 = vector.broadcast %cst_54 : f32 to vector<64x1xf32>
    %132 = arith.addf %128, %131 : vector<64x1xf32>
    %133 = math.rsqrt %132 : vector<64x1xf32>
    %134 = vector.broadcast %133 : vector<64x1xf32> to vector<64x32xf32>
    %135 = arith.mulf %130, %134 : vector<64x32xf32>
    %136 = vector.broadcast %116 : vector<1x32xf32> to vector<64x32xf32>
    %137 = arith.mulf %135, %136 : vector<64x32xf32>
    %138 = vector.broadcast %117 : vector<1x32xf32> to vector<64x32xf32>
    %139 = arith.addf %137, %138 : vector<64x32xf32>
    %140 = arith.truncf %139 : vector<64x32xf32> to vector<64x32xbf16>
    %c1 = arith.constant 1 : index
    %c0_55 = arith.constant 0 : index
    %c0_56 = arith.constant 0 : index
    %141 = vector.load %arg4[%c1, %c0_55, %c0_56] : memref<2x32x96xbf16, #tpu.memory_space<vmem>>, vector<1x32x96xbf16>
    %142 = vector.shape_cast %141 : vector<1x32x96xbf16> to vector<32x96xbf16>
    %cst_57 = arith.constant dense<0.000000e+00> : vector<64x96xf32>
    %143 = tpu.matmul %140, %142, %cst_57 {dimension_numbers = #tpu.dot_dimension_numbers<[1], [0], [0], [1], [0, 0, 1, 1], [], []>} : vector<64x32xbf16>, vector<32x96xbf16>, vector<64x96xf32> -> vector<64x96xf32>
    %144 = vector.extract_strided_slice %143 {offsets = [0, 0], sizes = [64, 32], strides = [1, 1]} : vector<64x96xf32> to vector<64x32xf32>
    %145 = vector.shape_cast %144 : vector<64x32xf32> to vector<8x8x32xf32>
    %146 = vector.extract_strided_slice %143 {offsets = [0, 32], sizes = [64, 32], strides = [1, 1]} : vector<64x96xf32> to vector<64x32xf32>
    %147 = vector.shape_cast %146 : vector<64x32xf32> to vector<8x8x32xf32>
    %148 = vector.extract_strided_slice %143 {offsets = [0, 64], sizes = [64, 32], strides = [1, 1]} : vector<64x96xf32> to vector<64x32xf32>
    %149 = vector.shape_cast %148 : vector<64x32xf32> to vector<8x8x32xf32>
    %150 = vector.extract_strided_slice %145 {offsets = [0, 0, 0], sizes = [8, 8, 16], strides = [1, 1, 1]} : vector<8x8x32xf32> to vector<8x8x16xf32>
    %151 = arith.truncf %150 : vector<8x8x16xf32> to vector<8x8x16xbf16>
    %152 = vector.extract_strided_slice %147 {offsets = [0, 0, 0], sizes = [8, 8, 16], strides = [1, 1, 1]} : vector<8x8x32xf32> to vector<8x8x16xf32>
    %153 = arith.truncf %152 : vector<8x8x16xf32> to vector<8x8x16xbf16>
    %154 = vector.extract_strided_slice %149 {offsets = [0, 0, 0], sizes = [8, 8, 16], strides = [1, 1, 1]} : vector<8x8x32xf32> to vector<8x8x16xf32>
    %155 = arith.truncf %154 : vector<8x8x16xf32> to vector<8x8x16xbf16>
    "tpu.trace_start"() <{level = 10 : i32, message = "bqd,bkd->bqk"}> : () -> ()
    %cst_58 = arith.constant dense<0.000000e+00> : vector<8x8x8xf32>
    %156 = tpu.matmul %151, %153, %cst_58 {dimension_numbers = #tpu.dot_dimension_numbers<[2], [2], [1], [1], [0, 0, 0, 1, 1, 1], [0], [0]>} : vector<8x8x16xbf16>, vector<8x8x16xbf16>, vector<8x8x8xf32> -> vector<8x8x8xf32>
    "tpu.trace_stop"() : () -> ()
    %cst_59 = arith.constant 2.500000e-01 : f32
    %157 = vector.broadcast %cst_59 : f32 to vector<8x8x8xf32>
    %158 = arith.mulf %156, %157 : vector<8x8x8xf32>
    %cst_60 = arith.constant dense<0xFF800000> : vector<8x8xf32>
    %159 = vector.multi_reduction <maximumf>, %158, %cst_60 [2] : vector<8x8x8xf32> to vector<8x8xf32>
    %160 = vector.shape_cast %159 : vector<8x8xf32> to vector<8x8x1xf32>
    %161 = vector.broadcast %160 : vector<8x8x1xf32> to vector<8x8x8xf32>
    %162 = arith.subf %158, %161 : vector<8x8x8xf32>
    %163 = math.exp %162 : vector<8x8x8xf32>
    %cst_61 = arith.constant dense<0.000000e+00> : vector<8x8xf32>
    %164 = vector.multi_reduction <add>, %163, %cst_61 [2] : vector<8x8x8xf32> to vector<8x8xf32>
    %165 = vector.shape_cast %164 : vector<8x8xf32> to vector<8x8x1xf32>
    %166 = tpu.reciprocal %165 {approx = true} : vector<8x8x1xf32> -> vector<8x8x1xf32>
    %167 = vector.broadcast %166 : vector<8x8x1xf32> to vector<8x8x8xf32>
    %168 = arith.mulf %163, %167 : vector<8x8x8xf32>
    %169 = arith.truncf %168 : vector<8x8x8xf32> to vector<8x8x8xbf16>
    "tpu.trace_start"() <{level = 10 : i32, message = "bqk,bkd->bqd"}> : () -> ()
    %cst_62 = arith.constant dense<0.000000e+00> : vector<8x8x16xf32>
    %170 = tpu.matmul %169, %155, %cst_62 {dimension_numbers = #tpu.dot_dimension_numbers<[2], [1], [1], [2], [0, 0, 0, 1, 1, 2], [0], [0]>} : vector<8x8x8xbf16>, vector<8x8x16xbf16>, vector<8x8x16xf32> -> vector<8x8x16xf32>
    "tpu.trace_stop"() : () -> ()
    %171 = vector.extract_strided_slice %145 {offsets = [0, 0, 16], sizes = [8, 8, 16], strides = [1, 1, 1]} : vector<8x8x32xf32> to vector<8x8x16xf32>
    %172 = arith.truncf %171 : vector<8x8x16xf32> to vector<8x8x16xbf16>
    %173 = vector.extract_strided_slice %147 {offsets = [0, 0, 16], sizes = [8, 8, 16], strides = [1, 1, 1]} : vector<8x8x32xf32> to vector<8x8x16xf32>
    %174 = arith.truncf %173 : vector<8x8x16xf32> to vector<8x8x16xbf16>
    %175 = vector.extract_strided_slice %149 {offsets = [0, 0, 16], sizes = [8, 8, 16], strides = [1, 1, 1]} : vector<8x8x32xf32> to vector<8x8x16xf32>
    %176 = arith.truncf %175 : vector<8x8x16xf32> to vector<8x8x16xbf16>
    "tpu.trace_start"() <{level = 10 : i32, message = "bqd,bkd->bqk"}> : () -> ()
    %cst_63 = arith.constant dense<0.000000e+00> : vector<8x8x8xf32>
    %177 = tpu.matmul %172, %174, %cst_63 {dimension_numbers = #tpu.dot_dimension_numbers<[2], [2], [1], [1], [0, 0, 0, 1, 1, 1], [0], [0]>} : vector<8x8x16xbf16>, vector<8x8x16xbf16>, vector<8x8x8xf32> -> vector<8x8x8xf32>
    "tpu.trace_stop"() : () -> ()
    %cst_64 = arith.constant 2.500000e-01 : f32
    %178 = vector.broadcast %cst_64 : f32 to vector<8x8x8xf32>
    %179 = arith.mulf %177, %178 : vector<8x8x8xf32>
    %cst_65 = arith.constant dense<0xFF800000> : vector<8x8xf32>
    %180 = vector.multi_reduction <maximumf>, %179, %cst_65 [2] : vector<8x8x8xf32> to vector<8x8xf32>
    %181 = vector.shape_cast %180 : vector<8x8xf32> to vector<8x8x1xf32>
    %182 = vector.broadcast %181 : vector<8x8x1xf32> to vector<8x8x8xf32>
    %183 = arith.subf %179, %182 : vector<8x8x8xf32>
    %184 = math.exp %183 : vector<8x8x8xf32>
    %cst_66 = arith.constant dense<0.000000e+00> : vector<8x8xf32>
    %185 = vector.multi_reduction <add>, %184, %cst_66 [2] : vector<8x8x8xf32> to vector<8x8xf32>
    %186 = vector.shape_cast %185 : vector<8x8xf32> to vector<8x8x1xf32>
    %187 = tpu.reciprocal %186 {approx = true} : vector<8x8x1xf32> -> vector<8x8x1xf32>
    %188 = vector.broadcast %187 : vector<8x8x1xf32> to vector<8x8x8xf32>
    %189 = arith.mulf %184, %188 : vector<8x8x8xf32>
    %190 = arith.truncf %189 : vector<8x8x8xf32> to vector<8x8x8xbf16>
    "tpu.trace_start"() <{level = 10 : i32, message = "bqk,bkd->bqd"}> : () -> ()
    %cst_67 = arith.constant dense<0.000000e+00> : vector<8x8x16xf32>
    %191 = tpu.matmul %190, %176, %cst_67 {dimension_numbers = #tpu.dot_dimension_numbers<[2], [1], [1], [2], [0, 0, 0, 1, 1, 2], [0], [0]>} : vector<8x8x8xbf16>, vector<8x8x16xbf16>, vector<8x8x16xf32> -> vector<8x8x16xf32>
    "tpu.trace_stop"() : () -> ()
    %192 = tpu.concatenate %170, %191 in 2 : vector<8x8x16xf32>, vector<8x8x16xf32> -> vector<8x8x32xf32>
    %193 = vector.shape_cast %192 : vector<8x8x32xf32> to vector<64x32xf32>
    %194 = arith.truncf %193 : vector<64x32xf32> to vector<64x32xbf16>
    %c1_68 = arith.constant 1 : index
    %c0_69 = arith.constant 0 : index
    %c0_70 = arith.constant 0 : index
    %195 = vector.load %arg5[%c1_68, %c0_69, %c0_70] : memref<2x32x32xbf16, #tpu.memory_space<vmem>>, vector<1x32x32xbf16>
    %196 = vector.shape_cast %195 : vector<1x32x32xbf16> to vector<32x32xbf16>
    %cst_71 = arith.constant dense<0.000000e+00> : vector<64x32xf32>
    %197 = tpu.matmul %194, %196, %cst_71 {dimension_numbers = #tpu.dot_dimension_numbers<[1], [0], [0], [1], [0, 0, 1, 1], [], []>} : vector<64x32xbf16>, vector<32x32xbf16>, vector<64x32xf32> -> vector<64x32xf32>
    %198 = arith.addf %139, %197 : vector<64x32xf32>
    %c1_72 = arith.constant 1 : index
    %c0_73 = arith.constant 0 : index
    %199 = vector.load %arg10[%c1_72, %c0_73] : memref<2x32xf32, #tpu.memory_space<vmem>>, vector<1x32xf32>
    %c1_74 = arith.constant 1 : index
    %c0_75 = arith.constant 0 : index
    %200 = vector.load %arg11[%c1_74, %c0_75] : memref<2x32xf32, #tpu.memory_space<vmem>>, vector<1x32xf32>
    %cst_76 = arith.constant dense<0.000000e+00> : vector<64xf32>
    %201 = vector.multi_reduction <add>, %198, %cst_76 [1] : vector<64x32xf32> to vector<64xf32>
    %202 = vector.shape_cast %201 : vector<64xf32> to vector<64x1xf32>
    %cst_77 = arith.constant 3.200000e+01 : f32
    %203 = vector.broadcast %cst_77 : f32 to vector<64x1xf32>
    %204 = arith.divf %202, %203 : vector<64x1xf32>
    %205 = vector.broadcast %204 : vector<64x1xf32> to vector<64x32xf32>
    %206 = arith.subf %198, %205 : vector<64x32xf32>
    %207 = arith.mulf %206, %206 : vector<64x32xf32>
    %cst_78 = arith.constant dense<0.000000e+00> : vector<64xf32>
    %208 = vector.multi_reduction <add>, %207, %cst_78 [1] : vector<64x32xf32> to vector<64xf32>
    %209 = vector.shape_cast %208 : vector<64xf32> to vector<64x1xf32>
    %cst_79 = arith.constant 3.200000e+01 : f32
    %210 = vector.broadcast %cst_79 : f32 to vector<64x1xf32>
    %211 = arith.divf %209, %210 : vector<64x1xf32>
    %212 = vector.broadcast %204 : vector<64x1xf32> to vector<64x32xf32>
    %213 = arith.subf %198, %212 : vector<64x32xf32>
    %cst_80 = arith.constant 9.99999974E-6 : f32
    %214 = vector.broadcast %cst_80 : f32 to vector<64x1xf32>
    %215 = arith.addf %211, %214 : vector<64x1xf32>
    %216 = math.rsqrt %215 : vector<64x1xf32>
    %217 = vector.broadcast %216 : vector<64x1xf32> to vector<64x32xf32>
    %218 = arith.mulf %213, %217 : vector<64x32xf32>
    %219 = vector.broadcast %199 : vector<1x32xf32> to vector<64x32xf32>
    %220 = arith.mulf %218, %219 : vector<64x32xf32>
    %221 = vector.broadcast %200 : vector<1x32xf32> to vector<64x32xf32>
    %222 = arith.addf %220, %221 : vector<64x32xf32>
    %223 = arith.truncf %222 : vector<64x32xf32> to vector<64x32xbf16>
    %c1_81 = arith.constant 1 : index
    %c0_82 = arith.constant 0 : index
    %c0_83 = arith.constant 0 : index
    %224 = vector.load %arg6[%c1_81, %c0_82, %c0_83] : memref<2x32x64xbf16, #tpu.memory_space<vmem>>, vector<1x32x64xbf16>
    %225 = vector.shape_cast %224 : vector<1x32x64xbf16> to vector<32x64xbf16>
    %cst_84 = arith.constant dense<0.000000e+00> : vector<64x64xf32>
    %226 = tpu.matmul %223, %225, %cst_84 {dimension_numbers = #tpu.dot_dimension_numbers<[1], [0], [0], [1], [0, 0, 1, 1], [], []>} : vector<64x32xbf16>, vector<32x64xbf16>, vector<64x64xf32> -> vector<64x64xf32>
    %c1_85 = arith.constant 1 : index
    %c0_86 = arith.constant 0 : index
    %227 = vector.load %arg7[%c1_85, %c0_86] : memref<2x64xf32, #tpu.memory_space<vmem>>, vector<1x64xf32>
    %228 = vector.broadcast %227 : vector<1x64xf32> to vector<64x64xf32>
    %229 = arith.addf %226, %228 : vector<64x64xf32>
    %cst_87 = arith.constant 0.000000e+00 : f32
    %230 = vector.broadcast %cst_87 : f32 to vector<64x64xf32>
    %231 = arith.maximumf %229, %230 : vector<64x64xf32>
    %232 = arith.truncf %231 : vector<64x64xf32> to vector<64x64xbf16>
    %c1_88 = arith.constant 1 : index
    %c0_89 = arith.constant 0 : index
    %c0_90 = arith.constant 0 : index
    %233 = vector.load %arg8[%c1_88, %c0_89, %c0_90] : memref<2x64x32xbf16, #tpu.memory_space<vmem>>, vector<1x64x32xbf16>
    %234 = vector.shape_cast %233 : vector<1x64x32xbf16> to vector<64x32xbf16>
    %cst_91 = arith.constant dense<0.000000e+00> : vector<64x32xf32>
    %235 = tpu.matmul %232, %234, %cst_91 {dimension_numbers = #tpu.dot_dimension_numbers<[1], [0], [0], [1], [0, 0, 1, 1], [], []>} : vector<64x64xbf16>, vector<64x32xbf16>, vector<64x32xf32> -> vector<64x32xf32>
    %c1_92 = arith.constant 1 : index
    %c0_93 = arith.constant 0 : index
    %236 = vector.load %arg9[%c1_92, %c0_93] : memref<2x32xf32, #tpu.memory_space<vmem>>, vector<1x32xf32>
    %237 = vector.broadcast %236 : vector<1x32xf32> to vector<64x32xf32>
    %238 = arith.addf %235, %237 : vector<64x32xf32>
    %239 = arith.addf %222, %238 : vector<64x32xf32>
    %c1_94 = arith.constant 1 : index
    %c0_95 = arith.constant 0 : index
    %240 = vector.load %arg12[%c1_94, %c0_95] : memref<2x32xf32, #tpu.memory_space<vmem>>, vector<1x32xf32>
    %c1_96 = arith.constant 1 : index
    %c0_97 = arith.constant 0 : index
    %241 = vector.load %arg13[%c1_96, %c0_97] : memref<2x32xf32, #tpu.memory_space<vmem>>, vector<1x32xf32>
    %cst_98 = arith.constant dense<0.000000e+00> : vector<64xf32>
    %242 = vector.multi_reduction <add>, %239, %cst_98 [1] : vector<64x32xf32> to vector<64xf32>
    %243 = vector.shape_cast %242 : vector<64xf32> to vector<64x1xf32>
    %cst_99 = arith.constant 3.200000e+01 : f32
    %244 = vector.broadcast %cst_99 : f32 to vector<64x1xf32>
    %245 = arith.divf %243, %244 : vector<64x1xf32>
    %246 = vector.broadcast %245 : vector<64x1xf32> to vector<64x32xf32>
    %247 = arith.subf %239, %246 : vector<64x32xf32>
    %248 = arith.mulf %247, %247 : vector<64x32xf32>
    %cst_100 = arith.constant dense<0.000000e+00> : vector<64xf32>
    %249 = vector.multi_reduction <add>, %248, %cst_100 [1] : vector<64x32xf32> to vector<64xf32>
    %250 = vector.shape_cast %249 : vector<64xf32> to vector<64x1xf32>
    %cst_101 = arith.constant 3.200000e+01 : f32
    %251 = vector.broadcast %cst_101 : f32 to vector<64x1xf32>
    %252 = arith.divf %250, %251 : vector<64x1xf32>
    %253 = vector.broadcast %245 : vector<64x1xf32> to vector<64x32xf32>
    %254 = arith.subf %239, %253 : vector<64x32xf32>
    %cst_102 = arith.constant 9.99999974E-6 : f32
    %255 = vector.broadcast %cst_102 : f32 to vector<64x1xf32>
    %256 = arith.addf %252, %255 : vector<64x1xf32>
    %257 = math.rsqrt %256 : vector<64x1xf32>
    %258 = vector.broadcast %257 : vector<64x1xf32> to vector<64x32xf32>
    %259 = arith.mulf %254, %258 : vector<64x32xf32>
    %260 = vector.broadcast %240 : vector<1x32xf32> to vector<64x32xf32>
    %261 = arith.mulf %259, %260 : vector<64x32xf32>
    %262 = vector.broadcast %241 : vector<1x32xf32> to vector<64x32xf32>
    %263 = arith.addf %261, %262 : vector<64x32xf32>
    %c0_103 = arith.constant 0 : index
    %c0_104 = arith.constant 0 : index
    %264 = vector.load %arg14[%c0_103, %c0_104] : memref<1x32xf32, #tpu.memory_space<vmem>>, vector<1x32xf32>
    %c0_105 = arith.constant 0 : index
    %c0_106 = arith.constant 0 : index
    %265 = vector.load %arg15[%c0_105, %c0_106] : memref<1x32xf32, #tpu.memory_space<vmem>>, vector<1x32xf32>
    %cst_107 = arith.constant dense<0.000000e+00> : vector<64xf32>
    %266 = vector.multi_reduction <add>, %263, %cst_107 [1] : vector<64x32xf32> to vector<64xf32>
    %267 = vector.shape_cast %266 : vector<64xf32> to vector<64x1xf32>
    %cst_108 = arith.constant 3.200000e+01 : f32
    %268 = vector.broadcast %cst_108 : f32 to vector<64x1xf32>
    %269 = arith.divf %267, %268 : vector<64x1xf32>
    %270 = vector.broadcast %269 : vector<64x1xf32> to vector<64x32xf32>
    %271 = arith.subf %263, %270 : vector<64x32xf32>
    %272 = arith.mulf %271, %271 : vector<64x32xf32>
    %cst_109 = arith.constant dense<0.000000e+00> : vector<64xf32>
    %273 = vector.multi_reduction <add>, %272, %cst_109 [1] : vector<64x32xf32> to vector<64xf32>
    %274 = vector.shape_cast %273 : vector<64xf32> to vector<64x1xf32>
    %cst_110 = arith.constant 3.200000e+01 : f32
    %275 = vector.broadcast %cst_110 : f32 to vector<64x1xf32>
    %276 = arith.divf %274, %275 : vector<64x1xf32>
    %277 = vector.broadcast %269 : vector<64x1xf32> to vector<64x32xf32>
    %278 = arith.subf %263, %277 : vector<64x32xf32>
    %cst_111 = arith.constant 9.99999974E-6 : f32
    %279 = vector.broadcast %cst_111 : f32 to vector<64x1xf32>
    %280 = arith.addf %276, %279 : vector<64x1xf32>
    %281 = math.rsqrt %280 : vector<64x1xf32>
    %282 = vector.broadcast %281 : vector<64x1xf32> to vector<64x32xf32>
    %283 = arith.mulf %278, %282 : vector<64x32xf32>
    %284 = vector.broadcast %264 : vector<1x32xf32> to vector<64x32xf32>
    %285 = arith.mulf %283, %284 : vector<64x32xf32>
    %286 = vector.broadcast %265 : vector<1x32xf32> to vector<64x32xf32>
    %287 = arith.addf %285, %286 : vector<64x32xf32>
    %288 = arith.truncf %287 : vector<64x32xf32> to vector<64x32xbf16>
    %c0_112 = arith.constant 0 : index
    %c0_113 = arith.constant 0 : index
    %289 = vector.load %arg16[%c0_112, %c0_113] : memref<32x4xbf16, #tpu.memory_space<vmem>>, vector<32x4xbf16>
    %cst_114 = arith.constant dense<0.000000e+00> : vector<64x4xf32>
    %290 = tpu.matmul %288, %289, %cst_114 {dimension_numbers = #tpu.dot_dimension_numbers<[1], [0], [0], [1], [0, 0, 1, 1], [], []>} : vector<64x32xbf16>, vector<32x4xbf16>, vector<64x4xf32> -> vector<64x4xf32>
    %c0_115 = arith.constant 0 : index
    %c0_116 = arith.constant 0 : index
    %291 = vector.load %arg17[%c0_115, %c0_116] : memref<1x4xf32, #tpu.memory_space<vmem>>, vector<1x4xf32>
    %292 = vector.broadcast %291 : vector<1x4xf32> to vector<64x4xf32>
    %293 = arith.addf %290, %292 : vector<64x4xf32>
    %294 = vector.shape_cast %293 : vector<64x4xf32> to vector<8x8x4xf32>
    %295 = arith.mulf %2, %1 : vector<8x8x4xf32>
    %cst_117 = arith.constant 1.000000e+00 : f32
    %296 = vector.broadcast %cst_117 : f32 to vector<8x8x4xf32>
    %297 = arith.subf %296, %2 : vector<8x8x4xf32>
    %298 = arith.mulf %297, %294 : vector<8x8x4xf32>
    %299 = arith.addf %295, %298 : vector<8x8x4xf32>
    %300 = tpu.concatenate %299, %294 in 2 : vector<8x8x4xf32>, vector<8x8x4xf32> -> vector<8x8x8xf32>
    %c0_118 = arith.constant 0 : index
    %c0_119 = arith.constant 0 : index
    %c0_120 = arith.constant 0 : index
    %301 = vector.load %arg18[%c0_118, %c0_119, %c0_120] : memref<8x8x8xf32, #tpu.memory_space<vmem>>, vector<8x8x8xf32>
    tpu.vector_store %arg18[%c0_118, %c0_119, %c0_120], %300 {strides = array<i32>} : memref<8x8x8xf32, #tpu.memory_space<vmem>>, vector<8x8x8xf32>,
    return
  }
  func.func @transform_0(%arg0: i32) -> (i32, i32, i32) {
    %c0_i32 = arith.constant 0 : i32
    %c0_i32_0 = arith.constant 0 : i32
    %c0_i32_1 = arith.constant 0 : i32
    return %arg0, %c0_i32, %c0_i32_0 : i32, i32, i32
  }
  func.func @transform_1(%arg0: i32) -> (i32, i32) {
    %c0_i32 = arith.constant 0 : i32
    %c0_i32_0 = arith.constant 0 : i32
    %c0_i32_1 = arith.constant 0 : i32
    return %c0_i32, %c0_i32_0 : i32, i32
  }
  func.func @transform_2(%arg0: i32) -> (i32, i32) {
    %c0_i32 = arith.constant 0 : i32
    %c0_i32_0 = arith.constant 0 : i32
    %c0_i32_1 = arith.constant 0 : i32
    return %c0_i32, %c0_i32_0 : i32, i32
  }
  func.func @transform_3(%arg0: i32) -> (i32, i32, i32) {
    %c0_i32 = arith.constant 0 : i32
    %c0_i32_0 = arith.constant 0 : i32
    %c0_i32_1 = arith.constant 0 : i32
    %c0_i32_2 = arith.constant 0 : i32
    return %c0_i32, %c0_i32_0, %c0_i32_1 : i32, i32, i32
  }
  func.func @transform_4(%arg0: i32) -> (i32, i32, i32) {
    %c0_i32 = arith.constant 0 : i32
    %c0_i32_0 = arith.constant 0 : i32
    %c0_i32_1 = arith.constant 0 : i32
    %c0_i32_2 = arith.constant 0 : i32
    return %c0_i32, %c0_i32_0, %c0_i32_1 : i32, i32, i32
  }
  func.func @transform_5(%arg0: i32) -> (i32, i32, i32) {
    %c0_i32 = arith.constant 0 : i32
    %c0_i32_0 = arith.constant 0 : i32
    %c0_i32_1 = arith.constant 0 : i32
    %c0_i32_2 = arith.constant 0 : i32
    return %c0_i32, %c0_i32_0, %c0_i32_1 : i32, i32, i32
  }
  func.func @transform_6(%arg0: i32) -> (i32, i32) {
    %c0_i32 = arith.constant 0 : i32
    %c0_i32_0 = arith.constant 0 : i32
    %c0_i32_1 = arith.constant 0 : i32
    return %c0_i32, %c0_i32_0 : i32, i32
  }
  func.func @transform_7(%arg0: i32) -> (i32, i32, i32) {
    %c0_i32 = arith.constant 0 : i32
    %c0_i32_0 = arith.constant 0 : i32
    %c0_i32_1 = arith.constant 0 : i32
    %c0_i32_2 = arith.constant 0 : i32
    return %c0_i32, %c0_i32_0, %c0_i32_1 : i32, i32, i32
  }
  func.func @transform_8(%arg0: i32) -> (i32, i32) {
    %c0_i32 = arith.constant 0 : i32
    %c0_i32_0 = arith.constant 0 : i32
    %c0_i32_1 = arith.constant 0 : i32
    return %c0_i32, %c0_i32_0 : i32, i32
  }
  func.func @transform_9(%arg0: i32) -> (i32, i32) {
    %c0_i32 = arith.constant 0 : i32
    %c0_i32_0 = arith.constant 0 : i32
    %c0_i32_1 = arith.constant 0 : i32
    return %c0_i32, %c0_i32_0 : i32, i32
  }
  func.func @transform_10(%arg0: i32) -> (i32, i32) {
    %c0_i32 = arith.constant 0 : i32
    %c0_i32_0 = arith.constant 0 : i32
    %c0_i32_1 = arith.constant 0 : i32
    return %c0_i32, %c0_i32_0 : i32, i32
  }
  func.func @transform_11(%arg0: i32) -> (i32, i32) {
    %c0_i32 = arith.constant 0 : i32
    %c0_i32_0 = arith.constant 0 : i32
    %c0_i32_1 = arith.constant 0 : i32
    return %c0_i32, %c0_i32_0 : i32, i32
  }
  func.func @transform_12(%arg0: i32) -> (i32, i32) {
    %c0_i32 = arith.constant 0 : i32
    %c0_i32_0 = arith.constant 0 : i32
    %c0_i32_1 = arith.constant 0 : i32
    return %c0_i32, %c0_i32_0 : i32, i32
  }
  func.func @transform_13(%arg0: i32) -> (i32, i32) {
    %c0_i32 = arith.constant 0 : i32
    %c0_i32_0 = arith.constant 0 : i32
    %c0_i32_1 = arith.constant 0 : i32
    return %c0_i32, %c0_i32_0 : i32, i32
  }
  func.func @transform_14(%arg0: i32) -> (i32, i32) {
    %c0_i32 = arith.constant 0 : i32
    %c0_i32_0 = arith.constant 0 : i32
    %c0_i32_1 = arith.constant 0 : i32
    return %c0_i32, %c0_i32_0 : i32, i32
  }
  func.func @transform_15(%arg0: i32) -> (i32, i32) {
    %c0_i32 = arith.constant 0 : i32
    %c0_i32_0 = arith.constant 0 : i32
    %c0_i32_1 = arith.constant 0 : i32
    return %c0_i32, %c0_i32_0 : i32, i32
  }
  func.func @transform_16(%arg0: i32) -> (i32, i32) {
    %c0_i32 = arith.constant 0 : i32
    %c0_i32_0 = arith.constant 0 : i32
    %c0_i32_1 = arith.constant 0 : i32
    return %c0_i32, %c0_i32_0 : i32, i32
  }
  func.func @transform_17(%arg0: i32) -> (i32, i32, i32) {
    %c0_i32 = arith.constant 0 : i32
    %c0_i32_0 = arith.constant 0 : i32
    %c0_i32_1 = arith.constant 0 : i32
    return %arg0, %c0_i32, %c0_i32_0 : i32, i32, i32
  }
}

</mosaic_0001>

<llo_original>
// kernel: tpu_custom_call.1
$region0: #{tpu_custom_call.1}
  #allocation0 [shape = 'u32[]', space=smem, size = 0x4, offset = 0x4, fixed_abs, tag = 'smem constant byte address 0x4 - core index']
  #allocation1 [shape = 'u32[144,128]{1,0:T(1,128)}', space=vmem, size = 0x12000, scoped, tag = 'internal scratch']
  %s0 = inlined_call_operand.vmem [shape: f32[8,8,8], index: 0, kind: input, shape index: {}]
  %s1 = inlined_call_operand.vmem [shape: bf16[12,32], index: 1, kind: input, shape index: {}]
  %s2 = inlined_call_operand.hbm [shape: f32[8,32], index: 2, kind: input, shape index: {}]
  %s3 = inlined_call_operand.vmem [shape: bf16[2,32,96], index: 3, kind: input, shape index: {}]
  %s4 = inlined_call_operand.hbm [shape: bf16[2,32,32], index: 4, kind: input, shape index: {}]
  %s5 = inlined_call_operand.hbm [shape: bf16[2,32,64], index: 5, kind: input, shape index: {}]
  %s6 = inlined_call_operand.vmem [shape: f32[2,64], index: 6, kind: input, shape index: {}]
  %s7 = inlined_call_operand.vmem [shape: bf16[2,64,32], index: 7, kind: input, shape index: {}]
  %s8 = inlined_call_operand.vmem [shape: f32[2,32], index: 8, kind: input, shape index: {}]
  %s9 = inlined_call_operand.vmem [shape: f32[2,32], index: 9, kind: input, shape index: {}]
  %s10 = inlined_call_operand.vmem [shape: f32[2,32], index: 10, kind: input, shape index: {}]
  %s11 = inlined_call_operand.vmem [shape: f32[2,32], index: 11, kind: input, shape index: {}]
  %s12 = inlined_call_operand.vmem [shape: f32[2,32], index: 12, kind: input, shape index: {}]
  %s13 = inlined_call_operand.vmem [shape: f32[1,32], index: 13, kind: input, shape index: {}]
  %s14 = inlined_call_operand.vmem [shape: f32[1,32], index: 14, kind: input, shape index: {}]
  %s15 = inlined_call_operand.vmem [shape: bf16[32,4], index: 15, kind: input, shape index: {}]
  %s16 = inlined_call_operand.vmem [shape: f32[1,4], index: 16, kind: input, shape index: {}]
  %s17 = inlined_call_operand.hbm [shape: f32[8,8,8], index: 17, kind: output, shape index: {}]
  %s18 = sld [smem:[#allocation0]]
  $region90: #{tpu_custom_call.1} parent=0
    _
  %s20 = ssub.s32 1, %s18
  %s21 = scalar_select 0, %s20, %s18
  $region1: #{tpu_custom_call.1} parent=0
    #allocation2 [shape = 'u8[4096]{0}', space=vmem, size = 0x1000, scoped, tag = 'input window, operand 2, single buffered']
    #allocation3 [shape = 's32[1]{0}', space=sflag, size = 0x4, scoped, tag = 'scoped memory for tpu_custom_call.1']
    #allocation4 [shape = 's32[1]{0}', space=sflag, size = 0x4, scoped, tag = 'scoped memory for tpu_custom_call.1']
    #allocation5 [shape = 'u8[16384]{0}', space=vmem, size = 0x4000, scoped, tag = 'input window, operand 4, single buffered']
    #allocation6 [shape = 's32[1]{0}', space=sflag, size = 0x4, scoped, tag = 'scoped memory for tpu_custom_call.1']
    #allocation7 [shape = 'u8[16384]{0}', space=vmem, size = 0x4000, scoped, tag = 'input window, operand 5, single buffered']
    #allocation8 [shape = 'u8[32768]{0}', space=vmem, size = 0x8000, scoped, tag = 'output window, operand 0, single buffered']
    %22 = vsyncpa [#allocation3], 0
    %23 = vsyncpa [#allocation6], 0
    %24 = vsyncpa [#allocation4], 0
    // Predicated region
    $region2: #{tpu_custom_call.1} parent=1 // pred_check
      _
    $region3: #{tpu_custom_call.1} parent=1 // pred_check_branch
      %26 = sbr.rel (0) target = $region5
    $region4: #{tpu_custom_call.1} parent=1 // pred_region
      _
    $region5: #{tpu_custom_call.1} parent=1 // pred_fallthru
      _
    // Predicated region
    $region6: #{tpu_custom_call.1} parent=1 // pred_check
      _
    $region7: #{tpu_custom_call.1} parent=1 // pred_check_branch
      %28 = sbr.rel (0) target = $region9
    $region8: #{tpu_custom_call.1} parent=1 // pred_region
      _
    $region9: #{tpu_custom_call.1} parent=1 // pred_fallthru
      _
    // Predicated region
    $region10: #{tpu_custom_call.1} parent=1 // pred_check
      _
    $region11: #{tpu_custom_call.1} parent=1 // pred_check_branch
      %30 = sbr.rel (0) target = $region13
    $region12: #{tpu_custom_call.1} parent=1 // pred_region
      %s32 = ssub.s32 128, 128
      %33 = vsyncadd [#allocation3], %s32
      %s35 = sshll.u32 [#allocation2], 4
      %s36 = int_to_ptr.vmem [resolvable:$true] %s35
      %38 = dma.hbm_to_vmem [thread:$0]  %s2, 128, %s36, [#allocation3]
    $region13: #{tpu_custom_call.1} parent=1 // pred_fallthru
      _
    // Predicated region
    $region14: #{tpu_custom_call.1} parent=1 // pred_check
      _
    $region15: #{tpu_custom_call.1} parent=1 // pred_check_branch
      %40 = sbr.rel (0) target = $region17
    $region16: #{tpu_custom_call.1} parent=1 // pred_region
      _
    $region17: #{tpu_custom_call.1} parent=1 // pred_fallthru
      _
    // Predicated region
    $region18: #{tpu_custom_call.1} parent=1 // pred_check
      _
    $region19: #{tpu_custom_call.1} parent=1 // pred_check_branch
      %42 = sbr.rel (0) target = $region21
    $region20: #{tpu_custom_call.1} parent=1 // pred_region
      %s44 = ssub.s32 512, 512
      %45 = vsyncadd [#allocation6], %s44
      %s46 = sshll.u32 [#allocation5], 4
      %s47 = int_to_ptr.vmem [resolvable:$true] %s46
      %52 = dma.hbm_to_vmem [thread:$0]  %s4, 512, %s47, [#allocation6], 64, 64, 4
    $region21: #{tpu_custom_call.1} parent=1 // pred_fallthru
      _
    // Predicated region
    $region22: #{tpu_custom_call.1} parent=1 // pred_check
      _
    $region23: #{tpu_custom_call.1} parent=1 // pred_check_branch
      %54 = sbr.rel (0) target = $region25
    $region24: #{tpu_custom_call.1} parent=1 // pred_region
      %s56 = ssub.s32 512, 512
      %57 = vsyncadd [#allocation6], %s56
      %s58 = sshll.u32 [#allocation7], 4
      %s59 = int_to_ptr.vmem [resolvable:$true] %s58
      %64 = dma.hbm_to_vmem [thread:$0]  %s5, 512, %s59, [#allocation6], 64, 64, 4
    $region25: #{tpu_custom_call.1} parent=1 // pred_fallthru
      _
    // Predicated region
    $region26: #{tpu_custom_call.1} parent=1 // pred_check
      _
    $region27: #{tpu_custom_call.1} parent=1 // pred_check_branch
      %66 = sbr.rel (0) target = $region29
    $region28: #{tpu_custom_call.1} parent=1 // pred_region
      _
    $region29: #{tpu_custom_call.1} parent=1 // pred_fallthru
      _
    // Predicated region
    $region30: #{tpu_custom_call.1} parent=1 // pred_check
      _
    $region31: #{tpu_custom_call.1} parent=1 // pred_check_branch
      %68 = sbr.rel (0) target = $region33
    $region32: #{tpu_custom_call.1} parent=1 // pred_region
      _
    $region33: #{tpu_custom_call.1} parent=1 // pred_fallthru
      _
    // Predicated region
    $region34: #{tpu_custom_call.1} parent=1 // pred_check
      _
    $region35: #{tpu_custom_call.1} parent=1 // pred_check_branch
      %70 = sbr.rel (0) target = $region37
    $region36: #{tpu_custom_call.1} parent=1 // pred_region
      _
    $region37: #{tpu_custom_call.1} parent=1 // pred_fallthru
      _
    // Predicated region
    $region38: #{tpu_custom_call.1} parent=1 // pred_check
      _
    $region39: #{tpu_custom_call.1} parent=1 // pred_check_branch
      %72 = sbr.rel (0) target = $region41
    $region40: #{tpu_custom_call.1} parent=1 // pred_region
      _
    $region41: #{tpu_custom_call.1} parent=1 // pred_fallthru
      _
    // Predicated region
    $region42: #{tpu_custom_call.1} parent=1 // pred_check
      _
    $region43: #{tpu_custom_call.1} parent=1 // pred_check_branch
      %74 = sbr.rel (0) target = $region45
    $region44: #{tpu_custom_call.1} parent=1 // pred_region
      _
    $region45: #{tpu_custom_call.1} parent=1 // pred_fallthru
      _
    // Predicated region
    $region46: #{tpu_custom_call.1} parent=1 // pred_check
      _
    $region47: #{tpu_custom_call.1} parent=1 // pred_check_branch
      %76 = sbr.rel (0) target = $region49
    $region48: #{tpu_custom_call.1} parent=1 // pred_region
      _
    $region49: #{tpu_custom_call.1} parent=1 // pred_fallthru
      _
    // Predicated region
    $region50: #{tpu_custom_call.1} parent=1 // pred_check
      _
    $region51: #{tpu_custom_call.1} parent=1 // pred_check_branch
      %78 = sbr.rel (0) target = $region53
    $region52: #{tpu_custom_call.1} parent=1 // pred_region
      _
    $region53: #{tpu_custom_call.1} parent=1 // pred_fallthru
      _
    // Predicated region
    $region54: #{tpu_custom_call.1} parent=1 // pred_check
      _
    $region55: #{tpu_custom_call.1} parent=1 // pred_check_branch
      %80 = sbr.rel (0) target = $region57
    $region56: #{tpu_custom_call.1} parent=1 // pred_region
      _
    $region57: #{tpu_custom_call.1} parent=1 // pred_fallthru
      _
    // Predicated region
    $region58: #{tpu_custom_call.1} parent=1 // pred_check
      _
    $region59: #{tpu_custom_call.1} parent=1 // pred_check_branch
      %82 = sbr.rel (0) target = $region61
    $region60: #{tpu_custom_call.1} parent=1 // pred_region
      _
    $region61: #{tpu_custom_call.1} parent=1 // pred_fallthru
      _
    // Predicated region
    $region62: #{tpu_custom_call.1} parent=1 // pred_check
      _
    $region63: #{tpu_custom_call.1} parent=1 // pred_check_branch
      %84 = sbr.rel (0) target = $region65
    $region64: #{tpu_custom_call.1} parent=1 // pred_region
      _
    $region65: #{tpu_custom_call.1} parent=1 // pred_fallthru
      _
    // Predicated region
    $region66: #{tpu_custom_call.1} parent=1 // pred_check
      _
    $region67: #{tpu_custom_call.1} parent=1 // pred_check_branch
      %86 = sbr.rel (0) target = $region69
    $region68: #{tpu_custom_call.1} parent=1 // pred_region
      _
    $region69: #{tpu_custom_call.1} parent=1 // pred_fallthru
      _
    // Predicated region
    $region70: #{tpu_custom_call.1} parent=1 // pred_check
      _
    $region71: #{tpu_custom_call.1} parent=1 // pred_check_branch
      %88 = sbr.rel (0) target = $region73
    $region72: #{tpu_custom_call.1} parent=1 // pred_region
      %89 = dma.done [#allocation3], 128
    $region73: #{tpu_custom_call.1} parent=1 // pred_fallthru
      _
    // Predicated region
    $region74: #{tpu_custom_call.1} parent=1 // pred_check
      _
    $region75: #{tpu_custom_call.1} parent=1 // pred_check_branch
      %91 = sbr.rel (0) target = $region77
    $region76: #{tpu_custom_call.1} parent=1 // pred_region
      %92 = dma.done [#allocation6], 512
    $region77: #{tpu_custom_call.1} parent=1 // pred_fallthru
      _
    // Predicated region
    $region78: #{tpu_custom_call.1} parent=1 // pred_check
      _
    $region79: #{tpu_custom_call.1} parent=1 // pred_check_branch
      %94 = sbr.rel (0) target = $region81
    $region80: #{tpu_custom_call.1} parent=1 // pred_region
      %95 = dma.done [#allocation6], 512
    $region81: #{tpu_custom_call.1} parent=1 // pred_fallthru
      _
    %v97 = vld [vmem:[%s0] sm:$0xff]
    %v98 = vld [vmem:[%s0 + $0x8] sm:$0xff]
    %v99 = vld [vmem:[%s0 + $0x10] sm:$0xff]
    %v100 = vld [vmem:[%s0 + $0x18] sm:$0xff]
    %v101 = vld [vmem:[%s0 + $0x20] sm:$0xff]
    %v102 = vld [vmem:[%s0 + $0x28] sm:$0xff]
    %v103 = vld [vmem:[%s0 + $0x30] sm:$0xff]
    %v104 = vld [vmem:[%s0 + $0x38] sm:$0xff]
    %v105 = vrot.slane %v97, 7
    %v106 = vrot.slane %v98, 7
    %v107 = vrot.slane %v99, 7
    %v108 = vrot.slane %v100, 7
    %v109 = vrot.slane %v101, 7
    %v110 = vrot.slane %v102, 7
    %v111 = vrot.slane %v103, 7
    %v112 = vrot.slane %v104, 7
    %v113 = vrot.slane %v97, 1
    %v114 = vrot.slane %v98, 1
    %v115 = vrot.slane %v99, 1
    %v116 = vrot.slane %v100, 1
    %v117 = vrot.slane %v101, 1
    %v118 = vrot.slane %v102, 1
    %v119 = vrot.slane %v103, 1
    %v120 = vrot.slane %v104, 1
    %129 = vrot.lane.b32.xlu0 %v97, 4
    %v130 = vpop.permute.xlu0 %129
    %131 = vrot.lane.b32.xlu0 %v98, 4
    %v132 = vpop.permute.xlu0 %131
    %133 = vrot.lane.b32.xlu0 %v99, 4
    %v134 = vpop.permute.xlu0 %133
    %135 = vrot.lane.b32.xlu0 %v100, 4
    %v136 = vpop.permute.xlu0 %135
    %137 = vrot.lane.b32.xlu0 %v101, 4
    %v138 = vpop.permute.xlu0 %137
    %139 = vrot.lane.b32.xlu0 %v102, 4
    %v140 = vpop.permute.xlu0 %139
    %141 = vrot.lane.b32.xlu0 %v103, 4
    %v142 = vpop.permute.xlu0 %141
    %143 = vrot.lane.b32.xlu0 %v104, 4
    %v144 = vpop.permute.xlu0 %143
    %161 = vrot.lane.b32.xlu0 %v113, 8
    %v162 = vpop.permute.xlu0 %161
    %163 = vrot.lane.b32.xlu0 %v114, 8
    %v164 = vpop.permute.xlu0 %163
    %165 = vrot.lane.b32.xlu0 %v115, 8
    %v166 = vpop.permute.xlu0 %165
    %167 = vrot.lane.b32.xlu0 %v116, 8
    %v168 = vpop.permute.xlu0 %167
    %169 = vrot.lane.b32.xlu0 %v117, 8
    %v170 = vpop.permute.xlu0 %169
    %171 = vrot.lane.b32.xlu0 %v118, 8
    %v172 = vpop.permute.xlu0 %171
    %173 = vrot.lane.b32.xlu0 %v119, 8
    %v174 = vpop.permute.xlu0 %173
    %175 = vrot.lane.b32.xlu0 %v120, 8
    %v176 = vpop.permute.xlu0 %175
    %vm185 = vcmask 31744
    %v186 = vsel %vm185, %v105, %v130
    %v187 = vsel %vm185, %v106, %v132
    %v188 = vsel %vm185, %v107, %v134
    %v189 = vsel %vm185, %v108, %v136
    %v190 = vsel %vm185, %v109, %v138
    %v191 = vsel %vm185, %v110, %v140
    %v192 = vsel %vm185, %v111, %v142
    %v193 = vsel %vm185, %v112, %v144
    %vm194 = vcmask 64512
    %v195 = vsel %vm194, %v186, %v162
    %v196 = vsel %vm194, %v187, %v164
    %v197 = vsel %vm194, %v188, %v166
    %v198 = vsel %vm194, %v189, %v168
    %v199 = vsel %vm194, %v190, %v170
    %v200 = vsel %vm194, %v191, %v172
    %v201 = vsel %vm194, %v192, %v174
    %v202 = vsel %vm194, %v193, %v176
    %v203 = vpack.c.bf16 %v196, %v195
    %v204 = vpack.c.bf16 %v198, %v197
    %v205 = vpack.c.bf16 %v200, %v199
    %v206 = vpack.c.bf16 %v202, %v201
    %v207 = vld [vmem:[%s1] sm:$0xf]
    %v208 = vld [vmem:[%s1 + $0x4] sm:$0x3]
    %v211 = vunpack.c.l.b16 %v207
    %v212 = vunpack.c.l.b16 %v208
    %v213 = vpack.c.b16 %v212, %v211
    %vm214 = vcmask 97280
    %v216 = vsel %vm214, %v203, 0
    %v219 = vsel %vm214, %v204, 0
    %v222 = vsel %vm214, %v205, 0
    %v225 = vsel %vm214, %v206, 0
    %vm227 = vcmask 1045504
    %v229 = vsel %vm227, %v213, 0
    %231 = vmatprep.subr.bf16.mxu0 0
    %232 = vmatpush1.bf16.msra.mxu0 %v229
    %233 = vmatprep.subr.bf16.mxu0 0
    %234 = vmatpush1.bf16.msra.mxu0 0
    %235 = vmatprep.subr.bf16.mxu0 0
    %236 = vmatpush1.bf16.msra.mxu0 0
    %237 = vmatprep.subr.bf16.mxu0 0
    %238 = vmatpush1.bf16.msra.mxu0 0
    %239 = vmatprep.subr.bf16.mxu0 0
    %240 = vmatpush1.bf16.msra.mxu0 0
    %241 = vmatprep.subr.bf16.mxu0 0
    %242 = vmatpush1.bf16.msra.mxu0 0
    %243 = vmatprep.subr.bf16.mxu0 0
    %244 = vmatpush1.bf16.msra.mxu0 0
    %245 = vmatprep.subr.bf16.mxu0 0
    %246 = vmatpush1.bf16.msra.mxu0 0
    %247 = vmatprep.subr.bf16.mxu0 0
    %248 = vmatpush1.bf16.msra.mxu0 0
    %249 = vmatprep.subr.bf16.mxu0 0
    %250 = vmatpush1.bf16.msra.mxu0 0
    %251 = vmatprep.subr.bf16.mxu0 0
    %252 = vmatpush1.bf16.msra.mxu0 0
    %253 = vmatprep.subr.bf16.mxu0 0
    %254 = vmatpush1.bf16.msra.mxu0 0
    %255 = vmatprep.subr.bf16.mxu0 0
    %256 = vmatpush1.bf16.msra.mxu0 0
    %257 = vmatprep.subr.bf16.mxu0 0
    %258 = vmatpush1.bf16.msra.mxu0 0
    %259 = vmatprep.subr.bf16.mxu0 0
    %260 = vmatpush1.bf16.msra.mxu0 0
    %261 = vmatprep.subr.bf16.mxu0 0
    %262 = vmatpush1.bf16.msra.mxu0 0
    %263 = vmatprep.mubr.bf16.mxu0 0
    %264 = vmatmul.mubr.bf16.gmra.mrb[0].mxu0 %v216
    %v265 = vpop.f32.mrb[0].mxu0
    %v266 = vadd.f32 0.0, %v265
    %v267 = vpop.f32.mrb[0].mxu0
    %v268 = vpop.f32.mrb[0].mxu0
    %v269 = vadd.f32 0.0, %v268
    %v270 = vpop.f32.mrb[0].mxu0
    %271 = vmatprep.mubr.bf16.mxu0 0
    %272 = vmatmul.mubr.bf16.gmra.mrb[0].mxu0 %v219
    %v273 = vpop.f32.mrb[0].mxu0
    %v274 = vadd.f32 0.0, %v273
    %v275 = vpop.f32.mrb[0].mxu0
    %v276 = vpop.f32.mrb[0].mxu0
    %v277 = vadd.f32 0.0, %v276
    %v278 = vpop.f32.mrb[0].mxu0
    %279 = vmatprep.mubr.bf16.mxu0 0
    %280 = vmatmul.mubr.bf16.gmra.mrb[0].mxu0 %v222
    %v281 = vpop.f32.mrb[0].mxu0
    %v282 = vadd.f32 0.0, %v281
    %v283 = vpop.f32.mrb[0].mxu0
    %v284 = vpop.f32.mrb[0].mxu0
    %v285 = vadd.f32 0.0, %v284
    %v286 = vpop.f32.mrb[0].mxu0
    %287 = vmatprep.mubr.bf16.mxu0 0
    %288 = vmatmul.mubr.bf16.gmra.mrb[0].mxu0 %v225
    %v289 = vpop.f32.mrb[0].mxu0
    %v290 = vadd.f32 0.0, %v289
    %v291 = vpop.f32.mrb[0].mxu0
    %v292 = vpop.f32.mrb[0].mxu0
    %v293 = vadd.f32 0.0, %v292
    %v294 = vpop.f32.mrb[0].mxu0
    %295 = vdwg.mxu0
    %v296 = vld [vmem:[#allocation2] sm:$0xff]
    %v297 = vadd.f32 %v266, %v296
    %v298 = vadd.f32 %v269, %v296
    %v299 = vadd.f32 %v274, %v296
    %v300 = vadd.f32 %v277, %v296
    %v301 = vadd.f32 %v282, %v296
    %v302 = vadd.f32 %v285, %v296
    %v303 = vadd.f32 %v290, %v296
    %v304 = vadd.f32 %v293, %v296
    %v305 = vpack.c.bf16 %v298, %v297
    %v306 = vpack.c.bf16 %v300, %v299
    %v307 = vpack.c.bf16 %v302, %v301
    %v308 = vpack.c.bf16 %v304, %v303
    %v309 = vld [vmem:[%s3] sm:$0xf]
    %v310 = vld [vmem:[%s3 + $0x4] sm:$0xf]
    %v311 = vld [vmem:[%s3 + $0x8] sm:$0xf]
    %v312 = vld [vmem:[%s3 + $0xc] sm:$0xf]
    %v317 = vunpack.c.l.b16 %v309
    %v318 = vunpack.c.l.b16 %v310
    %v319 = vunpack.c.l.b16 %v311
    %v320 = vunpack.c.l.b16 %v312
    %v321 = vpack.c.b16 %v318, %v317
    %v322 = vpack.c.b16 %v320, %v319
    %vm325 = vcmask 261120
    %v327 = vsel %vm325, %v305, 0
    %v330 = vsel %vm325, %v306, 0
    %v333 = vsel %vm325, %v307, 0
    %v336 = vsel %vm325, %v308, 0
    %338 = vmatprep.subr.bf16.mxu0 0
    %339 = vmatpush1.bf16.msra.mxu0 %v321
    %340 = vmatprep.subr.bf16.mxu0 0
    %341 = vmatpush1.bf16.msra.mxu0 %v322
    %342 = vmatprep.subr.bf16.mxu0 0
    %343 = vmatpush1.bf16.msra.mxu0 0
    %344 = vmatprep.subr.bf16.mxu0 0
    %345 = vmatpush1.bf16.msra.mxu0 0
    %346 = vmatprep.subr.bf16.mxu0 0
    %347 = vmatpush1.bf16.msra.mxu0 0
    %348 = vmatprep.subr.bf16.mxu0 0
    %349 = vmatpush1.bf16.msra.mxu0 0
    %350 = vmatprep.subr.bf16.mxu0 0
    %351 = vmatpush1.bf16.msra.mxu0 0
    %352 = vmatprep.subr.bf16.mxu0 0
    %353 = vmatpush1.bf16.msra.mxu0 0
    %354 = vmatprep.subr.bf16.mxu0 0
    %355 = vmatpush1.bf16.msra.mxu0 0
    %356 = vmatprep.subr.bf16.mxu0 0
    %357 = vmatpush1.bf16.msra.mxu0 0
    %358 = vmatprep.subr.bf16.mxu0 0
    %359 = vmatpush1.bf16.msra.mxu0 0
    %360 = vmatprep.subr.bf16.mxu0 0
    %361 = vmatpush1.bf16.msra.mxu0 0
    %362 = vmatprep.subr.bf16.mxu0 0
    %363 = vmatpush1.bf16.msra.mxu0 0
    %364 = vmatprep.subr.bf16.mxu0 0
    %365 = vmatpush1.bf16.msra.mxu0 0
    %366 = vmatprep.subr.bf16.mxu0 0
    %367 = vmatpush1.bf16.msra.mxu0 0
    %368 = vmatprep.subr.bf16.mxu0 0
    %369 = vmatpush1.bf16.msra.mxu0 0
    %370 = vmatprep.mubr.bf16.mxu0 0
    %371 = vmatmul.mubr.bf16.gmra.mrb[0].mxu0 %v327
    %v372 = vpop.f32.mrb[0].mxu0
    %v373 = vadd.f32 0.0, %v372
    %v374 = vpop.f32.mrb[0].mxu0
    %v375 = vpop.f32.mrb[0].mxu0
    %v376 = vadd.f32 0.0, %v375
    %v377 = vpop.f32.mrb[0].mxu0
    %378 = vmatprep.mubr.bf16.mxu0 0
    %379 = vmatmul.mubr.bf16.gmra.mrb[0].mxu0 %v330
    %v380 = vpop.f32.mrb[0].mxu0
    %v381 = vadd.f32 0.0, %v380
    %v382 = vpop.f32.mrb[0].mxu0
    %v383 = vpop.f32.mrb[0].mxu0
    %v384 = vadd.f32 0.0, %v383
    %v385 = vpop.f32.mrb[0].mxu0
    %386 = vmatprep.mubr.bf16.mxu0 0
    %387 = vmatmul.mubr.bf16.gmra.mrb[0].mxu0 %v333
    %v388 = vpop.f32.mrb[0].mxu0
    %v389 = vadd.f32 0.0, %v388
    %v390 = vpop.f32.mrb[0].mxu0
    %v391 = vpop.f32.mrb[0].mxu0
    %v392 = vadd.f32 0.0, %v391
    %v393 = vpop.f32.mrb[0].mxu0
    %394 = vmatprep.mubr.bf16.mxu0 0
    %395 = vmatmul.mubr.bf16.gmra.mrb[0].mxu0 %v336
    %v396 = vpop.f32.mrb[0].mxu0
    %v397 = vadd.f32 0.0, %v396
    %v398 = vpop.f32.mrb[0].mxu0
    %v399 = vpop.f32.mrb[0].mxu0
    %v400 = vadd.f32 0.0, %v399
    %v401 = vpop.f32.mrb[0].mxu0
    %402 = vdwg.mxu0
    %v403 = vpack.c.bf16 %v373, %v373
    %v404 = vpack.c.bf16 %v376, %v376
    %v405 = vpack.c.bf16 %v381, %v381
    %v406 = vpack.c.bf16 %v384, %v384
    %v407 = vpack.c.bf16 %v389, %v389
    %v408 = vpack.c.bf16 %v392, %v392
    %v409 = vpack.c.bf16 %v397, %v397
    %v410 = vpack.c.bf16 %v400, %v400
    %412 = vrot.lane.b32.xlu0 %v403, 96
    %v413 = vpop.permute.xlu0 %412
    %vm414 = vcmask 130048
    %v416 = vsel %vm414, %v403, 0
    %v419 = vsel %vm414, %v413, 0
    %421 = vmatprep.subr.bf16.mxu0 0
    %422 = vmatpush1.bf16.xpose.msra.mxu0 %v419
    %423 = vmatprep.subr.bf16.mxu0 0
    %424 = vmatpush1.bf16.xpose.msra.mxu0 0
    %425 = vmatprep.subr.bf16.mxu0 0
    %426 = vmatpush1.bf16.xpose.msra.mxu0 0
    %427 = vmatprep.subr.bf16.mxu0 0
    %428 = vmatpush1.bf16.xpose.msra.mxu0 0
    %429 = vmatprep.subr.bf16.mxu0 0
    %430 = vmatpush1.bf16.xpose.msra.mxu0 0
    %431 = vmatprep.subr.bf16.mxu0 0
    %432 = vmatpush1.bf16.xpose.msra.mxu0 0
    %433 = vmatprep.subr.bf16.mxu0 0
    %434 = vmatpush1.bf16.xpose.msra.mxu0 0
    %435 = vmatprep.subr.bf16.mxu0 0
    %436 = vmatpush1.bf16.xpose.msra.mxu0 0
    %437 = vmatprep.subr.bf16.mxu0 0
    %438 = vmatpush1.bf16.xpose.msra.mxu0 0
    %439 = vmatprep.subr.bf16.mxu0 0
    %440 = vmatpush1.bf16.xpose.msra.mxu0 0
    %441 = vmatprep.subr.bf16.mxu0 0
    %442 = vmatpush1.bf16.xpose.msra.mxu0 0
    %443 = vmatprep.subr.bf16.mxu0 0
    %444 = vmatpush1.bf16.xpose.msra.mxu0 0
    %445 = vmatprep.subr.bf16.mxu0 0
    %446 = vmatpush1.bf16.xpose.msra.mxu0 0
    %447 = vmatprep.subr.bf16.mxu0 0
    %448 = vmatpush1.bf16.xpose.msra.mxu0 0
    %449 = vmatprep.subr.bf16.mxu0 0
    %450 = vmatpush1.bf16.xpose.msra.mxu0 0
    %451 = vmatprep.subr.bf16.mxu0 0
    %452 = vmatpush1.bf16.xpose.msra.mxu0 0
    %453 = vmatprep.mubr.bf16.mxu0 0
    %454 = vmatmul.mubr.bf16.gmra.mrb[0].mxu0 %v416
    %v455 = vpop.f32.mrb[0].mxu0
    %v456 = vadd.f32 0.0, %v455
    %v457 = vpop.f32.mrb[0].mxu0
    %v458 = vpop.f32.mrb[0].mxu0
    %v459 = vpop.f32.mrb[0].mxu0
    %460 = vdwg.mxu0
    %462 = vrot.lane.b32.xlu0 %v404, 96
    %v463 = vpop.permute.xlu0 %462
    %v465 = vsel %vm414, %v404, 0
    %v468 = vsel %vm414, %v463, 0
    %470 = vmatprep.subr.bf16.mxu0 0
    %471 = vmatpush1.bf16.xpose.msra.mxu0 %v468
    %472 = vmatprep.subr.bf16.mxu0 0
    %473 = vmatpush1.bf16.xpose.msra.mxu0 0
    %474 = vmatprep.subr.bf16.mxu0 0
    %475 = vmatpush1.bf16.xpose.msra.mxu0 0
    %476 = vmatprep.subr.bf16.mxu0 0
    %477 = vmatpush1.bf16.xpose.msra.mxu0 0
    %478 = vmatprep.subr.bf16.mxu0 0
    %479 = vmatpush1.bf16.xpose.msra.mxu0 0
    %480 = vmatprep.subr.bf16.mxu0 0
    %481 = vmatpush1.bf16.xpose.msra.mxu0 0
    %482 = vmatprep.subr.bf16.mxu0 0
    %483 = vmatpush1.bf16.xpose.msra.mxu0 0
    %484 = vmatprep.subr.bf16.mxu0 0
    %485 = vmatpush1.bf16.xpose.msra.mxu0 0
    %486 = vmatprep.subr.bf16.mxu0 0
    %487 = vmatpush1.bf16.xpose.msra.mxu0 0
    %488 = vmatprep.subr.bf16.mxu0 0
    %489 = vmatpush1.bf16.xpose.msra.mxu0 0
    %490 = vmatprep.subr.bf16.mxu0 0
    %491 = vmatpush1.bf16.xpose.msra.mxu0 0
    %492 = vmatprep.subr.bf16.mxu0 0
    %493 = vmatpush1.bf16.xpose.msra.mxu0 0
    %494 = vmatprep.subr.bf16.mxu0 0
    %495 = vmatpush1.bf16.xpose.msra.mxu0 0
    %496 = vmatprep.subr.bf16.mxu0 0
    %497 = vmatpush1.bf16.xpose.msra.mxu0 0
    %498 = vmatprep.subr.bf16.mxu0 0
    %499 = vmatpush1.bf16.xpose.msra.mxu0 0
    %500 = vmatprep.subr.bf16.mxu0 0
    %501 = vmatpush1.bf16.xpose.msra.mxu0 0
    %502 = vmatprep.mubr.bf16.mxu0 0
    %503 = vmatmul.mubr.bf16.gmra.mrb[0].mxu0 %v465
    %v504 = vpop.f32.mrb[0].mxu0
    %v505 = vadd.f32 0.0, %v504
    %v506 = vpop.f32.mrb[0].mxu0
    %v507 = vpop.f32.mrb[0].mxu0
    %v508 = vpop.f32.mrb[0].mxu0
    %509 = vdwg.mxu0
    %511 = vrot.lane.b32.xlu0 %v405, 96
    %v512 = vpop.permute.xlu0 %511
    %v514 = vsel %vm414, %v405, 0
    %v517 = vsel %vm414, %v512, 0
    %519 = vmatprep.subr.bf16.mxu0 0
    %520 = vmatpush1.bf16.xpose.msra.mxu0 %v517
    %521 = vmatprep.subr.bf16.mxu0 0
    %522 = vmatpush1.bf16.xpose.msra.mxu0 0
    %523 = vmatprep.subr.bf16.mxu0 0
    %524 = vmatpush1.bf16.xpose.msra.mxu0 0
    %525 = vmatprep.subr.bf16.mxu0 0
    %526 = vmatpush1.bf16.xpose.msra.mxu0 0
    %527 = vmatprep.subr.bf16.mxu0 0
    %528 = vmatpush1.bf16.xpose.msra.mxu0 0
    %529 = vmatprep.subr.bf16.mxu0 0
    %530 = vmatpush1.bf16.xpose.msra.mxu0 0
    %531 = vmatprep.subr.bf16.mxu0 0
    %532 = vmatpush1.bf16.xpose.msra.mxu0 0
    %533 = vmatprep.subr.bf16.mxu0 0
    %534 = vmatpush1.bf16.xpose.msra.mxu0 0
    %535 = vmatprep.subr.bf16.mxu0 0
    %536 = vmatpush1.bf16.xpose.msra.mxu0 0
    %537 = vmatprep.subr.bf16.mxu0 0
    %538 = vmatpush1.bf16.xpose.msra.mxu0 0
    %539 = vmatprep.subr.bf16.mxu0 0
    %540 = vmatpush1.bf16.xpose.msra.mxu0 0
    %541 = vmatprep.subr.bf16.mxu0 0
    %542 = vmatpush1.bf16.xpose.msra.mxu0 0
    %543 = vmatprep.subr.bf16.mxu0 0
    %544 = vmatpush1.bf16.xpose.msra.mxu0 0
    %545 = vmatprep.subr.bf16.mxu0 0
    %546 = vmatpush1.bf16.xpose.msra.mxu0 0
    %547 = vmatprep.subr.bf16.mxu0 0
    %548 = vmatpush1.bf16.xpose.msra.mxu0 0
    %549 = vmatprep.subr.bf16.mxu0 0
    %550 = vmatpush1.bf16.xpose.msra.mxu0 0
    %551 = vmatprep.mubr.bf16.mxu0 0
    %552 = vmatmul.mubr.bf16.gmra.mrb[0].mxu0 %v514
    %v553 = vpop.f32.mrb[0].mxu0
    %v554 = vadd.f32 0.0, %v553
    %v555 = vpop.f32.mrb[0].mxu0
    %v556 = vpop.f32.mrb[0].mxu0
    %v557 = vpop.f32.mrb[0].mxu0
    %558 = vdwg.mxu0
    %560 = vrot.lane.b32.xlu0 %v406, 96
    %v561 = vpop.permute.xlu0 %560
    %v563 = vsel %vm414, %v406, 0
    %v566 = vsel %vm414, %v561, 0
    %568 = vmatprep.subr.bf16.mxu0 0
    %569 = vmatpush1.bf16.xpose.msra.mxu0 %v566
    %570 = vmatprep.subr.bf16.mxu0 0
    %571 = vmatpush1.bf16.xpose.msra.mxu0 0
    %572 = vmatprep.subr.bf16.mxu0 0
    %573 = vmatpush1.bf16.xpose.msra.mxu0 0
    %574 = vmatprep.subr.bf16.mxu0 0
    %575 = vmatpush1.bf16.xpose.msra.mxu0 0
    %576 = vmatprep.subr.bf16.mxu0 0
    %577 = vmatpush1.bf16.xpose.msra.mxu0 0
    %578 = vmatprep.subr.bf16.mxu0 0
    %579 = vmatpush1.bf16.xpose.msra.mxu0 0
    %580 = vmatprep.subr.bf16.mxu0 0
    %581 = vmatpush1.bf16.xpose.msra.mxu0 0
    %582 = vmatprep.subr.bf16.mxu0 0
    %583 = vmatpush1.bf16.xpose.msra.mxu0 0
    %584 = vmatprep.subr.bf16.mxu0 0
    %585 = vmatpush1.bf16.xpose.msra.mxu0 0
    %586 = vmatprep.subr.bf16.mxu0 0
    %587 = vmatpush1.bf16.xpose.msra.mxu0 0
    %588 = vmatprep.subr.bf16.mxu0 0
    %589 = vmatpush1.bf16.xpose.msra.mxu0 0
    %590 = vmatprep.subr.bf16.mxu0 0
    %591 = vmatpush1.bf16.xpose.msra.mxu0 0
    %592 = vmatprep.subr.bf16.mxu0 0
    %593 = vmatpush1.bf16.xpose.msra.mxu0 0
    %594 = vmatprep.subr.bf16.mxu0 0
    %595 = vmatpush1.bf16.xpose.msra.mxu0 0
    %596 = vmatprep.subr.bf16.mxu0 0
    %597 = vmatpush1.bf16.xpose.msra.mxu0 0
    %598 = vmatprep.subr.bf16.mxu0 0
    %599 = vmatpush1.bf16.xpose.msra.mxu0 0
    %600 = vmatprep.mubr.bf16.mxu0 0
    %601 = vmatmul.mubr.bf16.gmra.mrb[0].mxu0 %v563
    %v602 = vpop.f32.mrb[0].mxu0
    %v603 = vadd.f32 0.0, %v602
    %v604 = vpop.f32.mrb[0].mxu0
    %v605 = vpop.f32.mrb[0].mxu0
    %v606 = vpop.f32.mrb[0].mxu0
    %607 = vdwg.mxu0
    %609 = vrot.lane.b32.xlu0 %v407, 96
    %v610 = vpop.permute.xlu0 %609
    %v612 = vsel %vm414, %v407, 0
    %v615 = vsel %vm414, %v610, 0
    %617 = vmatprep.subr.bf16.mxu0 0
    %618 = vmatpush1.bf16.xpose.msra.mxu0 %v615
    %619 = vmatprep.subr.bf16.mxu0 0
    %620 = vmatpush1.bf16.xpose.msra.mxu0 0
    %621 = vmatprep.subr.bf16.mxu0 0
    %622 = vmatpush1.bf16.xpose.msra.mxu0 0
    %623 = vmatprep.subr.bf16.mxu0 0
    %624 = vmatpush1.bf16.xpose.msra.mxu0 0
    %625 = vmatprep.subr.bf16.mxu0 0
    %626 = vmatpush1.bf16.xpose.msra.mxu0 0
    %627 = vmatprep.subr.bf16.mxu0 0
    %628 = vmatpush1.bf16.xpose.msra.mxu0 0
    %629 = vmatprep.subr.bf16.mxu0 0
    %630 = vmatpush1.bf16.xpose.msra.mxu0 0
    %631 = vmatprep.subr.bf16.mxu0 0
    %632 = vmatpush1.bf16.xpose.msra.mxu0 0
    %633 = vmatprep.subr.bf16.mxu0 0
    %634 = vmatpush1.bf16.xpose.msra.mxu0 0
    %635 = vmatprep.subr.bf16.mxu0 0
    %636 = vmatpush1.bf16.xpose.msra.mxu0 0
    %637 = vmatprep.subr.bf16.mxu0 0
    %638 = vmatpush1.bf16.xpose.msra.mxu0 0
    %639 = vmatprep.subr.bf16.mxu0 0
    %640 = vmatpush1.bf16.xpose.msra.mxu0 0
    %641 = vmatprep.subr.bf16.mxu0 0
    %642 = vmatpush1.bf16.xpose.msra.mxu0 0
    %643 = vmatprep.subr.bf16.mxu0 0
    %644 = vmatpush1.bf16.xpose.msra.mxu0 0
    %645 = vmatprep.subr.bf16.mxu0 0
    %646 = vmatpush1.bf16.xpose.msra.mxu0 0
    %647 = vmatprep.subr.bf16.mxu0 0
    %648 = vmatpush1.bf16.xpose.msra.mxu0 0
    %649 = vmatprep.mubr.bf16.mxu0 0
    %650 = vmatmul.mubr.bf16.gmra.mrb[0].mxu0 %v612
    %v651 = vpop.f32.mrb[0].mxu0
    %v652 = vadd.f32 0.0, %v651
    %v653 = vpop.f32.mrb[0].mxu0
    %v654 = vpop.f32.mrb[0].mxu0
    %v655 = vpop.f32.mrb[0].mxu0
    %656 = vdwg.mxu0
    %658 = vrot.lane.b32.xlu0 %v408, 96
    %v659 = vpop.permute.xlu0 %658
    %v661 = vsel %vm414, %v408, 0
    %v664 = vsel %vm414, %v659, 0
    %666 = vmatprep.subr.bf16.mxu0 0
    %667 = vmatpush1.bf16.xpose.msra.mxu0 %v664
    %668 = vmatprep.subr.bf16.mxu0 0
    %669 = vmatpush1.bf16.xpose.msra.mxu0 0
    %670 = vmatprep.subr.bf16.mxu0 0
    %671 = vmatpush1.bf16.xpose.msra.mxu0 0
    %672 = vmatprep.subr.bf16.mxu0 0
    %673 = vmatpush1.bf16.xpose.msra.mxu0 0
    %674 = vmatprep.subr.bf16.mxu0 0
    %675 = vmatpush1.bf16.xpose.msra.mxu0 0
    %676 = vmatprep.subr.bf16.mxu0 0
    %677 = vmatpush1.bf16.xpose.msra.mxu0 0
    %678 = vmatprep.subr.bf16.mxu0 0
    %679 = vmatpush1.bf16.xpose.msra.mxu0 0
    %680 = vmatprep.subr.bf16.mxu0 0
    %681 = vmatpush1.bf16.xpose.msra.mxu0 0
    %682 = vmatprep.subr.bf16.mxu0 0
    %683 = vmatpush1.bf16.xpose.msra.mxu0 0
    %684 = vmatprep.subr.bf16.mxu0 0
    %685 = vmatpush1.bf16.xpose.msra.mxu0 0
    %686 = vmatprep.subr.bf16.mxu0 0
    %687 = vmatpush1.bf16.xpose.msra.mxu0 0
    %688 = vmatprep.subr.bf16.mxu0 0
    %689 = vmatpush1.bf16.xpose.msra.mxu0 0
    %690 = vmatprep.subr.bf16.mxu0 0
    %691 = vmatpush1.bf16.xpose.msra.mxu0 0
    %692 = vmatprep.subr.bf16.mxu0 0
    %693 = vmatpush1.bf16.xpose.msra.mxu0 0
    %694 = vmatprep.subr.bf16.mxu0 0
    %695 = vmatpush1.bf16.xpose.msra.mxu0 0
    %696 = vmatprep.subr.bf16.mxu0 0
    %697 = vmatpush1.bf16.xpose.msra.mxu0 0
    %698 = vmatprep.mubr.bf16.mxu0 0
    %699 = vmatmul.mubr.bf16.gmra.mrb[0].mxu0 %v661
    %v700 = vpop.f32.mrb[0].mxu0
    %v701 = vadd.f32 0.0, %v700
    %v702 = vpop.f32.mrb[0].mxu0
    %v703 = vpop.f32.mrb[0].mxu0
    %v704 = vpop.f32.mrb[0].mxu0
    %705 = vdwg.mxu0
    %707 = vrot.lane.b32.xlu0 %v409, 96
    %v708 = vpop.permute.xlu0 %707
    %v710 = vsel %vm414, %v409, 0
    %v713 = vsel %vm414, %v708, 0
    %715 = vmatprep.subr.bf16.mxu0 0
    %716 = vmatpush1.bf16.xpose.msra.mxu0 %v713
    %717 = vmatprep.subr.bf16.mxu0 0
    %718 = vmatpush1.bf16.xpose.msra.mxu0 0
    %719 = vmatprep.subr.bf16.mxu0 0
    %720 = vmatpush1.bf16.xpose.msra.mxu0 0
    %721 = vmatprep.subr.bf16.mxu0 0
    %722 = vmatpush1.bf16.xpose.msra.mxu0 0
    %723 = vmatprep.subr.bf16.mxu0 0
    %724 = vmatpush1.bf16.xpose.msra.mxu0 0
    %725 = vmatprep.subr.bf16.mxu0 0
    %726 = vmatpush1.bf16.xpose.msra.mxu0 0
    %727 = vmatprep.subr.bf16.mxu0 0
    %728 = vmatpush1.bf16.xpose.msra.mxu0 0
    %729 = vmatprep.subr.bf16.mxu0 0
    %730 = vmatpush1.bf16.xpose.msra.mxu0 0
    %731 = vmatprep.subr.bf16.mxu0 0
    %732 = vmatpush1.bf16.xpose.msra.mxu0 0
    %733 = vmatprep.subr.bf16.mxu0 0
    %734 = vmatpush1.bf16.xpose.msra.mxu0 0
    %735 = vmatprep.subr.bf16.mxu0 0
    %736 = vmatpush1.bf16.xpose.msra.mxu0 0
    %737 = vmatprep.subr.bf16.mxu0 0
    %738 = vmatpush1.bf16.xpose.msra.mxu0 0
    %739 = vmatprep.subr.bf16.mxu0 0
    %740 = vmatpush1.bf16.xpose.msra.mxu0 0
    %741 = vmatprep.subr.bf16.mxu0 0
    %742 = vmatpush1.bf16.xpose.msra.mxu0 0
    %743 = vmatprep.subr.bf16.mxu0 0
    %744 = vmatpush1.bf16.xpose.msra.mxu0 0
    %745 = vmatprep.subr.bf16.mxu0 0
    %746 = vmatpush1.bf16.xpose.msra.mxu0 0
    %747 = vmatprep.mubr.bf16.mxu0 0
    %748 = vmatmul.mubr.bf16.gmra.mrb[0].mxu0 %v710
    %v749 = vpop.f32.mrb[0].mxu0
    %v750 = vadd.f32 0.0, %v749
    %v751 = vpop.f32.mrb[0].mxu0
    %v752 = vpop.f32.mrb[0].mxu0
    %v753 = vpop.f32.mrb[0].mxu0
    %754 = vdwg.mxu0
    %756 = vrot.lane.b32.xlu0 %v410, 96
    %v757 = vpop.permute.xlu0 %756
    %v759 = vsel %vm414, %v410, 0
    %v762 = vsel %vm414, %v757, 0
    %764 = vmatprep.subr.bf16.mxu0 0
    %765 = vmatpush1.bf16.xpose.msra.mxu0 %v762
    %766 = vmatprep.subr.bf16.mxu0 0
    %767 = vmatpush1.bf16.xpose.msra.mxu0 0
    %768 = vmatprep.subr.bf16.mxu0 0
    %769 = vmatpush1.bf16.xpose.msra.mxu0 0
    %770 = vmatprep.subr.bf16.mxu0 0
    %771 = vmatpush1.bf16.xpose.msra.mxu0 0
    %772 = vmatprep.subr.bf16.mxu0 0
    %773 = vmatpush1.bf16.xpose.msra.mxu0 0
    %774 = vmatprep.subr.bf16.mxu0 0
    %775 = vmatpush1.bf16.xpose.msra.mxu0 0
    %776 = vmatprep.subr.bf16.mxu0 0
    %777 = vmatpush1.bf16.xpose.msra.mxu0 0
    %778 = vmatprep.subr.bf16.mxu0 0
    %779 = vmatpush1.bf16.xpose.msra.mxu0 0
    %780 = vmatprep.subr.bf16.mxu0 0
    %781 = vmatpush1.bf16.xpose.msra.mxu0 0
    %782 = vmatprep.subr.bf16.mxu0 0
    %783 = vmatpush1.bf16.xpose.msra.mxu0 0
    %784 = vmatprep.subr.bf16.mxu0 0
    %785 = vmatpush1.bf16.xpose.msra.mxu0 0
    %786 = vmatprep.subr.bf16.mxu0 0
    %787 = vmatpush1.bf16.xpose.msra.mxu0 0
    %788 = vmatprep.subr.bf16.mxu0 0
    %789 = vmatpush1.bf16.xpose.msra.mxu0 0
    %790 = vmatprep.subr.bf16.mxu0 0
    %791 = vmatpush1.bf16.xpose.msra.mxu0 0
    %792 = vmatprep.subr.bf16.mxu0 0
    %793 = vmatpush1.bf16.xpose.msra.mxu0 0
    %794 = vmatprep.subr.bf16.mxu0 0
    %795 = vmatpush1.bf16.xpose.msra.mxu0 0
    %796 = vmatprep.mubr.bf16.mxu0 0
    %797 = vmatmul.mubr.bf16.gmra.mrb[0].mxu0 %v759
    %v798 = vpop.f32.mrb[0].mxu0
    %v799 = vadd.f32 0.0, %v798
    %v800 = vpop.f32.mrb[0].mxu0
    %v801 = vpop.f32.mrb[0].mxu0
    %v802 = vpop.f32.mrb[0].mxu0
    %803 = vdwg.mxu0
    %v804 = vmul.f32 %v456, 0.25
    %v805 = vmul.f32 %v505, 0.25
    %v806 = vmul.f32 %v554, 0.25
    %v807 = vmul.f32 %v603, 0.25
    %v808 = vmul.f32 %v652, 0.25
    %v809 = vmul.f32 %v701, 0.25
    %v810 = vmul.f32 %v750, 0.25
    %v811 = vmul.f32 %v799, 0.25
    %v812 = vsel %vm194, %v804, -inf
    %813 = vmax.xlane.f32.xlu0 %v812
    %v814 = vpop.xlane.xlu0 %813
    %v815 = vsel %vm194, %v805, -inf
    %816 = vmax.xlane.f32.xlu0 %v815
    %v817 = vpop.xlane.xlu0 %816
    %v818 = vsel %vm194, %v806, -inf
    %819 = vmax.xlane.f32.xlu0 %v818
    %v820 = vpop.xlane.xlu0 %819
    %v821 = vsel %vm194, %v807, -inf
    %822 = vmax.xlane.f32.xlu0 %v821
    %v823 = vpop.xlane.xlu0 %822
    %v824 = vsel %vm194, %v808, -inf
    %825 = vmax.xlane.f32.xlu0 %v824
    %v826 = vpop.xlane.xlu0 %825
    %v827 = vsel %vm194, %v809, -inf
    %828 = vmax.xlane.f32.xlu0 %v827
    %v829 = vpop.xlane.xlu0 %828
    %v830 = vsel %vm194, %v810, -inf
    %831 = vmax.xlane.f32.xlu0 %v830
    %v832 = vpop.xlane.xlu0 %831
    %v833 = vsel %vm194, %v811, -inf
    %834 = vmax.xlane.f32.xlu0 %v833
    %v835 = vpop.xlane.xlu0 %834
    %v836 = vsub.f32 %v804, %v814
    %v837 = vsub.f32 %v805, %v817
    %v838 = vsub.f32 %v806, %v820
    %v839 = vsub.f32 %v807, %v823
    %v840 = vsub.f32 %v808, %v826
    %v841 = vsub.f32 %v809, %v829
    %v842 = vsub.f32 %v810, %v832
    %v843 = vsub.f32 %v811, %v835
    %v844 = vmul.f32 %v836, 1.442695
    %v845 = vpow.pop %v844
    %v846 = vmul.f32 %v837, 1.442695
    %v847 = vpow.pop %v846
    %v848 = vmul.f32 %v838, 1.442695
    %v849 = vpow.pop %v848
    %v850 = vmul.f32 %v839, 1.442695
    %v851 = vpow.pop %v850
    %v852 = vmul.f32 %v840, 1.442695
    %v853 = vpow.pop %v852
    %v854 = vmul.f32 %v841, 1.442695
    %v855 = vpow.pop %v854
    %v856 = vmul.f32 %v842, 1.442695
    %v857 = vpow.pop %v856
    %v858 = vmul.f32 %v843, 1.442695
    %v859 = vpow.pop %v858
    %v860 = vsel %vm194, %v845, 0.0
    %861 = vadd.xlane.f32.xlu0 %v860
    %v862 = vpop.xlane.xlu0 %861
    %v863 = vsel %vm194, %v847, 0.0
    %864 = vadd.xlane.f32.xlu0 %v863
    %v865 = vpop.xlane.xlu0 %864
    %v866 = vsel %vm194, %v849, 0.0
    %867 = vadd.xlane.f32.xlu0 %v866
    %v868 = vpop.xlane.xlu0 %867
    %v869 = vsel %vm194, %v851, 0.0
    %870 = vadd.xlane.f32.xlu0 %v869
    %v871 = vpop.xlane.xlu0 %870
    %v872 = vsel %vm194, %v853, 0.0
    %873 = vadd.xlane.f32.xlu0 %v872
    %v874 = vpop.xlane.xlu0 %873
    %v875 = vsel %vm194, %v855, 0.0
    %876 = vadd.xlane.f32.xlu0 %v875
    %v877 = vpop.xlane.xlu0 %876
    %v878 = vsel %vm194, %v857, 0.0
    %879 = vadd.xlane.f32.xlu0 %v878
    %v880 = vpop.xlane.xlu0 %879
    %v881 = vsel %vm194, %v859, 0.0
    %882 = vadd.xlane.f32.xlu0 %v881
    %v883 = vpop.xlane.xlu0 %882
    %v884 = vrcp.pop %v862
    %v885 = vrcp.pop %v865
    %v886 = vrcp.pop %v868
    %v887 = vrcp.pop %v871
    %v888 = vrcp.pop %v874
    %v889 = vrcp.pop %v877
    %v890 = vrcp.pop %v880
    %v891 = vrcp.pop %v883
    %v892 = vmul.f32 %v845, %v884
    %v893 = vmul.f32 %v847, %v885
    %v894 = vmul.f32 %v849, %v886
    %v895 = vmul.f32 %v851, %v887
    %v896 = vmul.f32 %v853, %v888
    %v897 = vmul.f32 %v855, %v889
    %v898 = vmul.f32 %v857, %v890
    %v899 = vmul.f32 %v859, %v891
    %v900 = vpack.c.bf16 %v892, %v892
    %v901 = vpack.c.bf16 %v893, %v893
    %v902 = vpack.c.bf16 %v894, %v894
    %v903 = vpack.c.bf16 %v895, %v895
    %v904 = vpack.c.bf16 %v896, %v896
    %v905 = vpack.c.bf16 %v897, %v897
    %v906 = vpack.c.bf16 %v898, %v898
    %v907 = vpack.c.bf16 %v899, %v899
    %908 = vrot.lane.b32.xlu0 %v403, 64
    %v909 = vpop.permute.xlu0 %908
    %v911 = vsel %vm194, %v900, 0
    %vm913 = vcmask 1043456
    %v915 = vsel %vm913, %v909, 0
    %917 = vmatprep.subr.bf16.mxu0 0
    %918 = vmatpush1.bf16.msra.mxu0 %v915
    %919 = vmatprep.subr.bf16.mxu0 0
    %920 = vmatpush1.bf16.msra.mxu0 0
    %921 = vmatprep.subr.bf16.mxu0 0
    %922 = vmatpush1.bf16.msra.mxu0 0
    %923 = vmatprep.subr.bf16.mxu0 0
    %924 = vmatpush1.bf16.msra.mxu0 0
    %925 = vmatprep.subr.bf16.mxu0 0
    %926 = vmatpush1.bf16.msra.mxu0 0
    %927 = vmatprep.subr.bf16.mxu0 0
    %928 = vmatpush1.bf16.msra.mxu0 0
    %929 = vmatprep.subr.bf16.mxu0 0
    %930 = vmatpush1.bf16.msra.mxu0 0
    %931 = vmatprep.subr.bf16.mxu0 0
    %932 = vmatpush1.bf16.msra.mxu0 0
    %933 = vmatprep.subr.bf16.mxu0 0
    %934 = vmatpush1.bf16.msra.mxu0 0
    %935 = vmatprep.subr.bf16.mxu0 0
    %936 = vmatpush1.bf16.msra.mxu0 0
    %937 = vmatprep.subr.bf16.mxu0 0
    %938 = vmatpush1.bf16.msra.mxu0 0
    %939 = vmatprep.subr.bf16.mxu0 0
    %940 = vmatpush1.bf16.msra.mxu0 0
    %941 = vmatprep.subr.bf16.mxu0 0
    %942 = vmatpush1.bf16.msra.mxu0 0
    %943 = vmatprep.subr.bf16.mxu0 0
    %944 = vmatpush1.bf16.msra.mxu0 0
    %945 = vmatprep.subr.bf16.mxu0 0
    %946 = vmatpush1.bf16.msra.mxu0 0
    %947 = vmatprep.subr.bf16.mxu0 0
    %948 = vmatpush1.bf16.msra.mxu0 0
    %949 = vmatprep.mubr.bf16.mxu0 0
    %950 = vmatmul.mubr.bf16.gmra.mrb[0].mxu0 %v911
    %v951 = vpop.f32.mrb[0].mxu0
    %v952 = vadd.f32 0.0, %v951
    %v953 = vpop.f32.mrb[0].mxu0
    %v954 = vpop.f32.mrb[0].mxu0
    %v955 = vpop.f32.mrb[0].mxu0
    %956 = vdwg.mxu0
    %957 = vrot.lane.b32.xlu0 %v404, 64
    %v958 = vpop.permute.xlu0 %957
    %v960 = vsel %vm194, %v901, 0
    %v963 = vsel %vm913, %v958, 0
    %965 = vmatprep.subr.bf16.mxu0 0
    %966 = vmatpush1.bf16.msra.mxu0 %v963
    %967 = vmatprep.subr.bf16.mxu0 0
    %968 = vmatpush1.bf16.msra.mxu0 0
    %969 = vmatprep.subr.bf16.mxu0 0
    %970 = vmatpush1.bf16.msra.mxu0 0
    %971 = vmatprep.subr.bf16.mxu0 0
    %972 = vmatpush1.bf16.msra.mxu0 0
    %973 = vmatprep.subr.bf16.mxu0 0
    %974 = vmatpush1.bf16.msra.mxu0 0
    %975 = vmatprep.subr.bf16.mxu0 0
    %976 = vmatpush1.bf16.msra.mxu0 0
    %977 = vmatprep.subr.bf16.mxu0 0
    %978 = vmatpush1.bf16.msra.mxu0 0
    %979 = vmatprep.subr.bf16.mxu0 0
    %980 = vmatpush1.bf16.msra.mxu0 0
    %981 = vmatprep.subr.bf16.mxu0 0
    %982 = vmatpush1.bf16.msra.mxu0 0
    %983 = vmatprep.subr.bf16.mxu0 0
    %984 = vmatpush1.bf16.msra.mxu0 0
    %985 = vmatprep.subr.bf16.mxu0 0
    %986 = vmatpush1.bf16.msra.mxu0 0
    %987 = vmatprep.subr.bf16.mxu0 0
    %988 = vmatpush1.bf16.msra.mxu0 0
    %989 = vmatprep.subr.bf16.mxu0 0
    %990 = vmatpush1.bf16.msra.mxu0 0
    %991 = vmatprep.subr.bf16.mxu0 0
    %992 = vmatpush1.bf16.msra.mxu0 0
    %993 = vmatprep.subr.bf16.mxu0 0
    %994 = vmatpush1.bf16.msra.mxu0 0
    %995 = vmatprep.subr.bf16.mxu0 0
    %996 = vmatpush1.bf16.msra.mxu0 0
    %997 = vmatprep.mubr.bf16.mxu0 0
    %998 = vmatmul.mubr.bf16.gmra.mrb[0].mxu0 %v960
    %v999 = vpop.f32.mrb[0].mxu0
    %v1000 = vadd.f32 0.0, %v999
    %v1001 = vpop.f32.mrb[0].mxu0
    %v1002 = vpop.f32.mrb[0].mxu0
    %v1003 = vpop.f32.mrb[0].mxu0
    %1004 = vdwg.mxu0
    %1005 = vrot.lane.b32.xlu0 %v405, 64
    %v1006 = vpop.permute.xlu0 %1005
    %v1008 = vsel %vm194, %v902, 0
    %v1011 = vsel %vm913, %v1006, 0
    %1013 = vmatprep.subr.bf16.mxu0 0
    %1014 = vmatpush1.bf16.msra.mxu0 %v1011
    %1015 = vmatprep.subr.bf16.mxu0 0
    %1016 = vmatpush1.bf16.msra.mxu0 0
    %1017 = vmatprep.subr.bf16.mxu0 0
    %1018 = vmatpush1.bf16.msra.mxu0 0
    %1019 = vmatprep.subr.bf16.mxu0 0
    %1020 = vmatpush1.bf16.msra.mxu0 0
    %1021 = vmatprep.subr.bf16.mxu0 0
    %1022 = vmatpush1.bf16.msra.mxu0 0
    %1023 = vmatprep.subr.bf16.mxu0 0
    %1024 = vmatpush1.bf16.msra.mxu0 0
    %1025 = vmatprep.subr.bf16.mxu0 0
    %1026 = vmatpush1.bf16.msra.mxu0 0
    %1027 = vmatprep.subr.bf16.mxu0 0
    %1028 = vmatpush1.bf16.msra.mxu0 0
    %1029 = vmatprep.subr.bf16.mxu0 0
    %1030 = vmatpush1.bf16.msra.mxu0 0
    %1031 = vmatprep.subr.bf16.mxu0 0
    %1032 = vmatpush1.bf16.msra.mxu0 0
    %1033 = vmatprep.subr.bf16.mxu0 0
    %1034 = vmatpush1.bf16.msra.mxu0 0
    %1035 = vmatprep.subr.bf16.mxu0 0
    %1036 = vmatpush1.bf16.msra.mxu0 0
    %1037 = vmatprep.subr.bf16.mxu0 0
    %1038 = vmatpush1.bf16.msra.mxu0 0
    %1039 = vmatprep.subr.bf16.mxu0 0
    %1040 = vmatpush1.bf16.msra.mxu0 0
    %1041 = vmatprep.subr.bf16.mxu0 0
    %1042 = vmatpush1.bf16.msra.mxu0 0
    %1043 = vmatprep.subr.bf16.mxu0 0
    %1044 = vmatpush1.bf16.msra.mxu0 0
    %1045 = vmatprep.mubr.bf16.mxu0 0
    %1046 = vmatmul.mubr.bf16.gmra.mrb[0].mxu0 %v1008
    %v1047 = vpop.f32.mrb[0].mxu0
    %v1048 = vadd.f32 0.0, %v1047
    %v1049 = vpop.f32.mrb[0].mxu0
    %v1050 = vpop.f32.mrb[0].mxu0
    %v1051 = vpop.f32.mrb[0].mxu0
    %1052 = vdwg.mxu0
    %1053 = vrot.lane.b32.xlu0 %v406, 64
    %v1054 = vpop.permute.xlu0 %1053
    %v1056 = vsel %vm194, %v903, 0
    %v1059 = vsel %vm913, %v1054, 0
    %1061 = vmatprep.subr.bf16.mxu0 0
    %1062 = vmatpush1.bf16.msra.mxu0 %v1059
    %1063 = vmatprep.subr.bf16.mxu0 0
    %1064 = vmatpush1.bf16.msra.mxu0 0
    %1065 = vmatprep.subr.bf16.mxu0 0
    %1066 = vmatpush1.bf16.msra.mxu0 0
    %1067 = vmatprep.subr.bf16.mxu0 0
    %1068 = vmatpush1.bf16.msra.mxu0 0
    %1069 = vmatprep.subr.bf16.mxu0 0
    %1070 = vmatpush1.bf16.msra.mxu0 0
    %1071 = vmatprep.subr.bf16.mxu0 0
    %1072 = vmatpush1.bf16.msra.mxu0 0
    %1073 = vmatprep.subr.bf16.mxu0 0
    %1074 = vmatpush1.bf16.msra.mxu0 0
    %1075 = vmatprep.subr.bf16.mxu0 0
    %1076 = vmatpush1.bf16.msra.mxu0 0
    %1077 = vmatprep.subr.bf16.mxu0 0
    %1078 = vmatpush1.bf16.msra.mxu0 0
    %1079 = vmatprep.subr.bf16.mxu0 0
    %1080 = vmatpush1.bf16.msra.mxu0 0
    %1081 = vmatprep.subr.bf16.mxu0 0
    %1082 = vmatpush1.bf16.msra.mxu0 0
    %1083 = vmatprep.subr.bf16.mxu0 0
    %1084 = vmatpush1.bf16.msra.mxu0 0
    %1085 = vmatprep.subr.bf16.mxu0 0
    %1086 = vmatpush1.bf16.msra.mxu0 0
    %1087 = vmatprep.subr.bf16.mxu0 0
    %1088 = vmatpush1.bf16.msra.mxu0 0
    %1089 = vmatprep.subr.bf16.mxu0 0
    %1090 = vmatpush1.bf16.msra.mxu0 0
    %1091 = vmatprep.subr.bf16.mxu0 0
    %1092 = vmatpush1.bf16.msra.mxu0 0
    %1093 = vmatprep.mubr.bf16.mxu0 0
    %1094 = vmatmul.mubr.bf16.gmra.mrb[0].mxu0 %v1056
    %v1095 = vpop.f32.mrb[0].mxu0
    %v1096 = vadd.f32 0.0, %v1095
    %v1097 = vpop.f32.mrb[0].mxu0
    %v1098 = vpop.f32.mrb[0].mxu0
    %v1099 = vpop.f32.mrb[0].mxu0
    %1100 = vdwg.mxu0
    %1101 = vrot.lane.b32.xlu0 %v407, 64
    %v1102 = vpop.permute.xlu0 %1101
    %v1104 = vsel %vm194, %v904, 0
    %v1107 = vsel %vm913, %v1102, 0
    %1109 = vmatprep.subr.bf16.mxu0 0
    %1110 = vmatpush1.bf16.msra.mxu0 %v1107
    %1111 = vmatprep.subr.bf16.mxu0 0
    %1112 = vmatpush1.bf16.msra.mxu0 0
    %1113 = vmatprep.subr.bf16.mxu0 0
    %1114 = vmatpush1.bf16.msra.mxu0 0
    %1115 = vmatprep.subr.bf16.mxu0 0
    %1116 = vmatpush1.bf16.msra.mxu0 0
    %1117 = vmatprep.subr.bf16.mxu0 0
    %1118 = vmatpush1.bf16.msra.mxu0 0
    %1119 = vmatprep.subr.bf16.mxu0 0
    %1120 = vmatpush1.bf16.msra.mxu0 0
    %1121 = vmatprep.subr.bf16.mxu0 0
    %1122 = vmatpush1.bf16.msra.mxu0 0
    %1123 = vmatprep.subr.bf16.mxu0 0
    %1124 = vmatpush1.bf16.msra.mxu0 0
    %1125 = vmatprep.subr.bf16.mxu0 0
    %1126 = vmatpush1.bf16.msra.mxu0 0
    %1127 = vmatprep.subr.bf16.mxu0 0
    %1128 = vmatpush1.bf16.msra.mxu0 0
    %1129 = vmatprep.subr.bf16.mxu0 0
    %1130 = vmatpush1.bf16.msra.mxu0 0
    %1131 = vmatprep.subr.bf16.mxu0 0
    %1132 = vmatpush1.bf16.msra.mxu0 0
    %1133 = vmatprep.subr.bf16.mxu0 0
    %1134 = vmatpush1.bf16.msra.mxu0 0
    %1135 = vmatprep.subr.bf16.mxu0 0
    %1136 = vmatpush1.bf16.msra.mxu0 0
    %1137 = vmatprep.subr.bf16.mxu0 0
    %1138 = vmatpush1.bf16.msra.mxu0 0
    %1139 = vmatprep.subr.bf16.mxu0 0
    %1140 = vmatpush1.bf16.msra.mxu0 0
    %1141 = vmatprep.mubr.bf16.mxu0 0
    %1142 = vmatmul.mubr.bf16.gmra.mrb[0].mxu0 %v1104
    %v1143 = vpop.f32.mrb[0].mxu0
    %v1144 = vadd.f32 0.0, %v1143
    %v1145 = vpop.f32.mrb[0].mxu0
    %v1146 = vpop.f32.mrb[0].mxu0
    %v1147 = vpop.f32.mrb[0].mxu0
    %1148 = vdwg.mxu0
    %1149 = vrot.lane.b32.xlu0 %v408, 64
    %v1150 = vpop.permute.xlu0 %1149
    %v1152 = vsel %vm194, %v905, 0
    %v1155 = vsel %vm913, %v1150, 0
    %1157 = vmatprep.subr.bf16.mxu0 0
    %1158 = vmatpush1.bf16.msra.mxu0 %v1155
    %1159 = vmatprep.subr.bf16.mxu0 0
    %1160 = vmatpush1.bf16.msra.mxu0 0
    %1161 = vmatprep.subr.bf16.mxu0 0
    %1162 = vmatpush1.bf16.msra.mxu0 0
    %1163 = vmatprep.subr.bf16.mxu0 0
    %1164 = vmatpush1.bf16.msra.mxu0 0
    %1165 = vmatprep.subr.bf16.mxu0 0
    %1166 = vmatpush1.bf16.msra.mxu0 0
    %1167 = vmatprep.subr.bf16.mxu0 0
    %1168 = vmatpush1.bf16.msra.mxu0 0
    %1169 = vmatprep.subr.bf16.mxu0 0
    %1170 = vmatpush1.bf16.msra.mxu0 0
    %1171 = vmatprep.subr.bf16.mxu0 0
    %1172 = vmatpush1.bf16.msra.mxu0 0
    %1173 = vmatprep.subr.bf16.mxu0 0
    %1174 = vmatpush1.bf16.msra.mxu0 0
    %1175 = vmatprep.subr.bf16.mxu0 0
    %1176 = vmatpush1.bf16.msra.mxu0 0
    %1177 = vmatprep.subr.bf16.mxu0 0
    %1178 = vmatpush1.bf16.msra.mxu0 0
    %1179 = vmatprep.subr.bf16.mxu0 0
    %1180 = vmatpush1.bf16.msra.mxu0 0
    %1181 = vmatprep.subr.bf16.mxu0 0
    %1182 = vmatpush1.bf16.msra.mxu0 0
    %1183 = vmatprep.subr.bf16.mxu0 0
    %1184 = vmatpush1.bf16.msra.mxu0 0
    %1185 = vmatprep.subr.bf16.mxu0 0
    %1186 = vmatpush1.bf16.msra.mxu0 0
    %1187 = vmatprep.subr.bf16.mxu0 0
    %1188 = vmatpush1.bf16.msra.mxu0 0
    %1189 = vmatprep.mubr.bf16.mxu0 0
    %1190 = vmatmul.mubr.bf16.gmra.mrb[0].mxu0 %v1152
    %v1191 = vpop.f32.mrb[0].mxu0
    %v1192 = vadd.f32 0.0, %v1191
    %v1193 = vpop.f32.mrb[0].mxu0
    %v1194 = vpop.f32.mrb[0].mxu0
    %v1195 = vpop.f32.mrb[0].mxu0
    %1196 = vdwg.mxu0
    %1197 = vrot.lane.b32.xlu0 %v409, 64
    %v1198 = vpop.permute.xlu0 %1197
    %v1200 = vsel %vm194, %v906, 0
    %v1203 = vsel %vm913, %v1198, 0
    %1205 = vmatprep.subr.bf16.mxu0 0
    %1206 = vmatpush1.bf16.msra.mxu0 %v1203
    %1207 = vmatprep.subr.bf16.mxu0 0
    %1208 = vmatpush1.bf16.msra.mxu0 0
    %1209 = vmatprep.subr.bf16.mxu0 0
    %1210 = vmatpush1.bf16.msra.mxu0 0
    %1211 = vmatprep.subr.bf16.mxu0 0
    %1212 = vmatpush1.bf16.msra.mxu0 0
    %1213 = vmatprep.subr.bf16.mxu0 0
    %1214 = vmatpush1.bf16.msra.mxu0 0
    %1215 = vmatprep.subr.bf16.mxu0 0
    %1216 = vmatpush1.bf16.msra.mxu0 0
    %1217 = vmatprep.subr.bf16.mxu0 0
    %1218 = vmatpush1.bf16.msra.mxu0 0
    %1219 = vmatprep.subr.bf16.mxu0 0
    %1220 = vmatpush1.bf16.msra.mxu0 0
    %1221 = vmatprep.subr.bf16.mxu0 0
    %1222 = vmatpush1.bf16.msra.mxu0 0
    %1223 = vmatprep.subr.bf16.mxu0 0
    %1224 = vmatpush1.bf16.msra.mxu0 0
    %1225 = vmatprep.subr.bf16.mxu0 0
    %1226 = vmatpush1.bf16.msra.mxu0 0
    %1227 = vmatprep.subr.bf16.mxu0 0
    %1228 = vmatpush1.bf16.msra.mxu0 0
    %1229 = vmatprep.subr.bf16.mxu0 0
    %1230 = vmatpush1.bf16.msra.mxu0 0
    %1231 = vmatprep.subr.bf16.mxu0 0
    %1232 = vmatpush1.bf16.msra.mxu0 0
    %1233 = vmatprep.subr.bf16.mxu0 0
    %1234 = vmatpush1.bf16.msra.mxu0 0
    %1235 = vmatprep.subr.bf16.mxu0 0
    %1236 = vmatpush1.bf16.msra.mxu0 0
    %1237 = vmatprep.mubr.bf16.mxu0 0
    %1238 = vmatmul.mubr.bf16.gmra.mrb[0].mxu0 %v1200
    %v1239 = vpop.f32.mrb[0].mxu0
    %v1240 = vadd.f32 0.0, %v1239
    %v1241 = vpop.f32.mrb[0].mxu0
    %v1242 = vpop.f32.mrb[0].mxu0
    %v1243 = vpop.f32.mrb[0].mxu0
    %1244 = vdwg.mxu0
    %1245 = vrot.lane.b32.xlu0 %v410, 64
    %v1246 = vpop.permute.xlu0 %1245
    %v1248 = vsel %vm194, %v907, 0
    %v1251 = vsel %vm913, %v1246, 0
    %1253 = vmatprep.subr.bf16.mxu0 0
    %1254 = vmatpush1.bf16.msra.mxu0 %v1251
    %1255 = vmatprep.subr.bf16.mxu0 0
    %1256 = vmatpush1.bf16.msra.mxu0 0
    %1257 = vmatprep.subr.bf16.mxu0 0
    %1258 = vmatpush1.bf16.msra.mxu0 0
    %1259 = vmatprep.subr.bf16.mxu0 0
    %1260 = vmatpush1.bf16.msra.mxu0 0
    %1261 = vmatprep.subr.bf16.mxu0 0
    %1262 = vmatpush1.bf16.msra.mxu0 0
    %1263 = vmatprep.subr.bf16.mxu0 0
    %1264 = vmatpush1.bf16.msra.mxu0 0
    %1265 = vmatprep.subr.bf16.mxu0 0
    %1266 = vmatpush1.bf16.msra.mxu0 0
    %1267 = vmatprep.subr.bf16.mxu0 0
    %1268 = vmatpush1.bf16.msra.mxu0 0
    %1269 = vmatprep.subr.bf16.mxu0 0
    %1270 = vmatpush1.bf16.msra.mxu0 0
    %1271 = vmatprep.subr.bf16.mxu0 0
    %1272 = vmatpush1.bf16.msra.mxu0 0
    %1273 = vmatprep.subr.bf16.mxu0 0
    %1274 = vmatpush1.bf16.msra.mxu0 0
    %1275 = vmatprep.subr.bf16.mxu0 0
    %1276 = vmatpush1.bf16.msra.mxu0 0
    %1277 = vmatprep.subr.bf16.mxu0 0
    %1278 = vmatpush1.bf16.msra.mxu0 0
    %1279 = vmatprep.subr.bf16.mxu0 0
    %1280 = vmatpush1.bf16.msra.mxu0 0
    %1281 = vmatprep.subr.bf16.mxu0 0
    %1282 = vmatpush1.bf16.msra.mxu0 0
    %1283 = vmatprep.subr.bf16.mxu0 0
    %1284 = vmatpush1.bf16.msra.mxu0 0
    %1285 = vmatprep.mubr.bf16.mxu0 0
    %1286 = vmatmul.mubr.bf16.gmra.mrb[0].mxu0 %v1248
    %v1287 = vpop.f32.mrb[0].mxu0
    %v1288 = vadd.f32 0.0, %v1287
    %v1289 = vpop.f32.mrb[0].mxu0
    %v1290 = vpop.f32.mrb[0].mxu0
    %v1291 = vpop.f32.mrb[0].mxu0
    %1292 = vdwg.mxu0
    %1293 = vrot.lane.b32.xlu0 %v403, 112
    %v1294 = vpop.permute.xlu0 %1293
    %1295 = vrot.lane.b32.xlu0 %v403, 80
    %v1296 = vpop.permute.xlu0 %1295
    %v1298 = vsel %vm414, %v1294, 0
    %v1301 = vsel %vm414, %v1296, 0
    %1303 = vmatprep.subr.bf16.mxu0 0
    %1304 = vmatpush1.bf16.xpose.msra.mxu0 %v1301
    %1305 = vmatprep.subr.bf16.mxu0 0
    %1306 = vmatpush1.bf16.xpose.msra.mxu0 0
    %1307 = vmatprep.subr.bf16.mxu0 0
    %1308 = vmatpush1.bf16.xpose.msra.mxu0 0
    %1309 = vmatprep.subr.bf16.mxu0 0
    %1310 = vmatpush1.bf16.xpose.msra.mxu0 0
    %1311 = vmatprep.subr.bf16.mxu0 0
    %1312 = vmatpush1.bf16.xpose.msra.mxu0 0
    %1313 = vmatprep.subr.bf16.mxu0 0
    %1314 = vmatpush1.bf16.xpose.msra.mxu0 0
    %1315 = vmatprep.subr.bf16.mxu0 0
    %1316 = vmatpush1.bf16.xpose.msra.mxu0 0
    %1317 = vmatprep.subr.bf16.mxu0 0
    %1318 = vmatpush1.bf16.xpose.msra.mxu0 0
    %1319 = vmatprep.subr.bf16.mxu0 0
    %1320 = vmatpush1.bf16.xpose.msra.mxu0 0
    %1321 = vmatprep.subr.bf16.mxu0 0
    %1322 = vmatpush1.bf16.xpose.msra.mxu0 0
    %1323 = vmatprep.subr.bf16.mxu0 0
    %1324 = vmatpush1.bf16.xpose.msra.mxu0 0
    %1325 = vmatprep.subr.bf16.mxu0 0
    %1326 = vmatpush1.bf16.xpose.msra.mxu0 0
    %1327 = vmatprep.subr.bf16.mxu0 0
    %1328 = vmatpush1.bf16.xpose.msra.mxu0 0
    %1329 = vmatprep.subr.bf16.mxu0 0
    %1330 = vmatpush1.bf16.xpose.msra.mxu0 0
    %1331 = vmatprep.subr.bf16.mxu0 0
    %1332 = vmatpush1.bf16.xpose.msra.mxu0 0
    %1333 = vmatprep.subr.bf16.mxu0 0
    %1334 = vmatpush1.bf16.xpose.msra.mxu0 0
    %1335 = vmatprep.mubr.bf16.mxu0 0
    %1336 = vmatmul.mubr.bf16.gmra.mrb[0].mxu0 %v1298
    %v1337 = vpop.f32.mrb[0].mxu0
    %v1338 = vadd.f32 0.0, %v1337
    %v1339 = vpop.f32.mrb[0].mxu0
    %v1340 = vpop.f32.mrb[0].mxu0
    %v1341 = vpop.f32.mrb[0].mxu0
    %1342 = vdwg.mxu0
    %1343 = vrot.lane.b32.xlu0 %v404, 112
    %v1344 = vpop.permute.xlu0 %1343
    %1345 = vrot.lane.b32.xlu0 %v404, 80
    %v1346 = vpop.permute.xlu0 %1345
    %v1348 = vsel %vm414, %v1344, 0
    %v1351 = vsel %vm414, %v1346, 0
    %1353 = vmatprep.subr.bf16.mxu0 0
    %1354 = vmatpush1.bf16.xpose.msra.mxu0 %v1351
    %1355 = vmatprep.subr.bf16.mxu0 0
    %1356 = vmatpush1.bf16.xpose.msra.mxu0 0
    %1357 = vmatprep.subr.bf16.mxu0 0
    %1358 = vmatpush1.bf16.xpose.msra.mxu0 0
    %1359 = vmatprep.subr.bf16.mxu0 0
    %1360 = vmatpush1.bf16.xpose.msra.mxu0 0
    %1361 = vmatprep.subr.bf16.mxu0 0
    %1362 = vmatpush1.bf16.xpose.msra.mxu0 0
    %1363 = vmatprep.subr.bf16.mxu0 0
    %1364 = vmatpush1.bf16.xpose.msra.mxu0 0
    %1365 = vmatprep.subr.bf16.mxu0 0
    %1366 = vmatpush1.bf16.xpose.msra.mxu0 0
    %1367 = vmatprep.subr.bf16.mxu0 0
    %1368 = vmatpush1.bf16.xpose.msra.mxu0 0
    %1369 = vmatprep.subr.bf16.mxu0 0
    %1370 = vmatpush1.bf16.xpose.msra.mxu0 0
    %1371 = vmatprep.subr.bf16.mxu0 0
    %1372 = vmatpush1.bf16.xpose.msra.mxu0 0
    %1373 = vmatprep.subr.bf16.mxu0 0
    %1374 = vmatpush1.bf16.xpose.msra.mxu0 0
    %1375 = vmatprep.subr.bf16.mxu0 0
    %1376 = vmatpush1.bf16.xpose.msra.mxu0 0
    %1377 = vmatprep.subr.bf16.mxu0 0
    %1378 = vmatpush1.bf16.xpose.msra.mxu0 0
    %1379 = vmatprep.subr.bf16.mxu0 0
    %1380 = vmatpush1.bf16.xpose.msra.mxu0 0
    %1381 = vmatprep.subr.bf16.mxu0 0
    %1382 = vmatpush1.bf16.xpose.msra.mxu0 0
    %1383 = vmatprep.subr.bf16.mxu0 0
    %1384 = vmatpush1.bf16.xpose.msra.mxu0 0
    %1385 = vmatprep.mubr.bf16.mxu0 0
    %1386 = vmatmul.mubr.bf16.gmra.mrb[0].mxu0 %v1348
    %v1387 = vpop.f32.mrb[0].mxu0
    %v1388 = vadd.f32 0.0, %v1387
    %v1389 = vpop.f32.mrb[0].mxu0
    %v1390 = vpop.f32.mrb[0].mxu0
    %v1391 = vpop.f32.mrb[0].mxu0
    %1392 = vdwg.mxu0
    %1393 = vrot.lane.b32.xlu0 %v405, 112
    %v1394 = vpop.permute.xlu0 %1393
    %1395 = vrot.lane.b32.xlu0 %v405, 80
    %v1396 = vpop.permute.xlu0 %1395
    %v1398 = vsel %vm414, %v1394, 0
    %v1401 = vsel %vm414, %v1396, 0
    %1403 = vmatprep.subr.bf16.mxu0 0
    %1404 = vmatpush1.bf16.xpose.msra.mxu0 %v1401
    %1405 = vmatprep.subr.bf16.mxu0 0
    %1406 = vmatpush1.bf16.xpose.msra.mxu0 0
    %1407 = vmatprep.subr.bf16.mxu0 0
    %1408 = vmatpush1.bf16.xpose.msra.mxu0 0
    %1409 = vmatprep.subr.bf16.mxu0 0
    %1410 = vmatpush1.bf16.xpose.msra.mxu0 0
    %1411 = vmatprep.subr.bf16.mxu0 0
    %1412 = vmatpush1.bf16.xpose.msra.mxu0 0
    %1413 = vmatprep.subr.bf16.mxu0 0
    %1414 = vmatpush1.bf16.xpose.msra.mxu0 0
    %1415 = vmatprep.subr.bf16.mxu0 0
    %1416 = vmatpush1.bf16.xpose.msra.mxu0 0
    %1417 = vmatprep.subr.bf16.mxu0 0
    %1418 = vmatpush1.bf16.xpose.msra.mxu0 0
    %1419 = vmatprep.subr.bf16.mxu0 0
    %1420 = vmatpush1.bf16.xpose.msra.mxu0 0
    %1421 = vmatprep.subr.bf16.mxu0 0
    %1422 = vmatpush1.bf16.xpose.msra.mxu0 0
    %1423 = vmatprep.subr.bf16.mxu0 0
    %1424 = vmatpush1.bf16.xpose.msra.mxu0 0
    %1425 = vmatprep.subr.bf16.mxu0 0
    %1426 = vmatpush1.bf16.xpose.msra.mxu0 0
    %1427 = vmatprep.subr.bf16.mxu0 0
    %1428 = vmatpush1.bf16.xpose.msra.mxu0 0
    %1429 = vmatprep.subr.bf16.mxu0 0
    %1430 = vmatpush1.bf16.xpose.msra.mxu0 0
    %1431 = vmatprep.subr.bf16.mxu0 0
    %1432 = vmatpush1.bf16.xpose.msra.mxu0 0
    %1433 = vmatprep.subr.bf16.mxu0 0
    %1434 = vmatpush1.bf16.xpose.msra.mxu0 0
    %1435 = vmatprep.mubr.bf16.mxu0 0
    %1436 = vmatmul.mubr.bf16.gmra.mrb[0].mxu0 %v1398
    %v1437 = vpop.f32.mrb[0].mxu0
    %v1438 = vadd.f32 0.0, %v1437
    %v1439 = vpop.f32.mrb[0].mxu0
    %v1440 = vpop.f32.mrb[0].mxu0
    %v1441 = vpop.f32.mrb[0].mxu0
    %1442 = vdwg.mxu0
    %1443 = vrot.lane.b32.xlu0 %v406, 112
    %v1444 = vpop.permute.xlu0 %1443
    %1445 = vrot.lane.b32.xlu0 %v406, 80
    %v1446 = vpop.permute.xlu0 %1445
    %v1448 = vsel %vm414, %v1444, 0
    %v1451 = vsel %vm414, %v1446, 0
    %1453 = vmatprep.subr.bf16.mxu0 0
    %1454 = vmatpush1.bf16.xpose.msra.mxu0 %v1451
    %1455 = vmatprep.subr.bf16.mxu0 0
    %1456 = vmatpush1.bf16.xpose.msra.mxu0 0
    %1457 = vmatprep.subr.bf16.mxu0 0
    %1458 = vmatpush1.bf16.xpose.msra.mxu0 0
    %1459 = vmatprep.subr.bf16.mxu0 0
    %1460 = vmatpush1.bf16.xpose.msra.mxu0 0
    %1461 = vmatprep.subr.bf16.mxu0 0
    %1462 = vmatpush1.bf16.xpose.msra.mxu0 0
    %1463 = vmatprep.subr.bf16.mxu0 0
    %1464 = vmatpush1.bf16.xpose.msra.mxu0 0
    %1465 = vmatprep.subr.bf16.mxu0 0
    %1466 = vmatpush1.bf16.xpose.msra.mxu0 0
    %1467 = vmatprep.subr.bf16.mxu0 0
    %1468 = vmatpush1.bf16.xpose.msra.mxu0 0
    %1469 = vmatprep.subr.bf16.mxu0 0
    %1470 = vmatpush1.bf16.xpose.msra.mxu0 0
    %1471 = vmatprep.subr.bf16.mxu0 0
    %1472 = vmatpush1.bf16.xpose.msra.mxu0 0
    %1473 = vmatprep.subr.bf16.mxu0 0
    %1474 = vmatpush1.bf16.xpose.msra.mxu0 0
    %1475 = vmatprep.subr.bf16.mxu0 0
    %1476 = vmatpush1.bf16.xpose.msra.mxu0 0
    %1477 = vmatprep.subr.bf16.mxu0 0
    %1478 = vmatpush1.bf16.xpose.msra.mxu0 0
    %1479 = vmatprep.subr.bf16.mxu0 0
    %1480 = vmatpush1.bf16.xpose.msra.mxu0 0
    %1481 = vmatprep.subr.bf16.mxu0 0
    %1482 = vmatpush1.bf16.xpose.msra.mxu0 0
    %1483 = vmatprep.subr.bf16.mxu0 0
    %1484 = vmatpush1.bf16.xpose.msra.mxu0 0
    %1485 = vmatprep.mubr.bf16.mxu0 0
    %1486 = vmatmul.mubr.bf16.gmra.mrb[0].mxu0 %v1448
    %v1487 = vpop.f32.mrb[0].mxu0
    %v1488 = vadd.f32 0.0, %v1487
    %v1489 = vpop.f32.mrb[0].mxu0
    %v1490 = vpop.f32.mrb[0].mxu0
    %v1491 = vpop.f32.mrb[0].mxu0
    %1492 = vdwg.mxu0
    %1493 = vrot.lane.b32.xlu0 %v407, 112
    %v1494 = vpop.permute.xlu0 %1493
    %1495 = vrot.lane.b32.xlu0 %v407, 80
    %v1496 = vpop.permute.xlu0 %1495
    %v1498 = vsel %vm414, %v1494, 0
    %v1501 = vsel %vm414, %v1496, 0
    %1503 = vmatprep.subr.bf16.mxu0 0
    %1504 = vmatpush1.bf16.xpose.msra.mxu0 %v1501
    %1505 = vmatprep.subr.bf16.mxu0 0
    %1506 = vmatpush1.bf16.xpose.msra.mxu0 0
    %1507 = vmatprep.subr.bf16.mxu0 0
    %1508 = vmatpush1.bf16.xpose.msra.mxu0 0
    %1509 = vmatprep.subr.bf16.mxu0 0
    %1510 = vmatpush1.bf16.xpose.msra.mxu0 0
    %1511 = vmatprep.subr.bf16.mxu0 0
    %1512 = vmatpush1.bf16.xpose.msra.mxu0 0
    %1513 = vmatprep.subr.bf16.mxu0 0
    %1514 = vmatpush1.bf16.xpose.msra.mxu0 0
    %1515 = vmatprep.subr.bf16.mxu0 0
    %1516 = vmatpush1.bf16.xpose.msra.mxu0 0
    %1517 = vmatprep.subr.bf16.mxu0 0
    %1518 = vmatpush1.bf16.xpose.msra.mxu0 0
    %1519 = vmatprep.subr.bf16.mxu0 0
    %1520 = vmatpush1.bf16.xpose.msra.mxu0 0
    %1521 = vmatprep.subr.bf16.mxu0 0
    %1522 = vmatpush1.bf16.xpose.msra.mxu0 0
    %1523 = vmatprep.subr.bf16.mxu0 0
    %1524 = vmatpush1.bf16.xpose.msra.mxu0 0
    %1525 = vmatprep.subr.bf16.mxu0 0
    %1526 = vmatpush1.bf16.xpose.msra.mxu0 0
    %1527 = vmatprep.subr.bf16.mxu0 0
    %1528 = vmatpush1.bf16.xpose.msra.mxu0 0
    %1529 = vmatprep.subr.bf16.mxu0 0
    %1530 = vmatpush1.bf16.xpose.msra.mxu0 0
    %1531 = vmatprep.subr.bf16.mxu0 0
    %1532 = vmatpush1.bf16.xpose.msra.mxu0 0
    %1533 = vmatprep.subr.bf16.mxu0 0
    %1534 = vmatpush1.bf16.xpose.msra.mxu0 0
    %1535 = vmatprep.mubr.bf16.mxu0 0
    %1536 = vmatmul.mubr.bf16.gmra.mrb[0].mxu0 %v1498
    %v1537 = vpop.f32.mrb[0].mxu0
    %v1538 = vadd.f32 0.0, %v1537
    %v1539 = vpop.f32.mrb[0].mxu0
    %v1540 = vpop.f32.mrb[0].mxu0
    %v1541 = vpop.f32.mrb[0].mxu0
    %1542 = vdwg.mxu0
    %1543 = vrot.lane.b32.xlu0 %v408, 112
    %v1544 = vpop.permute.xlu0 %1543
    %1545 = vrot.lane.b32.xlu0 %v408, 80
    %v1546 = vpop.permute.xlu0 %1545
    %v1548 = vsel %vm414, %v1544, 0
    %v1551 = vsel %vm414, %v1546, 0
    %1553 = vmatprep.subr.bf16.mxu0 0
    %1554 = vmatpush1.bf16.xpose.msra.mxu0 %v1551
    %1555 = vmatprep.subr.bf16.mxu0 0
    %1556 = vmatpush1.bf16.xpose.msra.mxu0 0
    %1557 = vmatprep.subr.bf16.mxu0 0
    %1558 = vmatpush1.bf16.xpose.msra.mxu0 0
    %1559 = vmatprep.subr.bf16.mxu0 0
    %1560 = vmatpush1.bf16.xpose.msra.mxu0 0
    %1561 = vmatprep.subr.bf16.mxu0 0
    %1562 = vmatpush1.bf16.xpose.msra.mxu0 0
    %1563 = vmatprep.subr.bf16.mxu0 0
    %1564 = vmatpush1.bf16.xpose.msra.mxu0 0
    %1565 = vmatprep.subr.bf16.mxu0 0
    %1566 = vmatpush1.bf16.xpose.msra.mxu0 0
    %1567 = vmatprep.subr.bf16.mxu0 0
    %1568 = vmatpush1.bf16.xpose.msra.mxu0 0
    %1569 = vmatprep.subr.bf16.mxu0 0
    %1570 = vmatpush1.bf16.xpose.msra.mxu0 0
    %1571 = vmatprep.subr.bf16.mxu0 0
    %1572 = vmatpush1.bf16.xpose.msra.mxu0 0
    %1573 = vmatprep.subr.bf16.mxu0 0
    %1574 = vmatpush1.bf16.xpose.msra.mxu0 0
    %1575 = vmatprep.subr.bf16.mxu0 0
    %1576 = vmatpush1.bf16.xpose.msra.mxu0 0
    %1577 = vmatprep.subr.bf16.mxu0 0
    %1578 = vmatpush1.bf16.xpose.msra.mxu0 0
    %1579 = vmatprep.subr.bf16.mxu0 0
    %1580 = vmatpush1.bf16.xpose.msra.mxu0 0
    %1581 = vmatprep.subr.bf16.mxu0 0
    %1582 = vmatpush1.bf16.xpose.msra.mxu0 0
    %1583 = vmatprep.subr.bf16.mxu0 0
    %1584 = vmatpush1.bf16.xpose.msra.mxu0 0
    %1585 = vmatprep.mubr.bf16.mxu0 0
    %1586 = vmatmul.mubr.bf16.gmra.mrb[0].mxu0 %v1548
    %v1587 = vpop.f32.mrb[0].mxu0
    %v1588 = vadd.f32 0.0, %v1587
    %v1589 = vpop.f32.mrb[0].mxu0
    %v1590 = vpop.f32.mrb[0].mxu0
    %v1591 = vpop.f32.mrb[0].mxu0
    %1592 = vdwg.mxu0
    %1593 = vrot.lane.b32.xlu0 %v409, 112
    %v1594 = vpop.permute.xlu0 %1593
    %1595 = vrot.lane.b32.xlu0 %v409, 80
    %v1596 = vpop.permute.xlu0 %1595
    %v1598 = vsel %vm414, %v1594, 0
    %v1601 = vsel %vm414, %v1596, 0
    %1603 = vmatprep.subr.bf16.mxu0 0
    %1604 = vmatpush1.bf16.xpose.msra.mxu0 %v1601
    %1605 = vmatprep.subr.bf16.mxu0 0
    %1606 = vmatpush1.bf16.xpose.msra.mxu0 0
    %1607 = vmatprep.subr.bf16.mxu0 0
    %1608 = vmatpush1.bf16.xpose.msra.mxu0 0
    %1609 = vmatprep.subr.bf16.mxu0 0
    %1610 = vmatpush1.bf16.xpose.msra.mxu0 0
    %1611 = vmatprep.subr.bf16.mxu0 0
    %1612 = vmatpush1.bf16.xpose.msra.mxu0 0
    %1613 = vmatprep.subr.bf16.mxu0 0
    %1614 = vmatpush1.bf16.xpose.msra.mxu0 0
    %1615 = vmatprep.subr.bf16.mxu0 0
    %1616 = vmatpush1.bf16.xpose.msra.mxu0 0
    %1617 = vmatprep.subr.bf16.mxu0 0
    %1618 = vmatpush1.bf16.xpose.msra.mxu0 0
    %1619 = vmatprep.subr.bf16.mxu0 0
    %1620 = vmatpush1.bf16.xpose.msra.mxu0 0
    %1621 = vmatprep.subr.bf16.mxu0 0
    %1622 = vmatpush1.bf16.xpose.msra.mxu0 0
    %1623 = vmatprep.subr.bf16.mxu0 0
    %1624 = vmatpush1.bf16.xpose.msra.mxu0 0
    %1625 = vmatprep.subr.bf16.mxu0 0
    %1626 = vmatpush1.bf16.xpose.msra.mxu0 0
    %1627 = vmatprep.subr.bf16.mxu0 0
    %1628 = vmatpush1.bf16.xpose.msra.mxu0 0
    %1629 = vmatprep.subr.bf16.mxu0 0
    %1630 = vmatpush1.bf16.xpose.msra.mxu0 0
    %1631 = vmatprep.subr.bf16.mxu0 0
    %1632 = vmatpush1.bf16.xpose.msra.mxu0 0
    %1633 = vmatprep.subr.bf16.mxu0 0
    %1634 = vmatpush1.bf16.xpose.msra.mxu0 0
    %1635 = vmatprep.mubr.bf16.mxu0 0
    %1636 = vmatmul.mubr.bf16.gmra.mrb[0].mxu0 %v1598
    %v1637 = vpop.f32.mrb[0].mxu0
    %v1638 = vadd.f32 0.0, %v1637
    %v1639 = vpop.f32.mrb[0].mxu0
    %v1640 = vpop.f32.mrb[0].mxu0
    %v1641 = vpop.f32.mrb[0].mxu0
    %1642 = vdwg.mxu0
    %1643 = vrot.lane.b32.xlu0 %v410, 112
    %v1644 = vpop.permute.xlu0 %1643
    %1645 = vrot.lane.b32.xlu0 %v410, 80
    %v1646 = vpop.permute.xlu0 %1645
    %v1648 = vsel %vm414, %v1644, 0
    %v1651 = vsel %vm414, %v1646, 0
    %1653 = vmatprep.subr.bf16.mxu0 0
    %1654 = vmatpush1.bf16.xpose.msra.mxu0 %v1651
    %1655 = vmatprep.subr.bf16.mxu0 0
    %1656 = vmatpush1.bf16.xpose.msra.mxu0 0
    %1657 = vmatprep.subr.bf16.mxu0 0
    %1658 = vmatpush1.bf16.xpose.msra.mxu0 0
    %1659 = vmatprep.subr.bf16.mxu0 0
    %1660 = vmatpush1.bf16.xpose.msra.mxu0 0
    %1661 = vmatprep.subr.bf16.mxu0 0
    %1662 = vmatpush1.bf16.xpose.msra.mxu0 0
    %1663 = vmatprep.subr.bf16.mxu0 0
    %1664 = vmatpush1.bf16.xpose.msra.mxu0 0
    %1665 = vmatprep.subr.bf16.mxu0 0
    %1666 = vmatpush1.bf16.xpose.msra.mxu0 0
    %1667 = vmatprep.subr.bf16.mxu0 0
    %1668 = vmatpush1.bf16.xpose.msra.mxu0 0
    %1669 = vmatprep.subr.bf16.mxu0 0
    %1670 = vmatpush1.bf16.xpose.msra.mxu0 0
    %1671 = vmatprep.subr.bf16.mxu0 0
    %1672 = vmatpush1.bf16.xpose.msra.mxu0 0
    %1673 = vmatprep.subr.bf16.mxu0 0
    %1674 = vmatpush1.bf16.xpose.msra.mxu0 0
    %1675 = vmatprep.subr.bf16.mxu0 0
    %1676 = vmatpush1.bf16.xpose.msra.mxu0 0
    %1677 = vmatprep.subr.bf16.mxu0 0
    %1678 = vmatpush1.bf16.xpose.msra.mxu0 0
    %1679 = vmatprep.subr.bf16.mxu0 0
    %1680 = vmatpush1.bf16.xpose.msra.mxu0 0
    %1681 = vmatprep.subr.bf16.mxu0 0
    %1682 = vmatpush1.bf16.xpose.msra.mxu0 0
    %1683 = vmatprep.subr.bf16.mxu0 0
    %1684 = vmatpush1.bf16.xpose.msra.mxu0 0
    %1685 = vmatprep.mubr.bf16.mxu0 0
    %1686 = vmatmul.mubr.bf16.gmra.mrb[0].mxu0 %v1648
    %v1687 = vpop.f32.mrb[0].mxu0
    %v1688 = vadd.f32 0.0, %v1687
    %v1689 = vpop.f32.mrb[0].mxu0
    %v1690 = vpop.f32.mrb[0].mxu0
    %v1691 = vpop.f32.mrb[0].mxu0
    %1692 = vdwg.mxu0
    %v1693 = vmul.f32 %v1338, 0.25
    %v1694 = vmul.f32 %v1388, 0.25
    %v1695 = vmul.f32 %v1438, 0.25
    %v1696 = vmul.f32 %v1488, 0.25
    %v1697 = vmul.f32 %v1538, 0.25
    %v1698 = vmul.f32 %v1588, 0.25
    %v1699 = vmul.f32 %v1638, 0.25
    %v1700 = vmul.f32 %v1688, 0.25
    %v1701 = vsel %vm194, %v1693, -inf
    %1702 = vmax.xlane.f32.xlu0 %v1701
    %v1703 = vpop.xlane.xlu0 %1702
    %v1704 = vsel %vm194, %v1694, -inf
    %1705 = vmax.xlane.f32.xlu0 %v1704
    %v1706 = vpop.xlane.xlu0 %1705
    %v1707 = vsel %vm194, %v1695, -inf
    %1708 = vmax.xlane.f32.xlu0 %v1707
    %v1709 = vpop.xlane.xlu0 %1708
    %v1710 = vsel %vm194, %v1696, -inf
    %1711 = vmax.xlane.f32.xlu0 %v1710
    %v1712 = vpop.xlane.xlu0 %1711
    %v1713 = vsel %vm194, %v1697, -inf
    %1714 = vmax.xlane.f32.xlu0 %v1713
    %v1715 = vpop.xlane.xlu0 %1714
    %v1716 = vsel %vm194, %v1698, -inf
    %1717 = vmax.xlane.f32.xlu0 %v1716
    %v1718 = vpop.xlane.xlu0 %1717
    %v1719 = vsel %vm194, %v1699, -inf
    %1720 = vmax.xlane.f32.xlu0 %v1719
    %v1721 = vpop.xlane.xlu0 %1720
    %v1722 = vsel %vm194, %v1700, -inf
    %1723 = vmax.xlane.f32.xlu0 %v1722
    %v1724 = vpop.xlane.xlu0 %1723
    %v1725 = vsub.f32 %v1693, %v1703
    %v1726 = vsub.f32 %v1694, %v1706
    %v1727 = vsub.f32 %v1695, %v1709
    %v1728 = vsub.f32 %v1696, %v1712
    %v1729 = vsub.f32 %v1697, %v1715
    %v1730 = vsub.f32 %v1698, %v1718
    %v1731 = vsub.f32 %v1699, %v1721
    %v1732 = vsub.f32 %v1700, %v1724
    %v1733 = vmul.f32 %v1725, 1.442695
    %v1734 = vpow.pop %v1733
    %v1735 = vmul.f32 %v1726, 1.442695
    %v1736 = vpow.pop %v1735
    %v1737 = vmul.f32 %v1727, 1.442695
    %v1738 = vpow.pop %v1737
    %v1739 = vmul.f32 %v1728, 1.442695
    %v1740 = vpow.pop %v1739
    %v1741 = vmul.f32 %v1729, 1.442695
    %v1742 = vpow.pop %v1741
    %v1743 = vmul.f32 %v1730, 1.442695
    %v1744 = vpow.pop %v1743
    %v1745 = vmul.f32 %v1731, 1.442695
    %v1746 = vpow.pop %v1745
    %v1747 = vmul.f32 %v1732, 1.442695
    %v1748 = vpow.pop %v1747
    %v1749 = vsel %vm194, %v1734, 0.0
    %1750 = vadd.xlane.f32.xlu0 %v1749
    %v1751 = vpop.xlane.xlu0 %1750
    %v1752 = vsel %vm194, %v1736, 0.0
    %1753 = vadd.xlane.f32.xlu0 %v1752
    %v1754 = vpop.xlane.xlu0 %1753
    %v1755 = vsel %vm194, %v1738, 0.0
    %1756 = vadd.xlane.f32.xlu0 %v1755
    %v1757 = vpop.xlane.xlu0 %1756
    %v1758 = vsel %vm194, %v1740, 0.0
    %1759 = vadd.xlane.f32.xlu0 %v1758
    %v1760 = vpop.xlane.xlu0 %1759
    %v1761 = vsel %vm194, %v1742, 0.0
    %1762 = vadd.xlane.f32.xlu0 %v1761
    %v1763 = vpop.xlane.xlu0 %1762
    %v1764 = vsel %vm194, %v1744, 0.0
    %1765 = vadd.xlane.f32.xlu0 %v1764
    %v1766 = vpop.xlane.xlu0 %1765
    %v1767 = vsel %vm194, %v1746, 0.0
    %1768 = vadd.xlane.f32.xlu0 %v1767
    %v1769 = vpop.xlane.xlu0 %1768
    %v1770 = vsel %vm194, %v1748, 0.0
    %1771 = vadd.xlane.f32.xlu0 %v1770
    %v1772 = vpop.xlane.xlu0 %1771
    %v1773 = vrcp.pop %v1751
    %v1774 = vrcp.pop %v1754
    %v1775 = vrcp.pop %v1757
    %v1776 = vrcp.pop %v1760
    %v1777 = vrcp.pop %v1763
    %v1778 = vrcp.pop %v1766
    %v1779 = vrcp.pop %v1769
    %v1780 = vrcp.pop %v1772
    %v1781 = vmul.f32 %v1734, %v1773
    %v1782 = vmul.f32 %v1736, %v1774
    %v1783 = vmul.f32 %v1738, %v1775
    %v1784 = vmul.f32 %v1740, %v1776
    %v1785 = vmul.f32 %v1742, %v1777
    %v1786 = vmul.f32 %v1744, %v1778
    %v1787 = vmul.f32 %v1746, %v1779
    %v1788 = vmul.f32 %v1748, %v1780
    %v1789 = vpack.c.bf16 %v1781, %v1781
    %v1790 = vpack.c.bf16 %v1782, %v1782
    %v1791 = vpack.c.bf16 %v1783, %v1783
    %v1792 = vpack.c.bf16 %v1784, %v1784
    %v1793 = vpack.c.bf16 %v1785, %v1785
    %v1794 = vpack.c.bf16 %v1786, %v1786
    %v1795 = vpack.c.bf16 %v1787, %v1787
    %v1796 = vpack.c.bf16 %v1788, %v1788
    %1797 = vrot.lane.b32.xlu0 %v403, 48
    %v1798 = vpop.permute.xlu0 %1797
    %v1800 = vsel %vm194, %v1789, 0
    %v1803 = vsel %vm913, %v1798, 0
    %1805 = vmatprep.subr.bf16.mxu0 0
    %1806 = vmatpush1.bf16.msra.mxu0 %v1803
    %1807 = vmatprep.subr.bf16.mxu0 0
    %1808 = vmatpush1.bf16.msra.mxu0 0
    %1809 = vmatprep.subr.bf16.mxu0 0
    %1810 = vmatpush1.bf16.msra.mxu0 0
    %1811 = vmatprep.subr.bf16.mxu0 0
    %1812 = vmatpush1.bf16.msra.mxu0 0
    %1813 = vmatprep.subr.bf16.mxu0 0
    %1814 = vmatpush1.bf16.msra.mxu0 0
    %1815 = vmatprep.subr.bf16.mxu0 0
    %1816 = vmatpush1.bf16.msra.mxu0 0
    %1817 = vmatprep.subr.bf16.mxu0 0
    %1818 = vmatpush1.bf16.msra.mxu0 0
    %1819 = vmatprep.subr.bf16.mxu0 0
    %1820 = vmatpush1.bf16.msra.mxu0 0
    %1821 = vmatprep.subr.bf16.mxu0 0
    %1822 = vmatpush1.bf16.msra.mxu0 0
    %1823 = vmatprep.subr.bf16.mxu0 0
    %1824 = vmatpush1.bf16.msra.mxu0 0
    %1825 = vmatprep.subr.bf16.mxu0 0
    %1826 = vmatpush1.bf16.msra.mxu0 0
    %1827 = vmatprep.subr.bf16.mxu0 0
    %1828 = vmatpush1.bf16.msra.mxu0 0
    %1829 = vmatprep.subr.bf16.mxu0 0
    %1830 = vmatpush1.bf16.msra.mxu0 0
    %1831 = vmatprep.subr.bf16.mxu0 0
    %1832 = vmatpush1.bf16.msra.mxu0 0
    %1833 = vmatprep.subr.bf16.mxu0 0
    %1834 = vmatpush1.bf16.msra.mxu0 0
    %1835 = vmatprep.subr.bf16.mxu0 0
    %1836 = vmatpush1.bf16.msra.mxu0 0
    %1837 = vmatprep.mubr.bf16.mxu0 0
    %1838 = vmatmul.mubr.bf16.gmra.mrb[0].mxu0 %v1800
    %v1839 = vpop.f32.mrb[0].mxu0
    %v1840 = vadd.f32 0.0, %v1839
    %v1841 = vpop.f32.mrb[0].mxu0
    %v1842 = vpop.f32.mrb[0].mxu0
    %v1843 = vpop.f32.mrb[0].mxu0
    %1844 = vdwg.mxu0
    %1845 = vrot.lane.b32.xlu0 %v404, 48
    %v1846 = vpop.permute.xlu0 %1845
    %v1848 = vsel %vm194, %v1790, 0
    %v1851 = vsel %vm913, %v1846, 0
    %1853 = vmatprep.subr.bf16.mxu0 0
    %1854 = vmatpush1.bf16.msra.mxu0 %v1851
    %1855 = vmatprep.subr.bf16.mxu0 0
    %1856 = vmatpush1.bf16.msra.mxu0 0
    %1857 = vmatprep.subr.bf16.mxu0 0
    %1858 = vmatpush1.bf16.msra.mxu0 0
    %1859 = vmatprep.subr.bf16.mxu0 0
    %1860 = vmatpush1.bf16.msra.mxu0 0
    %1861 = vmatprep.subr.bf16.mxu0 0
    %1862 = vmatpush1.bf16.msra.mxu0 0
    %1863 = vmatprep.subr.bf16.mxu0 0
    %1864 = vmatpush1.bf16.msra.mxu0 0
    %1865 = vmatprep.subr.bf16.mxu0 0
    %1866 = vmatpush1.bf16.msra.mxu0 0
    %1867 = vmatprep.subr.bf16.mxu0 0
    %1868 = vmatpush1.bf16.msra.mxu0 0
    %1869 = vmatprep.subr.bf16.mxu0 0
    %1870 = vmatpush1.bf16.msra.mxu0 0
    %1871 = vmatprep.subr.bf16.mxu0 0
    %1872 = vmatpush1.bf16.msra.mxu0 0
    %1873 = vmatprep.subr.bf16.mxu0 0
    %1874 = vmatpush1.bf16.msra.mxu0 0
    %1875 = vmatprep.subr.bf16.mxu0 0
    %1876 = vmatpush1.bf16.msra.mxu0 0
    %1877 = vmatprep.subr.bf16.mxu0 0
    %1878 = vmatpush1.bf16.msra.mxu0 0
    %1879 = vmatprep.subr.bf16.mxu0 0
    %1880 = vmatpush1.bf16.msra.mxu0 0
    %1881 = vmatprep.subr.bf16.mxu0 0
    %1882 = vmatpush1.bf16.msra.mxu0 0
    %1883 = vmatprep.subr.bf16.mxu0 0
    %1884 = vmatpush1.bf16.msra.mxu0 0
    %1885 = vmatprep.mubr.bf16.mxu0 0
    %1886 = vmatmul.mubr.bf16.gmra.mrb[0].mxu0 %v1848
    %v1887 = vpop.f32.mrb[0].mxu0
    %v1888 = vadd.f32 0.0, %v1887
    %v1889 = vpop.f32.mrb[0].mxu0
    %v1890 = vpop.f32.mrb[0].mxu0
    %v1891 = vpop.f32.mrb[0].mxu0
    %1892 = vdwg.mxu0
    %1893 = vrot.lane.b32.xlu0 %v405, 48
    %v1894 = vpop.permute.xlu0 %1893
    %v1896 = vsel %vm194, %v1791, 0
    %v1899 = vsel %vm913, %v1894, 0
    %1901 = vmatprep.subr.bf16.mxu0 0
    %1902 = vmatpush1.bf16.msra.mxu0 %v1899
    %1903 = vmatprep.subr.bf16.mxu0 0
    %1904 = vmatpush1.bf16.msra.mxu0 0
    %1905 = vmatprep.subr.bf16.mxu0 0
    %1906 = vmatpush1.bf16.msra.mxu0 0
    %1907 = vmatprep.subr.bf16.mxu0 0
    %1908 = vmatpush1.bf16.msra.mxu0 0
    %1909 = vmatprep.subr.bf16.mxu0 0
    %1910 = vmatpush1.bf16.msra.mxu0 0
    %1911 = vmatprep.subr.bf16.mxu0 0
    %1912 = vmatpush1.bf16.msra.mxu0 0
    %1913 = vmatprep.subr.bf16.mxu0 0
    %1914 = vmatpush1.bf16.msra.mxu0 0
    %1915 = vmatprep.subr.bf16.mxu0 0
    %1916 = vmatpush1.bf16.msra.mxu0 0
    %1917 = vmatprep.subr.bf16.mxu0 0
    %1918 = vmatpush1.bf16.msra.mxu0 0
    %1919 = vmatprep.subr.bf16.mxu0 0
    %1920 = vmatpush1.bf16.msra.mxu0 0
    %1921 = vmatprep.subr.bf16.mxu0 0
    %1922 = vmatpush1.bf16.msra.mxu0 0
    %1923 = vmatprep.subr.bf16.mxu0 0
    %1924 = vmatpush1.bf16.msra.mxu0 0
    %1925 = vmatprep.subr.bf16.mxu0 0
    %1926 = vmatpush1.bf16.msra.mxu0 0
    %1927 = vmatprep.subr.bf16.mxu0 0
    %1928 = vmatpush1.bf16.msra.mxu0 0
    %1929 = vmatprep.subr.bf16.mxu0 0
    %1930 = vmatpush1.bf16.msra.mxu0 0
    %1931 = vmatprep.subr.bf16.mxu0 0
    %1932 = vmatpush1.bf16.msra.mxu0 0
    %1933 = vmatprep.mubr.bf16.mxu0 0
    %1934 = vmatmul.mubr.bf16.gmra.mrb[0].mxu0 %v1896
    %v1935 = vpop.f32.mrb[0].mxu0
    %v1936 = vadd.f32 0.0, %v1935
    %v1937 = vpop.f32.mrb[0].mxu0
    %v1938 = vpop.f32.mrb[0].mxu0
    %v1939 = vpop.f32.mrb[0].mxu0
    %1940 = vdwg.mxu0
    %1941 = vrot.lane.b32.xlu0 %v406, 48
    %v1942 = vpop.permute.xlu0 %1941
    %v1944 = vsel %vm194, %v1792, 0
    %v1947 = vsel %vm913, %v1942, 0
    %1949 = vmatprep.subr.bf16.mxu0 0
    %1950 = vmatpush1.bf16.msra.mxu0 %v1947
    %1951 = vmatprep.subr.bf16.mxu0 0
    %1952 = vmatpush1.bf16.msra.mxu0 0
    %1953 = vmatprep.subr.bf16.mxu0 0
    %1954 = vmatpush1.bf16.msra.mxu0 0
    %1955 = vmatprep.subr.bf16.mxu0 0
    %1956 = vmatpush1.bf16.msra.mxu0 0
    %1957 = vmatprep.subr.bf16.mxu0 0
    %1958 = vmatpush1.bf16.msra.mxu0 0
    %1959 = vmatprep.subr.bf16.mxu0 0
    %1960 = vmatpush1.bf16.msra.mxu0 0
    %1961 = vmatprep.subr.bf16.mxu0 0
    %1962 = vmatpush1.bf16.msra.mxu0 0
    %1963 = vmatprep.subr.bf16.mxu0 0
    %1964 = vmatpush1.bf16.msra.mxu0 0
    %1965 = vmatprep.subr.bf16.mxu0 0
    %1966 = vmatpush1.bf16.msra.mxu0 0
    %1967 = vmatprep.subr.bf16.mxu0 0
    %1968 = vmatpush1.bf16.msra.mxu0 0
    %1969 = vmatprep.subr.bf16.mxu0 0
    %1970 = vmatpush1.bf16.msra.mxu0 0
    %1971 = vmatprep.subr.bf16.mxu0 0
    %1972 = vmatpush1.bf16.msra.mxu0 0
    %1973 = vmatprep.subr.bf16.mxu0 0
    %1974 = vmatpush1.bf16.msra.mxu0 0
    %1975 = vmatprep.subr.bf16.mxu0 0
    %1976 = vmatpush1.bf16.msra.mxu0 0
    %1977 = vmatprep.subr.bf16.mxu0 0
    %1978 = vmatpush1.bf16.msra.mxu0 0
    %1979 = vmatprep.subr.bf16.mxu0 0
    %1980 = vmatpush1.bf16.msra.mxu0 0
    %1981 = vmatprep.mubr.bf16.mxu0 0
    %1982 = vmatmul.mubr.bf16.gmra.mrb[0].mxu0 %v1944
    %v1983 = vpop.f32.mrb[0].mxu0
    %v1984 = vadd.f32 0.0, %v1983
    %v1985 = vpop.f32.mrb[0].mxu0
    %v1986 = vpop.f32.mrb[0].mxu0
    %v1987 = vpop.f32.mrb[0].mxu0
    %1988 = vdwg.mxu0
    %1989 = vrot.lane.b32.xlu0 %v407, 48
    %v1990 = vpop.permute.xlu0 %1989
    %v1992 = vsel %vm194, %v1793, 0
    %v1995 = vsel %vm913, %v1990, 0
    %1997 = vmatprep.subr.bf16.mxu0 0
    %1998 = vmatpush1.bf16.msra.mxu0 %v1995
    %1999 = vmatprep.subr.bf16.mxu0 0
    %2000 = vmatpush1.bf16.msra.mxu0 0
    %2001 = vmatprep.subr.bf16.mxu0 0
    %2002 = vmatpush1.bf16.msra.mxu0 0
    %2003 = vmatprep.subr.bf16.mxu0 0
    %2004 = vmatpush1.bf16.msra.mxu0 0
    %2005 = vmatprep.subr.bf16.mxu0 0
    %2006 = vmatpush1.bf16.msra.mxu0 0
    %2007 = vmatprep.subr.bf16.mxu0 0
    %2008 = vmatpush1.bf16.msra.mxu0 0
    %2009 = vmatprep.subr.bf16.mxu0 0
    %2010 = vmatpush1.bf16.msra.mxu0 0
    %2011 = vmatprep.subr.bf16.mxu0 0
    %2012 = vmatpush1.bf16.msra.mxu0 0
    %2013 = vmatprep.subr.bf16.mxu0 0
    %2014 = vmatpush1.bf16.msra.mxu0 0
    %2015 = vmatprep.subr.bf16.mxu0 0
    %2016 = vmatpush1.bf16.msra.mxu0 0
    %2017 = vmatprep.subr.bf16.mxu0 0
    %2018 = vmatpush1.bf16.msra.mxu0 0
    %2019 = vmatprep.subr.bf16.mxu0 0
    %2020 = vmatpush1.bf16.msra.mxu0 0
    %2021 = vmatprep.subr.bf16.mxu0 0
    %2022 = vmatpush1.bf16.msra.mxu0 0
    %2023 = vmatprep.subr.bf16.mxu0 0
    %2024 = vmatpush1.bf16.msra.mxu0 0
    %2025 = vmatprep.subr.bf16.mxu0 0
    %2026 = vmatpush1.bf16.msra.mxu0 0
    %2027 = vmatprep.subr.bf16.mxu0 0
    %2028 = vmatpush1.bf16.msra.mxu0 0
    %2029 = vmatprep.mubr.bf16.mxu0 0
    %2030 = vmatmul.mubr.bf16.gmra.mrb[0].mxu0 %v1992
    %v2031 = vpop.f32.mrb[0].mxu0
    %v2032 = vadd.f32 0.0, %v2031
    %v2033 = vpop.f32.mrb[0].mxu0
    %v2034 = vpop.f32.mrb[0].mxu0
    %v2035 = vpop.f32.mrb[0].mxu0
    %2036 = vdwg.mxu0
    %2037 = vrot.lane.b32.xlu0 %v408, 48
    %v2038 = vpop.permute.xlu0 %2037
    %v2040 = vsel %vm194, %v1794, 0
    %v2043 = vsel %vm913, %v2038, 0
    %2045 = vmatprep.subr.bf16.mxu0 0
    %2046 = vmatpush1.bf16.msra.mxu0 %v2043
    %2047 = vmatprep.subr.bf16.mxu0 0
    %2048 = vmatpush1.bf16.msra.mxu0 0
    %2049 = vmatprep.subr.bf16.mxu0 0
    %2050 = vmatpush1.bf16.msra.mxu0 0
    %2051 = vmatprep.subr.bf16.mxu0 0
    %2052 = vmatpush1.bf16.msra.mxu0 0
    %2053 = vmatprep.subr.bf16.mxu0 0
    %2054 = vmatpush1.bf16.msra.mxu0 0
    %2055 = vmatprep.subr.bf16.mxu0 0
    %2056 = vmatpush1.bf16.msra.mxu0 0
    %2057 = vmatprep.subr.bf16.mxu0 0
    %2058 = vmatpush1.bf16.msra.mxu0 0
    %2059 = vmatprep.subr.bf16.mxu0 0
    %2060 = vmatpush1.bf16.msra.mxu0 0
    %2061 = vmatprep.subr.bf16.mxu0 0
    %2062 = vmatpush1.bf16.msra.mxu0 0
    %2063 = vmatprep.subr.bf16.mxu0 0
    %2064 = vmatpush1.bf16.msra.mxu0 0
    %2065 = vmatprep.subr.bf16.mxu0 0
    %2066 = vmatpush1.bf16.msra.mxu0 0
    %2067 = vmatprep.subr.bf16.mxu0 0
    %2068 = vmatpush1.bf16.msra.mxu0 0
    %2069 = vmatprep.subr.bf16.mxu0 0
    %2070 = vmatpush1.bf16.msra.mxu0 0
    %2071 = vmatprep.subr.bf16.mxu0 0
    %2072 = vmatpush1.bf16.msra.mxu0 0
    %2073 = vmatprep.subr.bf16.mxu0 0
    %2074 = vmatpush1.bf16.msra.mxu0 0
    %2075 = vmatprep.subr.bf16.mxu0 0
    %2076 = vmatpush1.bf16.msra.mxu0 0
    %2077 = vmatprep.mubr.bf16.mxu0 0
    %2078 = vmatmul.mubr.bf16.gmra.mrb[0].mxu0 %v2040
    %v2079 = vpop.f32.mrb[0].mxu0
    %v2080 = vadd.f32 0.0, %v2079
    %v2081 = vpop.f32.mrb[0].mxu0
    %v2082 = vpop.f32.mrb[0].mxu0
    %v2083 = vpop.f32.mrb[0].mxu0
    %2084 = vdwg.mxu0
    %2085 = vrot.lane.b32.xlu0 %v409, 48
    %v2086 = vpop.permute.xlu0 %2085
    %v2088 = vsel %vm194, %v1795, 0
    %v2091 = vsel %vm913, %v2086, 0
    %2093 = vmatprep.subr.bf16.mxu0 0
    %2094 = vmatpush1.bf16.msra.mxu0 %v2091
    %2095 = vmatprep.subr.bf16.mxu0 0
    %2096 = vmatpush1.bf16.msra.mxu0 0
    %2097 = vmatprep.subr.bf16.mxu0 0
    %2098 = vmatpush1.bf16.msra.mxu0 0
    %2099 = vmatprep.subr.bf16.mxu0 0
    %2100 = vmatpush1.bf16.msra.mxu0 0
    %2101 = vmatprep.subr.bf16.mxu0 0
    %2102 = vmatpush1.bf16.msra.mxu0 0
    %2103 = vmatprep.subr.bf16.mxu0 0
    %2104 = vmatpush1.bf16.msra.mxu0 0
    %2105 = vmatprep.subr.bf16.mxu0 0
    %2106 = vmatpush1.bf16.msra.mxu0 0
    %2107 = vmatprep.subr.bf16.mxu0 0
    %2108 = vmatpush1.bf16.msra.mxu0 0
    %2109 = vmatprep.subr.bf16.mxu0 0
    %2110 = vmatpush1.bf16.msra.mxu0 0
    %2111 = vmatprep.subr.bf16.mxu0 0
    %2112 = vmatpush1.bf16.msra.mxu0 0
    %2113 = vmatprep.subr.bf16.mxu0 0
    %2114 = vmatpush1.bf16.msra.mxu0 0
    %2115 = vmatprep.subr.bf16.mxu0 0
    %2116 = vmatpush1.bf16.msra.mxu0 0
    %2117 = vmatprep.subr.bf16.mxu0 0
    %2118 = vmatpush1.bf16.msra.mxu0 0
    %2119 = vmatprep.subr.bf16.mxu0 0
    %2120 = vmatpush1.bf16.msra.mxu0 0
    %2121 = vmatprep.subr.bf16.mxu0 0
    %2122 = vmatpush1.bf16.msra.mxu0 0
    %2123 = vmatprep.subr.bf16.mxu0 0
    %2124 = vmatpush1.bf16.msra.mxu0 0
    %2125 = vmatprep.mubr.bf16.mxu0 0
    %2126 = vmatmul.mubr.bf16.gmra.mrb[0].mxu0 %v2088
    %v2127 = vpop.f32.mrb[0].mxu0
    %v2128 = vadd.f32 0.0, %v2127
    %v2129 = vpop.f32.mrb[0].mxu0
    %v2130 = vpop.f32.mrb[0].mxu0
    %v2131 = vpop.f32.mrb[0].mxu0
    %2132 = vdwg.mxu0
    %2133 = vrot.lane.b32.xlu0 %v410, 48
    %v2134 = vpop.permute.xlu0 %2133
    %v2136 = vsel %vm194, %v1796, 0
    %v2139 = vsel %vm913, %v2134, 0
    %2141 = vmatprep.subr.bf16.mxu0 0
    %2142 = vmatpush1.bf16.msra.mxu0 %v2139
    %2143 = vmatprep.subr.bf16.mxu0 0
    %2144 = vmatpush1.bf16.msra.mxu0 0
    %2145 = vmatprep.subr.bf16.mxu0 0
    %2146 = vmatpush1.bf16.msra.mxu0 0
    %2147 = vmatprep.subr.bf16.mxu0 0
    %2148 = vmatpush1.bf16.msra.mxu0 0
    %2149 = vmatprep.subr.bf16.mxu0 0
    %2150 = vmatpush1.bf16.msra.mxu0 0
    %2151 = vmatprep.subr.bf16.mxu0 0
    %2152 = vmatpush1.bf16.msra.mxu0 0
    %2153 = vmatprep.subr.bf16.mxu0 0
    %2154 = vmatpush1.bf16.msra.mxu0 0
    %2155 = vmatprep.subr.bf16.mxu0 0
    %2156 = vmatpush1.bf16.msra.mxu0 0
    %2157 = vmatprep.subr.bf16.mxu0 0
    %2158 = vmatpush1.bf16.msra.mxu0 0
    %2159 = vmatprep.subr.bf16.mxu0 0
    %2160 = vmatpush1.bf16.msra.mxu0 0
    %2161 = vmatprep.subr.bf16.mxu0 0
    %2162 = vmatpush1.bf16.msra.mxu0 0
    %2163 = vmatprep.subr.bf16.mxu0 0
    %2164 = vmatpush1.bf16.msra.mxu0 0
    %2165 = vmatprep.subr.bf16.mxu0 0
    %2166 = vmatpush1.bf16.msra.mxu0 0
    %2167 = vmatprep.subr.bf16.mxu0 0
    %2168 = vmatpush1.bf16.msra.mxu0 0
    %2169 = vmatprep.subr.bf16.mxu0 0
    %2170 = vmatpush1.bf16.msra.mxu0 0
    %2171 = vmatprep.subr.bf16.mxu0 0
    %2172 = vmatpush1.bf16.msra.mxu0 0
    %2173 = vmatprep.mubr.bf16.mxu0 0
    %2174 = vmatmul.mubr.bf16.gmra.mrb[0].mxu0 %v2136
    %v2175 = vpop.f32.mrb[0].mxu0
    %v2176 = vadd.f32 0.0, %v2175
    %v2177 = vpop.f32.mrb[0].mxu0
    %v2178 = vpop.f32.mrb[0].mxu0
    %v2179 = vpop.f32.mrb[0].mxu0
    %2180 = vdwg.mxu0
    %2189 = vrot.lane.b32.xlu0 %v1840, 16
    %v2190 = vpop.permute.xlu0 %2189
    %2191 = vrot.lane.b32.xlu0 %v1888, 16
    %v2192 = vpop.permute.xlu0 %2191
    %2193 = vrot.lane.b32.xlu0 %v1936, 16
    %v2194 = vpop.permute.xlu0 %2193
    %2195 = vrot.lane.b32.xlu0 %v1984, 16
    %v2196 = vpop.permute.xlu0 %2195
    %2197 = vrot.lane.b32.xlu0 %v2032, 16
    %v2198 = vpop.permute.xlu0 %2197
    %2199 = vrot.lane.b32.xlu0 %v2080, 16
    %v2200 = vpop.permute.xlu0 %2199
    %2201 = vrot.lane.b32.xlu0 %v2128, 16
    %v2202 = vpop.permute.xlu0 %2201
    %2203 = vrot.lane.b32.xlu0 %v2176, 16
    %v2204 = vpop.permute.xlu0 %2203
    %v2213 = vsel %vm414, %v952, %v2190
    %v2214 = vsel %vm414, %v1000, %v2192
    %v2215 = vsel %vm414, %v1048, %v2194
    %v2216 = vsel %vm414, %v1096, %v2196
    %v2217 = vsel %vm414, %v1144, %v2198
    %v2218 = vsel %vm414, %v1192, %v2200
    %v2219 = vsel %vm414, %v1240, %v2202
    %v2220 = vsel %vm414, %v1288, %v2204
    %v2221 = vpack.c.bf16 %v2214, %v2213
    %v2222 = vpack.c.bf16 %v2216, %v2215
    %v2223 = vpack.c.bf16 %v2218, %v2217
    %v2224 = vpack.c.bf16 %v2220, %v2219
    %v2225 = vld [vmem:[#allocation5] sm:$0xf]
    %v2226 = vld [vmem:[#allocation5 + $0x4] sm:$0xf]
    %v2227 = vld [vmem:[#allocation5 + $0x8] sm:$0xf]
    %v2228 = vld [vmem:[#allocation5 + $0xc] sm:$0xf]
    %v2233 = vunpack.c.l.b16 %v2225
    %v2234 = vunpack.c.l.b16 %v2226
    %v2235 = vunpack.c.l.b16 %v2227
    %v2236 = vunpack.c.l.b16 %v2228
    %v2237 = vpack.c.b16 %v2234, %v2233
    %v2238 = vpack.c.b16 %v2236, %v2235
    %v2242 = vsel %vm325, %v2221, 0
    %v2245 = vsel %vm325, %v2222, 0
    %v2248 = vsel %vm325, %v2223, 0
    %v2251 = vsel %vm325, %v2224, 0
    %2253 = vmatprep.subr.bf16.mxu0 0
    %2254 = vmatpush1.bf16.msra.mxu0 %v2237
    %2255 = vmatprep.subr.bf16.mxu0 0
    %2256 = vmatpush1.bf16.msra.mxu0 %v2238
    %2257 = vmatprep.subr.bf16.mxu0 0
    %2258 = vmatpush1.bf16.msra.mxu0 0
    %2259 = vmatprep.subr.bf16.mxu0 0
    %2260 = vmatpush1.bf16.msra.mxu0 0
    %2261 = vmatprep.subr.bf16.mxu0 0
    %2262 = vmatpush1.bf16.msra.mxu0 0
    %2263 = vmatprep.subr.bf16.mxu0 0
    %2264 = vmatpush1.bf16.msra.mxu0 0
    %2265 = vmatprep.subr.bf16.mxu0 0
    %2266 = vmatpush1.bf16.msra.mxu0 0
    %2267 = vmatprep.subr.bf16.mxu0 0
    %2268 = vmatpush1.bf16.msra.mxu0 0
    %2269 = vmatprep.subr.bf16.mxu0 0
    %2270 = vmatpush1.bf16.msra.mxu0 0
    %2271 = vmatprep.subr.bf16.mxu0 0
    %2272 = vmatpush1.bf16.msra.mxu0 0
    %2273 = vmatprep.subr.bf16.mxu0 0
    %2274 = vmatpush1.bf16.msra.mxu0 0
    %2275 = vmatprep.subr.bf16.mxu0 0
    %2276 = vmatpush1.bf16.msra.mxu0 0
    %2277 = vmatprep.subr.bf16.mxu0 0
    %2278 = vmatpush1.bf16.msra.mxu0 0
    %2279 = vmatprep.subr.bf16.mxu0 0
    %2280 = vmatpush1.bf16.msra.mxu0 0
    %2281 = vmatprep.subr.bf16.mxu0 0
    %2282 = vmatpush1.bf16.msra.mxu0 0
    %2283 = vmatprep.subr.bf16.mxu0 0
    %2284 = vmatpush1.bf16.msra.mxu0 0
    %2285 = vmatprep.mubr.bf16.mxu0 0
    %2286 = vmatmul.mubr.bf16.gmra.mrb[0].mxu0 %v2242
    %v2287 = vpop.f32.mrb[0].mxu0
    %v2288 = vadd.f32 0.0, %v2287
    %v2289 = vpop.f32.mrb[0].mxu0
    %v2290 = vpop.f32.mrb[0].mxu0
    %v2291 = vadd.f32 0.0, %v2290
    %v2292 = vpop.f32.mrb[0].mxu0
    %2293 = vmatprep.mubr.bf16.mxu0 0
    %2294 = vmatmul.mubr.bf16.gmra.mrb[0].mxu0 %v2245
    %v2295 = vpop.f32.mrb[0].mxu0
    %v2296 = vadd.f32 0.0, %v2295
    %v2297 = vpop.f32.mrb[0].mxu0
    %v2298 = vpop.f32.mrb[0].mxu0
    %v2299 = vadd.f32 0.0, %v2298
    %v2300 = vpop.f32.mrb[0].mxu0
    %2301 = vmatprep.mubr.bf16.mxu0 0
    %2302 = vmatmul.mubr.bf16.gmra.mrb[0].mxu0 %v2248
    %v2303 = vpop.f32.mrb[0].mxu0
    %v2304 = vadd.f32 0.0, %v2303
    %v2305 = vpop.f32.mrb[0].mxu0
    %v2306 = vpop.f32.mrb[0].mxu0
    %v2307 = vadd.f32 0.0, %v2306
    %v2308 = vpop.f32.mrb[0].mxu0
    %2309 = vmatprep.mubr.bf16.mxu0 0
    %2310 = vmatmul.mubr.bf16.gmra.mrb[0].mxu0 %v2251
    %v2311 = vpop.f32.mrb[0].mxu0
    %v2312 = vadd.f32 0.0, %v2311
    %v2313 = vpop.f32.mrb[0].mxu0
    %v2314 = vpop.f32.mrb[0].mxu0
    %v2315 = vadd.f32 0.0, %v2314
    %v2316 = vpop.f32.mrb[0].mxu0
    %2317 = vdwg.mxu0
    %v2318 = vadd.f32 %v297, %v2288
    %v2319 = vadd.f32 %v298, %v2291
    %v2320 = vadd.f32 %v299, %v2296
    %v2321 = vadd.f32 %v300, %v2299
    %v2322 = vadd.f32 %v301, %v2304
    %v2323 = vadd.f32 %v302, %v2307
    %v2324 = vadd.f32 %v303, %v2312
    %v2325 = vadd.f32 %v304, %v2315
    %v2326 = vld [vmem:[%s9] sm:$0x1]
    %v2327 = vld [vmem:[%s10] sm:$0x1]
    %v2328 = vsel %vm325, %v2318, 0.0
    %2329 = vadd.xlane.f32.xlu0 %v2328
    %v2330 = vpop.xlane.xlu0 %2329
    %v2331 = vsel %vm325, %v2319, 0.0
    %2332 = vadd.xlane.f32.xlu0 %v2331
    %v2333 = vpop.xlane.xlu0 %2332
    %v2334 = vsel %vm325, %v2320, 0.0
    %2335 = vadd.xlane.f32.xlu0 %v2334
    %v2336 = vpop.xlane.xlu0 %2335
    %v2337 = vsel %vm325, %v2321, 0.0
    %2338 = vadd.xlane.f32.xlu0 %v2337
    %v2339 = vpop.xlane.xlu0 %2338
    %v2340 = vsel %vm325, %v2322, 0.0
    %2341 = vadd.xlane.f32.xlu0 %v2340
    %v2342 = vpop.xlane.xlu0 %2341
    %v2343 = vsel %vm325, %v2323, 0.0
    %2344 = vadd.xlane.f32.xlu0 %v2343
    %v2345 = vpop.xlane.xlu0 %2344
    %v2346 = vsel %vm325, %v2324, 0.0
    %2347 = vadd.xlane.f32.xlu0 %v2346
    %v2348 = vpop.xlane.xlu0 %2347
    %v2349 = vsel %vm325, %v2325, 0.0
    %2350 = vadd.xlane.f32.xlu0 %v2349
    %v2351 = vpop.xlane.xlu0 %2350
    %v2352 = vrcp.pop 32.0
    %v2353 = vmul.f32 %v2330, %v2352
    %v2354 = vmul.f32 %v2333, %v2352
    %v2355 = vmul.f32 %v2336, %v2352
    %v2356 = vmul.f32 %v2339, %v2352
    %v2357 = vmul.f32 %v2342, %v2352
    %v2358 = vmul.f32 %v2345, %v2352
    %v2359 = vmul.f32 %v2348, %v2352
    %v2360 = vmul.f32 %v2351, %v2352
    %v2361 = vsub.f32 %v2318, %v2353
    %v2362 = vsub.f32 %v2319, %v2354
    %v2363 = vsub.f32 %v2320, %v2355
    %v2364 = vsub.f32 %v2321, %v2356
    %v2365 = vsub.f32 %v2322, %v2357
    %v2366 = vsub.f32 %v2323, %v2358
    %v2367 = vsub.f32 %v2324, %v2359
    %v2368 = vsub.f32 %v2325, %v2360
    %v2369 = vmul.f32 %v2361, %v2361
    %v2370 = vmul.f32 %v2362, %v2362
    %v2371 = vmul.f32 %v2363, %v2363
    %v2372 = vmul.f32 %v2364, %v2364
    %v2373 = vmul.f32 %v2365, %v2365
    %v2374 = vmul.f32 %v2366, %v2366
    %v2375 = vmul.f32 %v2367, %v2367
    %v2376 = vmul.f32 %v2368, %v2368
    %v2377 = vsel %vm325, %v2369, 0.0
    %2378 = vadd.xlane.f32.xlu0 %v2377
    %v2379 = vpop.xlane.xlu0 %2378
    %v2380 = vsel %vm325, %v2370, 0.0
    %2381 = vadd.xlane.f32.xlu0 %v2380
    %v2382 = vpop.xlane.xlu0 %2381
    %v2383 = vsel %vm325, %v2371, 0.0
    %2384 = vadd.xlane.f32.xlu0 %v2383
    %v2385 = vpop.xlane.xlu0 %2384
    %v2386 = vsel %vm325, %v2372, 0.0
    %2387 = vadd.xlane.f32.xlu0 %v2386
    %v2388 = vpop.xlane.xlu0 %2387
    %v2389 = vsel %vm325, %v2373, 0.0
    %2390 = vadd.xlane.f32.xlu0 %v2389
    %v2391 = vpop.xlane.xlu0 %2390
    %v2392 = vsel %vm325, %v2374, 0.0
    %2393 = vadd.xlane.f32.xlu0 %v2392
    %v2394 = vpop.xlane.xlu0 %2393
    %v2395 = vsel %vm325, %v2375, 0.0
    %2396 = vadd.xlane.f32.xlu0 %v2395
    %v2397 = vpop.xlane.xlu0 %2396
    %v2398 = vsel %vm325, %v2376, 0.0
    %2399 = vadd.xlane.f32.xlu0 %v2398
    %v2400 = vpop.xlane.xlu0 %2399
    %v2401 = vmul.f32 %v2379, %v2352
    %v2402 = vmul.f32 %v2382, %v2352
    %v2403 = vmul.f32 %v2385, %v2352
    %v2404 = vmul.f32 %v2388, %v2352
    %v2405 = vmul.f32 %v2391, %v2352
    %v2406 = vmul.f32 %v2394, %v2352
    %v2407 = vmul.f32 %v2397, %v2352
    %v2408 = vmul.f32 %v2400, %v2352
    %v2409 = vadd.f32 %v2401, 1e-05
    %v2410 = vadd.f32 %v2402, 1e-05
    %v2411 = vadd.f32 %v2403, 1e-05
    %v2412 = vadd.f32 %v2404, 1e-05
    %v2413 = vadd.f32 %v2405, 1e-05
    %v2414 = vadd.f32 %v2406, 1e-05
    %v2415 = vadd.f32 %v2407, 1e-05
    %v2416 = vadd.f32 %v2408, 1e-05
    %v2417 = vrsqrt.pop %v2409
    %v2418 = vrsqrt.pop %v2410
    %v2419 = vrsqrt.pop %v2411
    %v2420 = vrsqrt.pop %v2412
    %v2421 = vrsqrt.pop %v2413
    %v2422 = vrsqrt.pop %v2414
    %v2423 = vrsqrt.pop %v2415
    %v2424 = vrsqrt.pop %v2416
    %v2425 = vmul.f32 %v2361, %v2417
    %v2426 = vmul.f32 %v2362, %v2418
    %v2427 = vmul.f32 %v2363, %v2419
    %v2428 = vmul.f32 %v2364, %v2420
    %v2429 = vmul.f32 %v2365, %v2421
    %v2430 = vmul.f32 %v2366, %v2422
    %v2431 = vmul.f32 %v2367, %v2423
    %v2432 = vmul.f32 %v2368, %v2424
    %v2433 = vlaneseq
    %v2434 = vshrl.u32 %v2433, 7
    %v2435 = vsub.s32 0, %v2434
    %v2436 = vrot.slane %v2326, %v2435
    %v2437 = vmul.f32 %v2425, %v2436
    %v2438 = vmul.f32 %v2426, %v2436
    %v2439 = vmul.f32 %v2427, %v2436
    %v2440 = vmul.f32 %v2428, %v2436
    %v2441 = vmul.f32 %v2429, %v2436
    %v2442 = vmul.f32 %v2430, %v2436
    %v2443 = vmul.f32 %v2431, %v2436
    %v2444 = vmul.f32 %v2432, %v2436
    %v2445 = vlaneseq
    %v2446 = vshrl.u32 %v2445, 7
    %v2447 = vsub.s32 0, %v2446
    %v2448 = vrot.slane %v2327, %v2447
    %v2449 = vadd.f32 %v2437, %v2448
    %v2450 = vadd.f32 %v2438, %v2448
    %v2451 = vadd.f32 %v2439, %v2448
    %v2452 = vadd.f32 %v2440, %v2448
    %v2453 = vadd.f32 %v2441, %v2448
    %v2454 = vadd.f32 %v2442, %v2448
    %v2455 = vadd.f32 %v2443, %v2448
    %v2456 = vadd.f32 %v2444, %v2448
    %v2457 = vpack.c.bf16 %v2450, %v2449
    %v2458 = vpack.c.bf16 %v2452, %v2451
    %v2459 = vpack.c.bf16 %v2454, %v2453
    %v2460 = vpack.c.bf16 %v2456, %v2455
    %v2461 = vld [vmem:[#allocation7] sm:$0xf]
    %v2462 = vld [vmem:[#allocation7 + $0x4] sm:$0xf]
    %v2463 = vld [vmem:[#allocation7 + $0x8] sm:$0xf]
    %v2464 = vld [vmem:[#allocation7 + $0xc] sm:$0xf]
    %v2465 = vld [vmem:[%s6] sm:$0x1]
    %v2466 = vlaneseq
    %v2467 = vshrl.u32 %v2466, 7
    %v2468 = vsub.s32 0, %v2467
    %v2469 = vrot.slane %v2465, %v2468
    %v2474 = vunpack.c.l.b16 %v2461
    %v2475 = vunpack.c.l.b16 %v2462
    %v2476 = vunpack.c.l.b16 %v2463
    %v2477 = vunpack.c.l.b16 %v2464
    %v2478 = vpack.c.b16 %v2475, %v2474
    %v2479 = vpack.c.b16 %v2477, %v2476
    %v2483 = vsel %vm325, %v2457, 0
    %v2486 = vsel %vm325, %v2458, 0
    %v2489 = vsel %vm325, %v2459, 0
    %v2492 = vsel %vm325, %v2460, 0
    %2494 = vmatprep.subr.bf16.mxu0 0
    %2495 = vmatpush1.bf16.msra.mxu0 %v2478
    %2496 = vmatprep.subr.bf16.mxu0 0
    %2497 = vmatpush1.bf16.msra.mxu0 %v2479
    %2498 = vmatprep.subr.bf16.mxu0 0
    %2499 = vmatpush1.bf16.msra.mxu0 0
    %2500 = vmatprep.subr.bf16.mxu0 0
    %2501 = vmatpush1.bf16.msra.mxu0 0
    %2502 = vmatprep.subr.bf16.mxu0 0
    %2503 = vmatpush1.bf16.msra.mxu0 0
    %2504 = vmatprep.subr.bf16.mxu0 0
    %2505 = vmatpush1.bf16.msra.mxu0 0
    %2506 = vmatprep.subr.bf16.mxu0 0
    %2507 = vmatpush1.bf16.msra.mxu0 0
    %2508 = vmatprep.subr.bf16.mxu0 0
    %2509 = vmatpush1.bf16.msra.mxu0 0
    %2510 = vmatprep.subr.bf16.mxu0 0
    %2511 = vmatpush1.bf16.msra.mxu0 0
    %2512 = vmatprep.subr.bf16.mxu0 0
    %2513 = vmatpush1.bf16.msra.mxu0 0
    %2514 = vmatprep.subr.bf16.mxu0 0
    %2515 = vmatpush1.bf16.msra.mxu0 0
    %2516 = vmatprep.subr.bf16.mxu0 0
    %2517 = vmatpush1.bf16.msra.mxu0 0
    %2518 = vmatprep.subr.bf16.mxu0 0
    %2519 = vmatpush1.bf16.msra.mxu0 0
    %2520 = vmatprep.subr.bf16.mxu0 0
    %2521 = vmatpush1.bf16.msra.mxu0 0
    %2522 = vmatprep.subr.bf16.mxu0 0
    %2523 = vmatpush1.bf16.msra.mxu0 0
    %2524 = vmatprep.subr.bf16.mxu0 0
    %2525 = vmatpush1.bf16.msra.mxu0 0
    %2526 = vmatprep.mubr.bf16.mxu0 0
    %2527 = vmatmul.mubr.bf16.gmra.mrb[0].mxu0 %v2483
    %v2528 = vpop.f32.mrb[0].mxu0
    %v2529 = vadd.f32 %v2469, %v2528
    %v2530 = vpop.f32.mrb[0].mxu0
    %v2531 = vpop.f32.mrb[0].mxu0
    %v2532 = vadd.f32 %v2469, %v2531
    %v2533 = vpop.f32.mrb[0].mxu0
    %2534 = vmatprep.mubr.bf16.mxu0 0
    %2535 = vmatmul.mubr.bf16.gmra.mrb[0].mxu0 %v2486
    %v2536 = vpop.f32.mrb[0].mxu0
    %v2537 = vadd.f32 %v2469, %v2536
    %v2538 = vpop.f32.mrb[0].mxu0
    %v2539 = vpop.f32.mrb[0].mxu0
    %v2540 = vadd.f32 %v2469, %v2539
    %v2541 = vpop.f32.mrb[0].mxu0
    %2542 = vmatprep.mubr.bf16.mxu0 0
    %2543 = vmatmul.mubr.bf16.gmra.mrb[0].mxu0 %v2489
    %v2544 = vpop.f32.mrb[0].mxu0
    %v2545 = vadd.f32 %v2469, %v2544
    %v2546 = vpop.f32.mrb[0].mxu0
    %v2547 = vpop.f32.mrb[0].mxu0
    %v2548 = vadd.f32 %v2469, %v2547
    %v2549 = vpop.f32.mrb[0].mxu0
    %2550 = vmatprep.mubr.bf16.mxu0 0
    %2551 = vmatmul.mubr.bf16.gmra.mrb[0].mxu0 %v2492
    %v2552 = vpop.f32.mrb[0].mxu0
    %v2553 = vadd.f32 %v2469, %v2552
    %v2554 = vpop.f32.mrb[0].mxu0
    %v2555 = vpop.f32.mrb[0].mxu0
    %v2556 = vadd.f32 %v2469, %v2555
    %v2557 = vpop.f32.mrb[0].mxu0
    %2558 = vdwg.mxu0
    %v2559 = vmax.f32 %v2529, 0.0
    %v2560 = vmax.f32 %v2532, 0.0
    %v2561 = vmax.f32 %v2537, 0.0
    %v2562 = vmax.f32 %v2540, 0.0
    %v2563 = vmax.f32 %v2545, 0.0
    %v2564 = vmax.f32 %v2548, 0.0
    %v2565 = vmax.f32 %v2553, 0.0
    %v2566 = vmax.f32 %v2556, 0.0
    %v2567 = vpack.c.bf16 %v2560, %v2559
    %v2568 = vpack.c.bf16 %v2562, %v2561
    %v2569 = vpack.c.bf16 %v2564, %v2563
    %v2570 = vpack.c.bf16 %v2566, %v2565
    %v2571 = vld [vmem:[%s7] sm:$0xf]
    %v2572 = vld [vmem:[%s7 + $0x4] sm:$0xf]
    %v2573 = vld [vmem:[%s7 + $0x8] sm:$0xf]
    %v2574 = vld [vmem:[%s7 + $0xc] sm:$0xf]
    %v2575 = vld [vmem:[%s7 + $0x10] sm:$0xf]
    %v2576 = vld [vmem:[%s7 + $0x14] sm:$0xf]
    %v2577 = vld [vmem:[%s7 + $0x18] sm:$0xf]
    %v2578 = vld [vmem:[%s7 + $0x1c] sm:$0xf]
    %v2579 = vld [vmem:[%s8] sm:$0x1]
    %v2580 = vlaneseq
    %v2581 = vshrl.u32 %v2580, 7
    %v2582 = vsub.s32 0, %v2581
    %v2583 = vrot.slane %v2579, %v2582
    %v2592 = vunpack.c.l.b16 %v2571
    %v2593 = vunpack.c.l.b16 %v2572
    %v2594 = vunpack.c.l.b16 %v2573
    %v2595 = vunpack.c.l.b16 %v2574
    %v2596 = vunpack.c.l.b16 %v2575
    %v2597 = vunpack.c.l.b16 %v2576
    %v2598 = vunpack.c.l.b16 %v2577
    %v2599 = vunpack.c.l.b16 %v2578
    %v2600 = vpack.c.b16 %v2593, %v2592
    %v2601 = vpack.c.b16 %v2595, %v2594
    %v2602 = vpack.c.b16 %v2597, %v2596
    %v2603 = vpack.c.b16 %v2599, %v2598
    %vm2608 = vcmask 523264
    %v2610 = vsel %vm2608, %v2567, 0
    %v2613 = vsel %vm2608, %v2568, 0
    %v2616 = vsel %vm2608, %v2569, 0
    %v2619 = vsel %vm2608, %v2570, 0
    %2621 = vmatprep.subr.bf16.mxu0 0
    %2622 = vmatpush1.bf16.msra.mxu0 %v2600
    %2623 = vmatprep.subr.bf16.mxu0 0
    %2624 = vmatpush1.bf16.msra.mxu0 %v2601
    %2625 = vmatprep.subr.bf16.mxu0 0
    %2626 = vmatpush1.bf16.msra.mxu0 %v2602
    %2627 = vmatprep.subr.bf16.mxu0 0
    %2628 = vmatpush1.bf16.msra.mxu0 %v2603
    %2629 = vmatprep.subr.bf16.mxu0 0
    %2630 = vmatpush1.bf16.msra.mxu0 0
    %2631 = vmatprep.subr.bf16.mxu0 0
    %2632 = vmatpush1.bf16.msra.mxu0 0
    %2633 = vmatprep.subr.bf16.mxu0 0
    %2634 = vmatpush1.bf16.msra.mxu0 0
    %2635 = vmatprep.subr.bf16.mxu0 0
    %2636 = vmatpush1.bf16.msra.mxu0 0
    %2637 = vmatprep.subr.bf16.mxu0 0
    %2638 = vmatpush1.bf16.msra.mxu0 0
    %2639 = vmatprep.subr.bf16.mxu0 0
    %2640 = vmatpush1.bf16.msra.mxu0 0
    %2641 = vmatprep.subr.bf16.mxu0 0
    %2642 = vmatpush1.bf16.msra.mxu0 0
    %2643 = vmatprep.subr.bf16.mxu0 0
    %2644 = vmatpush1.bf16.msra.mxu0 0
    %2645 = vmatprep.subr.bf16.mxu0 0
    %2646 = vmatpush1.bf16.msra.mxu0 0
    %2647 = vmatprep.subr.bf16.mxu0 0
    %2648 = vmatpush1.bf16.msra.mxu0 0
    %2649 = vmatprep.subr.bf16.mxu0 0
    %2650 = vmatpush1.bf16.msra.mxu0 0
    %2651 = vmatprep.subr.bf16.mxu0 0
    %2652 = vmatpush1.bf16.msra.mxu0 0
    %2653 = vmatprep.mubr.bf16.mxu0 0
    %2654 = vmatmul.mubr.bf16.gmra.mrb[0].mxu0 %v2610
    %v2655 = vpop.f32.mrb[0].mxu0
    %v2656 = vadd.f32 %v2583, %v2655
    %v2657 = vpop.f32.mrb[0].mxu0
    %v2658 = vpop.f32.mrb[0].mxu0
    %v2659 = vadd.f32 %v2583, %v2658
    %v2660 = vpop.f32.mrb[0].mxu0
    %2661 = vmatprep.mubr.bf16.mxu0 0
    %2662 = vmatmul.mubr.bf16.gmra.mrb[0].mxu0 %v2613
    %v2663 = vpop.f32.mrb[0].mxu0
    %v2664 = vadd.f32 %v2583, %v2663
    %v2665 = vpop.f32.mrb[0].mxu0
    %v2666 = vpop.f32.mrb[0].mxu0
    %v2667 = vadd.f32 %v2583, %v2666
    %v2668 = vpop.f32.mrb[0].mxu0
    %2669 = vmatprep.mubr.bf16.mxu0 0
    %2670 = vmatmul.mubr.bf16.gmra.mrb[0].mxu0 %v2616
    %v2671 = vpop.f32.mrb[0].mxu0
    %v2672 = vadd.f32 %v2583, %v2671
    %v2673 = vpop.f32.mrb[0].mxu0
    %v2674 = vpop.f32.mrb[0].mxu0
    %v2675 = vadd.f32 %v2583, %v2674
    %v2676 = vpop.f32.mrb[0].mxu0
    %2677 = vmatprep.mubr.bf16.mxu0 0
    %2678 = vmatmul.mubr.bf16.gmra.mrb[0].mxu0 %v2619
    %v2679 = vpop.f32.mrb[0].mxu0
    %v2680 = vadd.f32 %v2583, %v2679
    %v2681 = vpop.f32.mrb[0].mxu0
    %v2682 = vpop.f32.mrb[0].mxu0
    %v2683 = vadd.f32 %v2583, %v2682
    %v2684 = vpop.f32.mrb[0].mxu0
    %2685 = vdwg.mxu0
    %v2686 = vadd.f32 %v2449, %v2656
    %v2687 = vadd.f32 %v2450, %v2659
    %v2688 = vadd.f32 %v2451, %v2664
    %v2689 = vadd.f32 %v2452, %v2667
    %v2690 = vadd.f32 %v2453, %v2672
    %v2691 = vadd.f32 %v2454, %v2675
    %v2692 = vadd.f32 %v2455, %v2680
    %v2693 = vadd.f32 %v2456, %v2683
    %v2694 = vld [vmem:[%s11] sm:$0x1]
    %v2695 = vld [vmem:[%s12] sm:$0x1]
    %v2696 = vsel %vm325, %v2686, 0.0
    %2697 = vadd.xlane.f32.xlu0 %v2696
    %v2698 = vpop.xlane.xlu0 %2697
    %v2699 = vsel %vm325, %v2687, 0.0
    %2700 = vadd.xlane.f32.xlu0 %v2699
    %v2701 = vpop.xlane.xlu0 %2700
    %v2702 = vsel %vm325, %v2688, 0.0
    %2703 = vadd.xlane.f32.xlu0 %v2702
    %v2704 = vpop.xlane.xlu0 %2703
    %v2705 = vsel %vm325, %v2689, 0.0
    %2706 = vadd.xlane.f32.xlu0 %v2705
    %v2707 = vpop.xlane.xlu0 %2706
    %v2708 = vsel %vm325, %v2690, 0.0
    %2709 = vadd.xlane.f32.xlu0 %v2708
    %v2710 = vpop.xlane.xlu0 %2709
    %v2711 = vsel %vm325, %v2691, 0.0
    %2712 = vadd.xlane.f32.xlu0 %v2711
    %v2713 = vpop.xlane.xlu0 %2712
    %v2714 = vsel %vm325, %v2692, 0.0
    %2715 = vadd.xlane.f32.xlu0 %v2714
    %v2716 = vpop.xlane.xlu0 %2715
    %v2717 = vsel %vm325, %v2693, 0.0
    %2718 = vadd.xlane.f32.xlu0 %v2717
    %v2719 = vpop.xlane.xlu0 %2718
    %v2720 = vmul.f32 %v2698, %v2352
    %v2721 = vmul.f32 %v2701, %v2352
    %v2722 = vmul.f32 %v2704, %v2352
    %v2723 = vmul.f32 %v2707, %v2352
    %v2724 = vmul.f32 %v2710, %v2352
    %v2725 = vmul.f32 %v2713, %v2352
    %v2726 = vmul.f32 %v2716, %v2352
    %v2727 = vmul.f32 %v2719, %v2352
    %v2728 = vsub.f32 %v2686, %v2720
    %v2729 = vsub.f32 %v2687, %v2721
    %v2730 = vsub.f32 %v2688, %v2722
    %v2731 = vsub.f32 %v2689, %v2723
    %v2732 = vsub.f32 %v2690, %v2724
    %v2733 = vsub.f32 %v2691, %v2725
    %v2734 = vsub.f32 %v2692, %v2726
    %v2735 = vsub.f32 %v2693, %v2727
    %v2736 = vmul.f32 %v2728, %v2728
    %v2737 = vmul.f32 %v2729, %v2729
    %v2738 = vmul.f32 %v2730, %v2730
    %v2739 = vmul.f32 %v2731, %v2731
    %v2740 = vmul.f32 %v2732, %v2732
    %v2741 = vmul.f32 %v2733, %v2733
    %v2742 = vmul.f32 %v2734, %v2734
    %v2743 = vmul.f32 %v2735, %v2735
    %v2744 = vsel %vm325, %v2736, 0.0
    %2745 = vadd.xlane.f32.xlu0 %v2744
    %v2746 = vpop.xlane.xlu0 %2745
    %v2747 = vsel %vm325, %v2737, 0.0
    %2748 = vadd.xlane.f32.xlu0 %v2747
    %v2749 = vpop.xlane.xlu0 %2748
    %v2750 = vsel %vm325, %v2738, 0.0
    %2751 = vadd.xlane.f32.xlu0 %v2750
    %v2752 = vpop.xlane.xlu0 %2751
    %v2753 = vsel %vm325, %v2739, 0.0
    %2754 = vadd.xlane.f32.xlu0 %v2753
    %v2755 = vpop.xlane.xlu0 %2754
    %v2756 = vsel %vm325, %v2740, 0.0
    %2757 = vadd.xlane.f32.xlu0 %v2756
    %v2758 = vpop.xlane.xlu0 %2757
    %v2759 = vsel %vm325, %v2741, 0.0
    %2760 = vadd.xlane.f32.xlu0 %v2759
    %v2761 = vpop.xlane.xlu0 %2760
    %v2762 = vsel %vm325, %v2742, 0.0
    %2763 = vadd.xlane.f32.xlu0 %v2762
    %v2764 = vpop.xlane.xlu0 %2763
    %v2765 = vsel %vm325, %v2743, 0.0
    %2766 = vadd.xlane.f32.xlu0 %v2765
    %v2767 = vpop.xlane.xlu0 %2766
    %v2768 = vmul.f32 %v2746, %v2352
    %v2769 = vmul.f32 %v2749, %v2352
    %v2770 = vmul.f32 %v2752, %v2352
    %v2771 = vmul.f32 %v2755, %v2352
    %v2772 = vmul.f32 %v2758, %v2352
    %v2773 = vmul.f32 %v2761, %v2352
    %v2774 = vmul.f32 %v2764, %v2352
    %v2775 = vmul.f32 %v2767, %v2352
    %v2776 = vadd.f32 %v2768, 1e-05
    %v2777 = vadd.f32 %v2769, 1e-05
    %v2778 = vadd.f32 %v2770, 1e-05
    %v2779 = vadd.f32 %v2771, 1e-05
    %v2780 = vadd.f32 %v2772, 1e-05
    %v2781 = vadd.f32 %v2773, 1e-05
    %v2782 = vadd.f32 %v2774, 1e-05
    %v2783 = vadd.f32 %v2775, 1e-05
    %v2784 = vrsqrt.pop %v2776
    %v2785 = vrsqrt.pop %v2777
    %v2786 = vrsqrt.pop %v2778
    %v2787 = vrsqrt.pop %v2779
    %v2788 = vrsqrt.pop %v2780
    %v2789 = vrsqrt.pop %v2781
    %v2790 = vrsqrt.pop %v2782
    %v2791 = vrsqrt.pop %v2783
    %v2792 = vmul.f32 %v2728, %v2784
    %v2793 = vmul.f32 %v2729, %v2785
    %v2794 = vmul.f32 %v2730, %v2786
    %v2795 = vmul.f32 %v2731, %v2787
    %v2796 = vmul.f32 %v2732, %v2788
    %v2797 = vmul.f32 %v2733, %v2789
    %v2798 = vmul.f32 %v2734, %v2790
    %v2799 = vmul.f32 %v2735, %v2791
    %v2800 = vlaneseq
    %v2801 = vshrl.u32 %v2800, 7
    %v2802 = vsub.s32 0, %v2801
    %v2803 = vrot.slane %v2694, %v2802
    %v2804 = vmul.f32 %v2792, %v2803
    %v2805 = vmul.f32 %v2793, %v2803
    %v2806 = vmul.f32 %v2794, %v2803
    %v2807 = vmul.f32 %v2795, %v2803
    %v2808 = vmul.f32 %v2796, %v2803
    %v2809 = vmul.f32 %v2797, %v2803
    %v2810 = vmul.f32 %v2798, %v2803
    %v2811 = vmul.f32 %v2799, %v2803
    %v2812 = vlaneseq
    %v2813 = vshrl.u32 %v2812, 7
    %v2814 = vsub.s32 0, %v2813
    %v2815 = vrot.slane %v2695, %v2814
    %v2816 = vadd.f32 %v2804, %v2815
    %v2817 = vadd.f32 %v2805, %v2815
    %v2818 = vadd.f32 %v2806, %v2815
    %v2819 = vadd.f32 %v2807, %v2815
    %v2820 = vadd.f32 %v2808, %v2815
    %v2821 = vadd.f32 %v2809, %v2815
    %v2822 = vadd.f32 %v2810, %v2815
    %v2823 = vadd.f32 %v2811, %v2815
    %v2824 = vpack.c.bf16 %v2817, %v2816
    %v2825 = vpack.c.bf16 %v2819, %v2818
    %v2826 = vpack.c.bf16 %v2821, %v2820
    %v2827 = vpack.c.bf16 %v2823, %v2822
    %s2828 = scalar_lea.vmem %s3, 16
    %v2829 = vld [vmem:[%s2828] sm:$0xf]
    %v2830 = vld [vmem:[%s2828 + $0x4] sm:$0xf]
    %v2831 = vld [vmem:[%s2828 + $0x8] sm:$0xf]
    %v2832 = vld [vmem:[%s2828 + $0xc] sm:$0xf]
    %v2837 = vunpack.c.l.b16 %v2829
    %v2838 = vunpack.c.l.b16 %v2830
    %v2839 = vunpack.c.l.b16 %v2831
    %v2840 = vunpack.c.l.b16 %v2832
    %v2841 = vpack.c.b16 %v2838, %v2837
    %v2842 = vpack.c.b16 %v2840, %v2839
    %v2846 = vsel %vm325, %v2824, 0
    %v2849 = vsel %vm325, %v2825, 0
    %v2852 = vsel %vm325, %v2826, 0
    %v2855 = vsel %vm325, %v2827, 0
    %2857 = vmatprep.subr.bf16.mxu0 0
    %2858 = vmatpush1.bf16.msra.mxu0 %v2841
    %2859 = vmatprep.subr.bf16.mxu0 0
    %2860 = vmatpush1.bf16.msra.mxu0 %v2842
    %2861 = vmatprep.subr.bf16.mxu0 0
    %2862 = vmatpush1.bf16.msra.mxu0 0
    %2863 = vmatprep.subr.bf16.mxu0 0
    %2864 = vmatpush1.bf16.msra.mxu0 0
    %2865 = vmatprep.subr.bf16.mxu0 0
    %2866 = vmatpush1.bf16.msra.mxu0 0
    %2867 = vmatprep.subr.bf16.mxu0 0
    %2868 = vmatpush1.bf16.msra.mxu0 0
    %2869 = vmatprep.subr.bf16.mxu0 0
    %2870 = vmatpush1.bf16.msra.mxu0 0
    %2871 = vmatprep.subr.bf16.mxu0 0
    %2872 = vmatpush1.bf16.msra.mxu0 0
    %2873 = vmatprep.subr.bf16.mxu0 0
    %2874 = vmatpush1.bf16.msra.mxu0 0
    %2875 = vmatprep.subr.bf16.mxu0 0
    %2876 = vmatpush1.bf16.msra.mxu0 0
    %2877 = vmatprep.subr.bf16.mxu0 0
    %2878 = vmatpush1.bf16.msra.mxu0 0
    %2879 = vmatprep.subr.bf16.mxu0 0
    %2880 = vmatpush1.bf16.msra.mxu0 0
    %2881 = vmatprep.subr.bf16.mxu0 0
    %2882 = vmatpush1.bf16.msra.mxu0 0
    %2883 = vmatprep.subr.bf16.mxu0 0
    %2884 = vmatpush1.bf16.msra.mxu0 0
    %2885 = vmatprep.subr.bf16.mxu0 0
    %2886 = vmatpush1.bf16.msra.mxu0 0
    %2887 = vmatprep.subr.bf16.mxu0 0
    %2888 = vmatpush1.bf16.msra.mxu0 0
    %2889 = vmatprep.mubr.bf16.mxu0 0
    %2890 = vmatmul.mubr.bf16.gmra.mrb[0].mxu0 %v2846
    %v2891 = vpop.f32.mrb[0].mxu0
    %v2892 = vadd.f32 0.0, %v2891
    %v2893 = vpop.f32.mrb[0].mxu0
    %v2894 = vpop.f32.mrb[0].mxu0
    %v2895 = vadd.f32 0.0, %v2894
    %v2896 = vpop.f32.mrb[0].mxu0
    %2897 = vmatprep.mubr.bf16.mxu0 0
    %2898 = vmatmul.mubr.bf16.gmra.mrb[0].mxu0 %v2849
    %v2899 = vpop.f32.mrb[0].mxu0
    %v2900 = vadd.f32 0.0, %v2899
    %v2901 = vpop.f32.mrb[0].mxu0
    %v2902 = vpop.f32.mrb[0].mxu0
    %v2903 = vadd.f32 0.0, %v2902
    %v2904 = vpop.f32.mrb[0].mxu0
    %2905 = vmatprep.mubr.bf16.mxu0 0
    %2906 = vmatmul.mubr.bf16.gmra.mrb[0].mxu0 %v2852
    %v2907 = vpop.f32.mrb[0].mxu0
    %v2908 = vadd.f32 0.0, %v2907
    %v2909 = vpop.f32.mrb[0].mxu0
    %v2910 = vpop.f32.mrb[0].mxu0
    %v2911 = vadd.f32 0.0, %v2910
    %v2912 = vpop.f32.mrb[0].mxu0
    %2913 = vmatprep.mubr.bf16.mxu0 0
    %2914 = vmatmul.mubr.bf16.gmra.mrb[0].mxu0 %v2855
    %v2915 = vpop.f32.mrb[0].mxu0
    %v2916 = vadd.f32 0.0, %v2915
    %v2917 = vpop.f32.mrb[0].mxu0
    %v2918 = vpop.f32.mrb[0].mxu0
    %v2919 = vadd.f32 0.0, %v2918
    %v2920 = vpop.f32.mrb[0].mxu0
    %2921 = vdwg.mxu0
    %v2922 = vpack.c.bf16 %v2892, %v2892
    %v2923 = vpack.c.bf16 %v2895, %v2895
    %v2924 = vpack.c.bf16 %v2900, %v2900
    %v2925 = vpack.c.bf16 %v2903, %v2903
    %v2926 = vpack.c.bf16 %v2908, %v2908
    %v2927 = vpack.c.bf16 %v2911, %v2911
    %v2928 = vpack.c.bf16 %v2916, %v2916
    %v2929 = vpack.c.bf16 %v2919, %v2919
    %2931 = vrot.lane.b32.xlu0 %v2922, 96
    %v2932 = vpop.permute.xlu0 %2931
    %v2934 = vsel %vm414, %v2922, 0
    %v2937 = vsel %vm414, %v2932, 0
    %2939 = vmatprep.subr.bf16.mxu0 0
    %2940 = vmatpush1.bf16.xpose.msra.mxu0 %v2937
    %2941 = vmatprep.subr.bf16.mxu0 0
    %2942 = vmatpush1.bf16.xpose.msra.mxu0 0
    %2943 = vmatprep.subr.bf16.mxu0 0
    %2944 = vmatpush1.bf16.xpose.msra.mxu0 0
    %2945 = vmatprep.subr.bf16.mxu0 0
    %2946 = vmatpush1.bf16.xpose.msra.mxu0 0
    %2947 = vmatprep.subr.bf16.mxu0 0
    %2948 = vmatpush1.bf16.xpose.msra.mxu0 0
    %2949 = vmatprep.subr.bf16.mxu0 0
    %2950 = vmatpush1.bf16.xpose.msra.mxu0 0
    %2951 = vmatprep.subr.bf16.mxu0 0
    %2952 = vmatpush1.bf16.xpose.msra.mxu0 0
    %2953 = vmatprep.subr.bf16.mxu0 0
    %2954 = vmatpush1.bf16.xpose.msra.mxu0 0
    %2955 = vmatprep.subr.bf16.mxu0 0
    %2956 = vmatpush1.bf16.xpose.msra.mxu0 0
    %2957 = vmatprep.subr.bf16.mxu0 0
    %2958 = vmatpush1.bf16.xpose.msra.mxu0 0
    %2959 = vmatprep.subr.bf16.mxu0 0
    %2960 = vmatpush1.bf16.xpose.msra.mxu0 0
    %2961 = vmatprep.subr.bf16.mxu0 0
    %2962 = vmatpush1.bf16.xpose.msra.mxu0 0
    %2963 = vmatprep.subr.bf16.mxu0 0
    %2964 = vmatpush1.bf16.xpose.msra.mxu0 0
    %2965 = vmatprep.subr.bf16.mxu0 0
    %2966 = vmatpush1.bf16.xpose.msra.mxu0 0
    %2967 = vmatprep.subr.bf16.mxu0 0
    %2968 = vmatpush1.bf16.xpose.msra.mxu0 0
    %2969 = vmatprep.subr.bf16.mxu0 0
    %2970 = vmatpush1.bf16.xpose.msra.mxu0 0
    %2971 = vmatprep.mubr.bf16.mxu0 0
    %2972 = vmatmul.mubr.bf16.gmra.mrb[0].mxu0 %v2934
    %v2973 = vpop.f32.mrb[0].mxu0
    %v2974 = vadd.f32 0.0, %v2973
    %v2975 = vpop.f32.mrb[0].mxu0
    %v2976 = vpop.f32.mrb[0].mxu0
    %v2977 = vpop.f32.mrb[0].mxu0
    %2978 = vdwg.mxu0
    %2980 = vrot.lane.b32.xlu0 %v2923, 96
    %v2981 = vpop.permute.xlu0 %2980
    %v2983 = vsel %vm414, %v2923, 0
    %v2986 = vsel %vm414, %v2981, 0
    %2988 = vmatprep.subr.bf16.mxu0 0
    %2989 = vmatpush1.bf16.xpose.msra.mxu0 %v2986
    %2990 = vmatprep.subr.bf16.mxu0 0
    %2991 = vmatpush1.bf16.xpose.msra.mxu0 0
    %2992 = vmatprep.subr.bf16.mxu0 0
    %2993 = vmatpush1.bf16.xpose.msra.mxu0 0
    %2994 = vmatprep.subr.bf16.mxu0 0
    %2995 = vmatpush1.bf16.xpose.msra.mxu0 0
    %2996 = vmatprep.subr.bf16.mxu0 0
    %2997 = vmatpush1.bf16.xpose.msra.mxu0 0
    %2998 = vmatprep.subr.bf16.mxu0 0
    %2999 = vmatpush1.bf16.xpose.msra.mxu0 0
    %3000 = vmatprep.subr.bf16.mxu0 0
    %3001 = vmatpush1.bf16.xpose.msra.mxu0 0
    %3002 = vmatprep.subr.bf16.mxu0 0
    %3003 = vmatpush1.bf16.xpose.msra.mxu0 0
    %3004 = vmatprep.subr.bf16.mxu0 0
    %3005 = vmatpush1.bf16.xpose.msra.mxu0 0
    %3006 = vmatprep.subr.bf16.mxu0 0
    %3007 = vmatpush1.bf16.xpose.msra.mxu0 0
    %3008 = vmatprep.subr.bf16.mxu0 0
    %3009 = vmatpush1.bf16.xpose.msra.mxu0 0
    %3010 = vmatprep.subr.bf16.mxu0 0
    %3011 = vmatpush1.bf16.xpose.msra.mxu0 0
    %3012 = vmatprep.subr.bf16.mxu0 0
    %3013 = vmatpush1.bf16.xpose.msra.mxu0 0
    %3014 = vmatprep.subr.bf16.mxu0 0
    %3015 = vmatpush1.bf16.xpose.msra.mxu0 0
    %3016 = vmatprep.subr.bf16.mxu0 0
    %3017 = vmatpush1.bf16.xpose.msra.mxu0 0
    %3018 = vmatprep.subr.bf16.mxu0 0
    %3019 = vmatpush1.bf16.xpose.msra.mxu0 0
    %3020 = vmatprep.mubr.bf16.mxu0 0
    %3021 = vmatmul.mubr.bf16.gmra.mrb[0].mxu0 %v2983
    %v3022 = vpop.f32.mrb[0].mxu0
    %v3023 = vadd.f32 0.0, %v3022
    %v3024 = vpop.f32.mrb[0].mxu0
    %v3025 = vpop.f32.mrb[0].mxu0
    %v3026 = vpop.f32.mrb[0].mxu0
    %3027 = vdwg.mxu0
    %3029 = vrot.lane.b32.xlu0 %v2924, 96
    %v3030 = vpop.permute.xlu0 %3029
    %v3032 = vsel %vm414, %v2924, 0
    %v3035 = vsel %vm414, %v3030, 0
    %3037 = vmatprep.subr.bf16.mxu0 0
    %3038 = vmatpush1.bf16.xpose.msra.mxu0 %v3035
    %3039 = vmatprep.subr.bf16.mxu0 0
    %3040 = vmatpush1.bf16.xpose.msra.mxu0 0
    %3041 = vmatprep.subr.bf16.mxu0 0
    %3042 = vmatpush1.bf16.xpose.msra.mxu0 0
    %3043 = vmatprep.subr.bf16.mxu0 0
    %3044 = vmatpush1.bf16.xpose.msra.mxu0 0
    %3045 = vmatprep.subr.bf16.mxu0 0
    %3046 = vmatpush1.bf16.xpose.msra.mxu0 0
    %3047 = vmatprep.subr.bf16.mxu0 0
    %3048 = vmatpush1.bf16.xpose.msra.mxu0 0
    %3049 = vmatprep.subr.bf16.mxu0 0
    %3050 = vmatpush1.bf16.xpose.msra.mxu0 0
    %3051 = vmatprep.subr.bf16.mxu0 0
    %3052 = vmatpush1.bf16.xpose.msra.mxu0 0
    %3053 = vmatprep.subr.bf16.mxu0 0
    %3054 = vmatpush1.bf16.xpose.msra.mxu0 0
    %3055 = vmatprep.subr.bf16.mxu0 0
    %3056 = vmatpush1.bf16.xpose.msra.mxu0 0
    %3057 = vmatprep.subr.bf16.mxu0 0
    %3058 = vmatpush1.bf16.xpose.msra.mxu0 0
    %3059 = vmatprep.subr.bf16.mxu0 0
    %3060 = vmatpush1.bf16.xpose.msra.mxu0 0
    %3061 = vmatprep.subr.bf16.mxu0 0
    %3062 = vmatpush1.bf16.xpose.msra.mxu0 0
    %3063 = vmatprep.subr.bf16.mxu0 0
    %3064 = vmatpush1.bf16.xpose.msra.mxu0 0
    %3065 = vmatprep.subr.bf16.mxu0 0
    %3066 = vmatpush1.bf16.xpose.msra.mxu0 0
    %3067 = vmatprep.subr.bf16.mxu0 0
    %3068 = vmatpush1.bf16.xpose.msra.mxu0 0
    %3069 = vmatprep.mubr.bf16.mxu0 0
    %3070 = vmatmul.mubr.bf16.gmra.mrb[0].mxu0 %v3032
    %v3071 = vpop.f32.mrb[0].mxu0
    %v3072 = vadd.f32 0.0, %v3071
    %v3073 = vpop.f32.mrb[0].mxu0
    %v3074 = vpop.f32.mrb[0].mxu0
    %v3075 = vpop.f32.mrb[0].mxu0
    %3076 = vdwg.mxu0
    %3078 = vrot.lane.b32.xlu0 %v2925, 96
    %v3079 = vpop.permute.xlu0 %3078
    %v3081 = vsel %vm414, %v2925, 0
    %v3084 = vsel %vm414, %v3079, 0
    %3086 = vmatprep.subr.bf16.mxu0 0
    %3087 = vmatpush1.bf16.xpose.msra.mxu0 %v3084
    %3088 = vmatprep.subr.bf16.mxu0 0
    %3089 = vmatpush1.bf16.xpose.msra.mxu0 0
    %3090 = vmatprep.subr.bf16.mxu0 0
    %3091 = vmatpush1.bf16.xpose.msra.mxu0 0
    %3092 = vmatprep.subr.bf16.mxu0 0
    %3093 = vmatpush1.bf16.xpose.msra.mxu0 0
    %3094 = vmatprep.subr.bf16.mxu0 0
    %3095 = vmatpush1.bf16.xpose.msra.mxu0 0
    %3096 = vmatprep.subr.bf16.mxu0 0
    %3097 = vmatpush1.bf16.xpose.msra.mxu0 0
    %3098 = vmatprep.subr.bf16.mxu0 0
    %3099 = vmatpush1.bf16.xpose.msra.mxu0 0
    %3100 = vmatprep.subr.bf16.mxu0 0
    %3101 = vmatpush1.bf16.xpose.msra.mxu0 0
    %3102 = vmatprep.subr.bf16.mxu0 0
    %3103 = vmatpush1.bf16.xpose.msra.mxu0 0
    %3104 = vmatprep.subr.bf16.mxu0 0
    %3105 = vmatpush1.bf16.xpose.msra.mxu0 0
    %3106 = vmatprep.subr.bf16.mxu0 0
    %3107 = vmatpush1.bf16.xpose.msra.mxu0 0
    %3108 = vmatprep.subr.bf16.mxu0 0
    %3109 = vmatpush1.bf16.xpose.msra.mxu0 0
    %3110 = vmatprep.subr.bf16.mxu0 0
    %3111 = vmatpush1.bf16.xpose.msra.mxu0 0
    %3112 = vmatprep.subr.bf16.mxu0 0
    %3113 = vmatpush1.bf16.xpose.msra.mxu0 0
    %3114 = vmatprep.subr.bf16.mxu0 0
    %3115 = vmatpush1.bf16.xpose.msra.mxu0 0
    %3116 = vmatprep.subr.bf16.mxu0 0
    %3117 = vmatpush1.bf16.xpose.msra.mxu0 0
    %3118 = vmatprep.mubr.bf16.mxu0 0
    %3119 = vmatmul.mubr.bf16.gmra.mrb[0].mxu0 %v3081
    %v3120 = vpop.f32.mrb[0].mxu0
    %v3121 = vadd.f32 0.0, %v3120
    %v3122 = vpop.f32.mrb[0].mxu0
    %v3123 = vpop.f32.mrb[0].mxu0
    %v3124 = vpop.f32.mrb[0].mxu0
    %3125 = vdwg.mxu0
    %3127 = vrot.lane.b32.xlu0 %v2926, 96
    %v3128 = vpop.permute.xlu0 %3127
    %v3130 = vsel %vm414, %v2926, 0
    %v3133 = vsel %vm414, %v3128, 0
    %3135 = vmatprep.subr.bf16.mxu0 0
    %3136 = vmatpush1.bf16.xpose.msra.mxu0 %v3133
    %3137 = vmatprep.subr.bf16.mxu0 0
    %3138 = vmatpush1.bf16.xpose.msra.mxu0 0
    %3139 = vmatprep.subr.bf16.mxu0 0
    %3140 = vmatpush1.bf16.xpose.msra.mxu0 0
    %3141 = vmatprep.subr.bf16.mxu0 0
    %3142 = vmatpush1.bf16.xpose.msra.mxu0 0
    %3143 = vmatprep.subr.bf16.mxu0 0
    %3144 = vmatpush1.bf16.xpose.msra.mxu0 0
    %3145 = vmatprep.subr.bf16.mxu0 0
    %3146 = vmatpush1.bf16.xpose.msra.mxu0 0
    %3147 = vmatprep.subr.bf16.mxu0 0
    %3148 = vmatpush1.bf16.xpose.msra.mxu0 0
    %3149 = vmatprep.subr.bf16.mxu0 0
    %3150 = vmatpush1.bf16.xpose.msra.mxu0 0
    %3151 = vmatprep.subr.bf16.mxu0 0
    %3152 = vmatpush1.bf16.xpose.msra.mxu0 0
    %3153 = vmatprep.subr.bf16.mxu0 0
    %3154 = vmatpush1.bf16.xpose.msra.mxu0 0
    %3155 = vmatprep.subr.bf16.mxu0 0
    %3156 = vmatpush1.bf16.xpose.msra.mxu0 0
    %3157 = vmatprep.subr.bf16.mxu0 0
    %3158 = vmatpush1.bf16.xpose.msra.mxu0 0
    %3159 = vmatprep.subr.bf16.mxu0 0
    %3160 = vmatpush1.bf16.xpose.msra.mxu0 0
    %3161 = vmatprep.subr.bf16.mxu0 0
    %3162 = vmatpush1.bf16.xpose.msra.mxu0 0
    %3163 = vmatprep.subr.bf16.mxu0 0
    %3164 = vmatpush1.bf16.xpose.msra.mxu0 0
    %3165 = vmatprep.subr.bf16.mxu0 0
    %3166 = vmatpush1.bf16.xpose.msra.mxu0 0
    %3167 = vmatprep.mubr.bf16.mxu0 0
    %3168 = vmatmul.mubr.bf16.gmra.mrb[0].mxu0 %v3130
    %v3169 = vpop.f32.mrb[0].mxu0
    %v3170 = vadd.f32 0.0, %v3169
    %v3171 = vpop.f32.mrb[0].mxu0
    %v3172 = vpop.f32.mrb[0].mxu0
    %v3173 = vpop.f32.mrb[0].mxu0
    %3174 = vdwg.mxu0
    %3176 = vrot.lane.b32.xlu0 %v2927, 96
    %v3177 = vpop.permute.xlu0 %3176
    %v3179 = vsel %vm414, %v2927, 0
    %v3182 = vsel %vm414, %v3177, 0
    %3184 = vmatprep.subr.bf16.mxu0 0
    %3185 = vmatpush1.bf16.xpose.msra.mxu0 %v3182
    %3186 = vmatprep.subr.bf16.mxu0 0
    %3187 = vmatpush1.bf16.xpose.msra.mxu0 0
    %3188 = vmatprep.subr.bf16.mxu0 0
    %3189 = vmatpush1.bf16.xpose.msra.mxu0 0
    %3190 = vmatprep.subr.bf16.mxu0 0
    %3191 = vmatpush1.bf16.xpose.msra.mxu0 0
    %3192 = vmatprep.subr.bf16.mxu0 0
    %3193 = vmatpush1.bf16.xpose.msra.mxu0 0
    %3194 = vmatprep.subr.bf16.mxu0 0
    %3195 = vmatpush1.bf16.xpose.msra.mxu0 0
    %3196 = vmatprep.subr.bf16.mxu0 0
    %3197 = vmatpush1.bf16.xpose.msra.mxu0 0
    %3198 = vmatprep.subr.bf16.mxu0 0
    %3199 = vmatpush1.bf16.xpose.msra.mxu0 0
    %3200 = vmatprep.subr.bf16.mxu0 0
    %3201 = vmatpush1.bf16.xpose.msra.mxu0 0
    %3202 = vmatprep.subr.bf16.mxu0 0
    %3203 = vmatpush1.bf16.xpose.msra.mxu0 0
    %3204 = vmatprep.subr.bf16.mxu0 0
    %3205 = vmatpush1.bf16.xpose.msra.mxu0 0
    %3206 = vmatprep.subr.bf16.mxu0 0
    %3207 = vmatpush1.bf16.xpose.msra.mxu0 0
    %3208 = vmatprep.subr.bf16.mxu0 0
    %3209 = vmatpush1.bf16.xpose.msra.mxu0 0
    %3210 = vmatprep.subr.bf16.mxu0 0
    %3211 = vmatpush1.bf16.xpose.msra.mxu0 0
    %3212 = vmatprep.subr.bf16.mxu0 0
    %3213 = vmatpush1.bf16.xpose.msra.mxu0 0
    %3214 = vmatprep.subr.bf16.mxu0 0
    %3215 = vmatpush1.bf16.xpose.msra.mxu0 0
    %3216 = vmatprep.mubr.bf16.mxu0 0
    %3217 = vmatmul.mubr.bf16.gmra.mrb[0].mxu0 %v3179
    %v3218 = vpop.f32.mrb[0].mxu0
    %v3219 = vadd.f32 0.0, %v3218
    %v3220 = vpop.f32.mrb[0].mxu0
    %v3221 = vpop.f32.mrb[0].mxu0
    %v3222 = vpop.f32.mrb[0].mxu0
    %3223 = vdwg.mxu0
    %3225 = vrot.lane.b32.xlu0 %v2928, 96
    %v3226 = vpop.permute.xlu0 %3225
    %v3228 = vsel %vm414, %v2928, 0
    %v3231 = vsel %vm414, %v3226, 0
    %3233 = vmatprep.subr.bf16.mxu0 0
    %3234 = vmatpush1.bf16.xpose.msra.mxu0 %v3231
    %3235 = vmatprep.subr.bf16.mxu0 0
    %3236 = vmatpush1.bf16.xpose.msra.mxu0 0
    %3237 = vmatprep.subr.bf16.mxu0 0
    %3238 = vmatpush1.bf16.xpose.msra.mxu0 0
    %3239 = vmatprep.subr.bf16.mxu0 0
    %3240 = vmatpush1.bf16.xpose.msra.mxu0 0
    %3241 = vmatprep.subr.bf16.mxu0 0
    %3242 = vmatpush1.bf16.xpose.msra.mxu0 0
    %3243 = vmatprep.subr.bf16.mxu0 0
    %3244 = vmatpush1.bf16.xpose.msra.mxu0 0
    %3245 = vmatprep.subr.bf16.mxu0 0
    %3246 = vmatpush1.bf16.xpose.msra.mxu0 0
    %3247 = vmatprep.subr.bf16.mxu0 0
    %3248 = vmatpush1.bf16.xpose.msra.mxu0 0
    %3249 = vmatprep.subr.bf16.mxu0 0
    %3250 = vmatpush1.bf16.xpose.msra.mxu0 0
    %3251 = vmatprep.subr.bf16.mxu0 0
    %3252 = vmatpush1.bf16.xpose.msra.mxu0 0
    %3253 = vmatprep.subr.bf16.mxu0 0
    %3254 = vmatpush1.bf16.xpose.msra.mxu0 0
    %3255 = vmatprep.subr.bf16.mxu0 0
    %3256 = vmatpush1.bf16.xpose.msra.mxu0 0
    %3257 = vmatprep.subr.bf16.mxu0 0
    %3258 = vmatpush1.bf16.xpose.msra.mxu0 0
    %3259 = vmatprep.subr.bf16.mxu0 0
    %3260 = vmatpush1.bf16.xpose.msra.mxu0 0
    %3261 = vmatprep.subr.bf16.mxu0 0
    %3262 = vmatpush1.bf16.xpose.msra.mxu0 0
    %3263 = vmatprep.subr.bf16.mxu0 0
    %3264 = vmatpush1.bf16.xpose.msra.mxu0 0
    %3265 = vmatprep.mubr.bf16.mxu0 0
    %3266 = vmatmul.mubr.bf16.gmra.mrb[0].mxu0 %v3228
    %v3267 = vpop.f32.mrb[0].mxu0
    %v3268 = vadd.f32 0.0, %v3267
    %v3269 = vpop.f32.mrb[0].mxu0
    %v3270 = vpop.f32.mrb[0].mxu0
    %v3271 = vpop.f32.mrb[0].mxu0
    %3272 = vdwg.mxu0
    %3274 = vrot.lane.b32.xlu0 %v2929, 96
    %v3275 = vpop.permute.xlu0 %3274
    %v3277 = vsel %vm414, %v2929, 0
    %v3280 = vsel %vm414, %v3275, 0
    %3282 = vmatprep.subr.bf16.mxu0 0
    %3283 = vmatpush1.bf16.xpose.msra.mxu0 %v3280
    %3284 = vmatprep.subr.bf16.mxu0 0
    %3285 = vmatpush1.bf16.xpose.msra.mxu0 0
    %3286 = vmatprep.subr.bf16.mxu0 0
    %3287 = vmatpush1.bf16.xpose.msra.mxu0 0
    %3288 = vmatprep.subr.bf16.mxu0 0
    %3289 = vmatpush1.bf16.xpose.msra.mxu0 0
    %3290 = vmatprep.subr.bf16.mxu0 0
    %3291 = vmatpush1.bf16.xpose.msra.mxu0 0
    %3292 = vmatprep.subr.bf16.mxu0 0
    %3293 = vmatpush1.bf16.xpose.msra.mxu0 0
    %3294 = vmatprep.subr.bf16.mxu0 0
    %3295 = vmatpush1.bf16.xpose.msra.mxu0 0
    %3296 = vmatprep.subr.bf16.mxu0 0
    %3297 = vmatpush1.bf16.xpose.msra.mxu0 0
    %3298 = vmatprep.subr.bf16.mxu0 0
    %3299 = vmatpush1.bf16.xpose.msra.mxu0 0
    %3300 = vmatprep.subr.bf16.mxu0 0
    %3301 = vmatpush1.bf16.xpose.msra.mxu0 0
    %3302 = vmatprep.subr.bf16.mxu0 0
    %3303 = vmatpush1.bf16.xpose.msra.mxu0 0
    %3304 = vmatprep.subr.bf16.mxu0 0
    %3305 = vmatpush1.bf16.xpose.msra.mxu0 0
    %3306 = vmatprep.subr.bf16.mxu0 0
    %3307 = vmatpush1.bf16.xpose.msra.mxu0 0
    %3308 = vmatprep.subr.bf16.mxu0 0
    %3309 = vmatpush1.bf16.xpose.msra.mxu0 0
    %3310 = vmatprep.subr.bf16.mxu0 0
    %3311 = vmatpush1.bf16.xpose.msra.mxu0 0
    %3312 = vmatprep.subr.bf16.mxu0 0
    %3313 = vmatpush1.bf16.xpose.msra.mxu0 0
    %3314 = vmatprep.mubr.bf16.mxu0 0
    %3315 = vmatmul.mubr.bf16.gmra.mrb[0].mxu0 %v3277
    %v3316 = vpop.f32.mrb[0].mxu0
    %v3317 = vadd.f32 0.0, %v3316
    %v3318 = vpop.f32.mrb[0].mxu0
    %v3319 = vpop.f32.mrb[0].mxu0
    %v3320 = vpop.f32.mrb[0].mxu0
    %3321 = vdwg.mxu0
    %v3322 = vmul.f32 %v2974, 0.25
    %v3323 = vmul.f32 %v3023, 0.25
    %v3324 = vmul.f32 %v3072, 0.25
    %v3325 = vmul.f32 %v3121, 0.25
    %v3326 = vmul.f32 %v3170, 0.25
    %v3327 = vmul.f32 %v3219, 0.25
    %v3328 = vmul.f32 %v3268, 0.25
    %v3329 = vmul.f32 %v3317, 0.25
    %v3330 = vsel %vm194, %v3322, -inf
    %3331 = vmax.xlane.f32.xlu0 %v3330
    %v3332 = vpop.xlane.xlu0 %3331
    %v3333 = vsel %vm194, %v3323, -inf
    %3334 = vmax.xlane.f32.xlu0 %v3333
    %v3335 = vpop.xlane.xlu0 %3334
    %v3336 = vsel %vm194, %v3324, -inf
    %3337 = vmax.xlane.f32.xlu0 %v3336
    %v3338 = vpop.xlane.xlu0 %3337
    %v3339 = vsel %vm194, %v3325, -inf
    %3340 = vmax.xlane.f32.xlu0 %v3339
    %v3341 = vpop.xlane.xlu0 %3340
    %v3342 = vsel %vm194, %v3326, -inf
    %3343 = vmax.xlane.f32.xlu0 %v3342
    %v3344 = vpop.xlane.xlu0 %3343
    %v3345 = vsel %vm194, %v3327, -inf
    %3346 = vmax.xlane.f32.xlu0 %v3345
    %v3347 = vpop.xlane.xlu0 %3346
    %v3348 = vsel %vm194, %v3328, -inf
    %3349 = vmax.xlane.f32.xlu0 %v3348
    %v3350 = vpop.xlane.xlu0 %3349
    %v3351 = vsel %vm194, %v3329, -inf
    %3352 = vmax.xlane.f32.xlu0 %v3351
    %v3353 = vpop.xlane.xlu0 %3352
    %v3354 = vsub.f32 %v3322, %v3332
    %v3355 = vsub.f32 %v3323, %v3335
    %v3356 = vsub.f32 %v3324, %v3338
    %v3357 = vsub.f32 %v3325, %v3341
    %v3358 = vsub.f32 %v3326, %v3344
    %v3359 = vsub.f32 %v3327, %v3347
    %v3360 = vsub.f32 %v3328, %v3350
    %v3361 = vsub.f32 %v3329, %v3353
    %v3362 = vmul.f32 %v3354, 1.442695
    %v3363 = vpow.pop %v3362
    %v3364 = vmul.f32 %v3355, 1.442695
    %v3365 = vpow.pop %v3364
    %v3366 = vmul.f32 %v3356, 1.442695
    %v3367 = vpow.pop %v3366
    %v3368 = vmul.f32 %v3357, 1.442695
    %v3369 = vpow.pop %v3368
    %v3370 = vmul.f32 %v3358, 1.442695
    %v3371 = vpow.pop %v3370
    %v3372 = vmul.f32 %v3359, 1.442695
    %v3373 = vpow.pop %v3372
    %v3374 = vmul.f32 %v3360, 1.442695
    %v3375 = vpow.pop %v3374
    %v3376 = vmul.f32 %v3361, 1.442695
    %v3377 = vpow.pop %v3376
    %v3378 = vsel %vm194, %v3363, 0.0
    %3379 = vadd.xlane.f32.xlu0 %v3378
    %v3380 = vpop.xlane.xlu0 %3379
    %v3381 = vsel %vm194, %v3365, 0.0
    %3382 = vadd.xlane.f32.xlu0 %v3381
    %v3383 = vpop.xlane.xlu0 %3382
    %v3384 = vsel %vm194, %v3367, 0.0
    %3385 = vadd.xlane.f32.xlu0 %v3384
    %v3386 = vpop.xlane.xlu0 %3385
    %v3387 = vsel %vm194, %v3369, 0.0
    %3388 = vadd.xlane.f32.xlu0 %v3387
    %v3389 = vpop.xlane.xlu0 %3388
    %v3390 = vsel %vm194, %v3371, 0.0
    %3391 = vadd.xlane.f32.xlu0 %v3390
    %v3392 = vpop.xlane.xlu0 %3391
    %v3393 = vsel %vm194, %v3373, 0.0
    %3394 = vadd.xlane.f32.xlu0 %v3393
    %v3395 = vpop.xlane.xlu0 %3394
    %v3396 = vsel %vm194, %v3375, 0.0
    %3397 = vadd.xlane.f32.xlu0 %v3396
    %v3398 = vpop.xlane.xlu0 %3397
    %v3399 = vsel %vm194, %v3377, 0.0
    %3400 = vadd.xlane.f32.xlu0 %v3399
    %v3401 = vpop.xlane.xlu0 %3400
    %v3402 = vrcp.pop %v3380
    %v3403 = vrcp.pop %v3383
    %v3404 = vrcp.pop %v3386
    %v3405 = vrcp.pop %v3389
    %v3406 = vrcp.pop %v3392
    %v3407 = vrcp.pop %v3395
    %v3408 = vrcp.pop %v3398
    %v3409 = vrcp.pop %v3401
    %v3410 = vmul.f32 %v3363, %v3402
    %v3411 = vmul.f32 %v3365, %v3403
    %v3412 = vmul.f32 %v3367, %v3404
    %v3413 = vmul.f32 %v3369, %v3405
    %v3414 = vmul.f32 %v3371, %v3406
    %v3415 = vmul.f32 %v3373, %v3407
    %v3416 = vmul.f32 %v3375, %v3408
    %v3417 = vmul.f32 %v3377, %v3409
    %v3418 = vpack.c.bf16 %v3410, %v3410
    %v3419 = vpack.c.bf16 %v3411, %v3411
    %v3420 = vpack.c.bf16 %v3412, %v3412
    %v3421 = vpack.c.bf16 %v3413, %v3413
    %v3422 = vpack.c.bf16 %v3414, %v3414
    %v3423 = vpack.c.bf16 %v3415, %v3415
    %v3424 = vpack.c.bf16 %v3416, %v3416
    %v3425 = vpack.c.bf16 %v3417, %v3417
    %3426 = vrot.lane.b32.xlu0 %v2922, 64
    %v3427 = vpop.permute.xlu0 %3426
    %v3429 = vsel %vm194, %v3418, 0
    %v3432 = vsel %vm913, %v3427, 0
    %3434 = vmatprep.subr.bf16.mxu0 0
    %3435 = vmatpush1.bf16.msra.mxu0 %v3432
    %3436 = vmatprep.subr.bf16.mxu0 0
    %3437 = vmatpush1.bf16.msra.mxu0 0
    %3438 = vmatprep.subr.bf16.mxu0 0
    %3439 = vmatpush1.bf16.msra.mxu0 0
    %3440 = vmatprep.subr.bf16.mxu0 0
    %3441 = vmatpush1.bf16.msra.mxu0 0
    %3442 = vmatprep.subr.bf16.mxu0 0
    %3443 = vmatpush1.bf16.msra.mxu0 0
    %3444 = vmatprep.subr.bf16.mxu0 0
    %3445 = vmatpush1.bf16.msra.mxu0 0
    %3446 = vmatprep.subr.bf16.mxu0 0
    %3447 = vmatpush1.bf16.msra.mxu0 0
    %3448 = vmatprep.subr.bf16.mxu0 0
    %3449 = vmatpush1.bf16.msra.mxu0 0
    %3450 = vmatprep.subr.bf16.mxu0 0
    %3451 = vmatpush1.bf16.msra.mxu0 0
    %3452 = vmatprep.subr.bf16.mxu0 0
    %3453 = vmatpush1.bf16.msra.mxu0 0
    %3454 = vmatprep.subr.bf16.mxu0 0
    %3455 = vmatpush1.bf16.msra.mxu0 0
    %3456 = vmatprep.subr.bf16.mxu0 0
    %3457 = vmatpush1.bf16.msra.mxu0 0
    %3458 = vmatprep.subr.bf16.mxu0 0
    %3459 = vmatpush1.bf16.msra.mxu0 0
    %3460 = vmatprep.subr.bf16.mxu0 0
    %3461 = vmatpush1.bf16.msra.mxu0 0
    %3462 = vmatprep.subr.bf16.mxu0 0
    %3463 = vmatpush1.bf16.msra.mxu0 0
    %3464 = vmatprep.subr.bf16.mxu0 0
    %3465 = vmatpush1.bf16.msra.mxu0 0
    %3466 = vmatprep.mubr.bf16.mxu0 0
    %3467 = vmatmul.mubr.bf16.gmra.mrb[0].mxu0 %v3429
    %v3468 = vpop.f32.mrb[0].mxu0
    %v3469 = vadd.f32 0.0, %v3468
    %v3470 = vpop.f32.mrb[0].mxu0
    %v3471 = vpop.f32.mrb[0].mxu0
    %v3472 = vpop.f32.mrb[0].mxu0
    %3473 = vdwg.mxu0
    %3474 = vrot.lane.b32.xlu0 %v2923, 64
    %v3475 = vpop.permute.xlu0 %3474
    %v3477 = vsel %vm194, %v3419, 0
    %v3480 = vsel %vm913, %v3475, 0
    %3482 = vmatprep.subr.bf16.mxu0 0
    %3483 = vmatpush1.bf16.msra.mxu0 %v3480
    %3484 = vmatprep.subr.bf16.mxu0 0
    %3485 = vmatpush1.bf16.msra.mxu0 0
    %3486 = vmatprep.subr.bf16.mxu0 0
    %3487 = vmatpush1.bf16.msra.mxu0 0
    %3488 = vmatprep.subr.bf16.mxu0 0
    %3489 = vmatpush1.bf16.msra.mxu0 0
    %3490 = vmatprep.subr.bf16.mxu0 0
    %3491 = vmatpush1.bf16.msra.mxu0 0
    %3492 = vmatprep.subr.bf16.mxu0 0
    %3493 = vmatpush1.bf16.msra.mxu0 0
    %3494 = vmatprep.subr.bf16.mxu0 0
    %3495 = vmatpush1.bf16.msra.mxu0 0
    %3496 = vmatprep.subr.bf16.mxu0 0
    %3497 = vmatpush1.bf16.msra.mxu0 0
    %3498 = vmatprep.subr.bf16.mxu0 0
    %3499 = vmatpush1.bf16.msra.mxu0 0
    %3500 = vmatprep.subr.bf16.mxu0 0
    %3501 = vmatpush1.bf16.msra.mxu0 0
    %3502 = vmatprep.subr.bf16.mxu0 0
    %3503 = vmatpush1.bf16.msra.mxu0 0
    %3504 = vmatprep.subr.bf16.mxu0 0
    %3505 = vmatpush1.bf16.msra.mxu0 0
    %3506 = vmatprep.subr.bf16.mxu0 0
    %3507 = vmatpush1.bf16.msra.mxu0 0
    %3508 = vmatprep.subr.bf16.mxu0 0
    %3509 = vmatpush1.bf16.msra.mxu0 0
    %3510 = vmatprep.subr.bf16.mxu0 0
    %3511 = vmatpush1.bf16.msra.mxu0 0
    %3512 = vmatprep.subr.bf16.mxu0 0
    %3513 = vmatpush1.bf16.msra.mxu0 0
    %3514 = vmatprep.mubr.bf16.mxu0 0
    %3515 = vmatmul.mubr.bf16.gmra.mrb[0].mxu0 %v3477
    %v3516 = vpop.f32.mrb[0].mxu0
    %v3517 = vadd.f32 0.0, %v3516
    %v3518 = vpop.f32.mrb[0].mxu0
    %v3519 = vpop.f32.mrb[0].mxu0
    %v3520 = vpop.f32.mrb[0].mxu0
    %3521 = vdwg.mxu0
    %3522 = vrot.lane.b32.xlu0 %v2924, 64
    %v3523 = vpop.permute.xlu0 %3522
    %v3525 = vsel %vm194, %v3420, 0
    %v3528 = vsel %vm913, %v3523, 0
    %3530 = vmatprep.subr.bf16.mxu0 0
    %3531 = vmatpush1.bf16.msra.mxu0 %v3528
    %3532 = vmatprep.subr.bf16.mxu0 0
    %3533 = vmatpush1.bf16.msra.mxu0 0
    %3534 = vmatprep.subr.bf16.mxu0 0
    %3535 = vmatpush1.bf16.msra.mxu0 0
    %3536 = vmatprep.subr.bf16.mxu0 0
    %3537 = vmatpush1.bf16.msra.mxu0 0
    %3538 = vmatprep.subr.bf16.mxu0 0
    %3539 = vmatpush1.bf16.msra.mxu0 0
    %3540 = vmatprep.subr.bf16.mxu0 0
    %3541 = vmatpush1.bf16.msra.mxu0 0
    %3542 = vmatprep.subr.bf16.mxu0 0
    %3543 = vmatpush1.bf16.msra.mxu0 0
    %3544 = vmatprep.subr.bf16.mxu0 0
    %3545 = vmatpush1.bf16.msra.mxu0 0
    %3546 = vmatprep.subr.bf16.mxu0 0
    %3547 = vmatpush1.bf16.msra.mxu0 0
    %3548 = vmatprep.subr.bf16.mxu0 0
    %3549 = vmatpush1.bf16.msra.mxu0 0
    %3550 = vmatprep.subr.bf16.mxu0 0
    %3551 = vmatpush1.bf16.msra.mxu0 0
    %3552 = vmatprep.subr.bf16.mxu0 0
    %3553 = vmatpush1.bf16.msra.mxu0 0
    %3554 = vmatprep.subr.bf16.mxu0 0
    %3555 = vmatpush1.bf16.msra.mxu0 0
    %3556 = vmatprep.subr.bf16.mxu0 0
    %3557 = vmatpush1.bf16.msra.mxu0 0
    %3558 = vmatprep.subr.bf16.mxu0 0
    %3559 = vmatpush1.bf16.msra.mxu0 0
    %3560 = vmatprep.subr.bf16.mxu0 0
    %3561 = vmatpush1.bf16.msra.mxu0 0
    %3562 = vmatprep.mubr.bf16.mxu0 0
    %3563 = vmatmul.mubr.bf16.gmra.mrb[0].mxu0 %v3525
    %v3564 = vpop.f32.mrb[0].mxu0
    %v3565 = vadd.f32 0.0, %v3564
    %v3566 = vpop.f32.mrb[0].mxu0
    %v3567 = vpop.f32.mrb[0].mxu0
    %v3568 = vpop.f32.mrb[0].mxu0
    %3569 = vdwg.mxu0
    %3570 = vrot.lane.b32.xlu0 %v2925, 64
    %v3571 = vpop.permute.xlu0 %3570
    %v3573 = vsel %vm194, %v3421, 0
    %v3576 = vsel %vm913, %v3571, 0
    %3578 = vmatprep.subr.bf16.mxu0 0
    %3579 = vmatpush1.bf16.msra.mxu0 %v3576
    %3580 = vmatprep.subr.bf16.mxu0 0
    %3581 = vmatpush1.bf16.msra.mxu0 0
    %3582 = vmatprep.subr.bf16.mxu0 0
    %3583 = vmatpush1.bf16.msra.mxu0 0
    %3584 = vmatprep.subr.bf16.mxu0 0
    %3585 = vmatpush1.bf16.msra.mxu0 0
    %3586 = vmatprep.subr.bf16.mxu0 0
    %3587 = vmatpush1.bf16.msra.mxu0 0
    %3588 = vmatprep.subr.bf16.mxu0 0
    %3589 = vmatpush1.bf16.msra.mxu0 0
    %3590 = vmatprep.subr.bf16.mxu0 0
    %3591 = vmatpush1.bf16.msra.mxu0 0
    %3592 = vmatprep.subr.bf16.mxu0 0
    %3593 = vmatpush1.bf16.msra.mxu0 0
    %3594 = vmatprep.subr.bf16.mxu0 0
    %3595 = vmatpush1.bf16.msra.mxu0 0
    %3596 = vmatprep.subr.bf16.mxu0 0
    %3597 = vmatpush1.bf16.msra.mxu0 0
    %3598 = vmatprep.subr.bf16.mxu0 0
    %3599 = vmatpush1.bf16.msra.mxu0 0
    %3600 = vmatprep.subr.bf16.mxu0 0
    %3601 = vmatpush1.bf16.msra.mxu0 0
    %3602 = vmatprep.subr.bf16.mxu0 0
    %3603 = vmatpush1.bf16.msra.mxu0 0
    %3604 = vmatprep.subr.bf16.mxu0 0
    %3605 = vmatpush1.bf16.msra.mxu0 0
    %3606 = vmatprep.subr.bf16.mxu0 0
    %3607 = vmatpush1.bf16.msra.mxu0 0
    %3608 = vmatprep.subr.bf16.mxu0 0
    %3609 = vmatpush1.bf16.msra.mxu0 0
    %3610 = vmatprep.mubr.bf16.mxu0 0
    %3611 = vmatmul.mubr.bf16.gmra.mrb[0].mxu0 %v3573
    %v3612 = vpop.f32.mrb[0].mxu0
    %v3613 = vadd.f32 0.0, %v3612
    %v3614 = vpop.f32.mrb[0].mxu0
    %v3615 = vpop.f32.mrb[0].mxu0
    %v3616 = vpop.f32.mrb[0].mxu0
    %3617 = vdwg.mxu0
    %3618 = vrot.lane.b32.xlu0 %v2926, 64
    %v3619 = vpop.permute.xlu0 %3618
    %v3621 = vsel %vm194, %v3422, 0
    %v3624 = vsel %vm913, %v3619, 0
    %3626 = vmatprep.subr.bf16.mxu0 0
    %3627 = vmatpush1.bf16.msra.mxu0 %v3624
    %3628 = vmatprep.subr.bf16.mxu0 0
    %3629 = vmatpush1.bf16.msra.mxu0 0
    %3630 = vmatprep.subr.bf16.mxu0 0
    %3631 = vmatpush1.bf16.msra.mxu0 0
    %3632 = vmatprep.subr.bf16.mxu0 0
    %3633 = vmatpush1.bf16.msra.mxu0 0
    %3634 = vmatprep.subr.bf16.mxu0 0
    %3635 = vmatpush1.bf16.msra.mxu0 0
    %3636 = vmatprep.subr.bf16.mxu0 0
    %3637 = vmatpush1.bf16.msra.mxu0 0
    %3638 = vmatprep.subr.bf16.mxu0 0
    %3639 = vmatpush1.bf16.msra.mxu0 0
    %3640 = vmatprep.subr.bf16.mxu0 0
    %3641 = vmatpush1.bf16.msra.mxu0 0
    %3642 = vmatprep.subr.bf16.mxu0 0
    %3643 = vmatpush1.bf16.msra.mxu0 0
    %3644 = vmatprep.subr.bf16.mxu0 0
    %3645 = vmatpush1.bf16.msra.mxu0 0
    %3646 = vmatprep.subr.bf16.mxu0 0
    %3647 = vmatpush1.bf16.msra.mxu0 0
    %3648 = vmatprep.subr.bf16.mxu0 0
    %3649 = vmatpush1.bf16.msra.mxu0 0
    %3650 = vmatprep.subr.bf16.mxu0 0
    %3651 = vmatpush1.bf16.msra.mxu0 0
    %3652 = vmatprep.subr.bf16.mxu0 0
    %3653 = vmatpush1.bf16.msra.mxu0 0
    %3654 = vmatprep.subr.bf16.mxu0 0
    %3655 = vmatpush1.bf16.msra.mxu0 0
    %3656 = vmatprep.subr.bf16.mxu0 0
    %3657 = vmatpush1.bf16.msra.mxu0 0
    %3658 = vmatprep.mubr.bf16.mxu0 0
    %3659 = vmatmul.mubr.bf16.gmra.mrb[0].mxu0 %v3621
    %v3660 = vpop.f32.mrb[0].mxu0
    %v3661 = vadd.f32 0.0, %v3660
    %v3662 = vpop.f32.mrb[0].mxu0
    %v3663 = vpop.f32.mrb[0].mxu0
    %v3664 = vpop.f32.mrb[0].mxu0
    %3665 = vdwg.mxu0
    %3666 = vrot.lane.b32.xlu0 %v2927, 64
    %v3667 = vpop.permute.xlu0 %3666
    %v3669 = vsel %vm194, %v3423, 0
    %v3672 = vsel %vm913, %v3667, 0
    %3674 = vmatprep.subr.bf16.mxu0 0
    %3675 = vmatpush1.bf16.msra.mxu0 %v3672
    %3676 = vmatprep.subr.bf16.mxu0 0
    %3677 = vmatpush1.bf16.msra.mxu0 0
    %3678 = vmatprep.subr.bf16.mxu0 0
    %3679 = vmatpush1.bf16.msra.mxu0 0
    %3680 = vmatprep.subr.bf16.mxu0 0
    %3681 = vmatpush1.bf16.msra.mxu0 0
    %3682 = vmatprep.subr.bf16.mxu0 0
    %3683 = vmatpush1.bf16.msra.mxu0 0
    %3684 = vmatprep.subr.bf16.mxu0 0
    %3685 = vmatpush1.bf16.msra.mxu0 0
    %3686 = vmatprep.subr.bf16.mxu0 0
    %3687 = vmatpush1.bf16.msra.mxu0 0
    %3688 = vmatprep.subr.bf16.mxu0 0
    %3689 = vmatpush1.bf16.msra.mxu0 0
    %3690 = vmatprep.subr.bf16.mxu0 0
    %3691 = vmatpush1.bf16.msra.mxu0 0
    %3692 = vmatprep.subr.bf16.mxu0 0
    %3693 = vmatpush1.bf16.msra.mxu0 0
    %3694 = vmatprep.subr.bf16.mxu0 0
    %3695 = vmatpush1.bf16.msra.mxu0 0
    %3696 = vmatprep.subr.bf16.mxu0 0
    %3697 = vmatpush1.bf16.msra.mxu0 0
    %3698 = vmatprep.subr.bf16.mxu0 0
    %3699 = vmatpush1.bf16.msra.mxu0 0
    %3700 = vmatprep.subr.bf16.mxu0 0
    %3701 = vmatpush1.bf16.msra.mxu0 0
    %3702 = vmatprep.subr.bf16.mxu0 0
    %3703 = vmatpush1.bf16.msra.mxu0 0
    %3704 = vmatprep.subr.bf16.mxu0 0
    %3705 = vmatpush1.bf16.msra.mxu0 0
    %3706 = vmatprep.mubr.bf16.mxu0 0
    %3707 = vmatmul.mubr.bf16.gmra.mrb[0].mxu0 %v3669
    %v3708 = vpop.f32.mrb[0].mxu0
    %v3709 = vadd.f32 0.0, %v3708
    %v3710 = vpop.f32.mrb[0].mxu0
    %v3711 = vpop.f32.mrb[0].mxu0
    %v3712 = vpop.f32.mrb[0].mxu0
    %3713 = vdwg.mxu0
    %3714 = vrot.lane.b32.xlu0 %v2928, 64
    %v3715 = vpop.permute.xlu0 %3714
    %v3717 = vsel %vm194, %v3424, 0
    %v3720 = vsel %vm913, %v3715, 0
    %3722 = vmatprep.subr.bf16.mxu0 0
    %3723 = vmatpush1.bf16.msra.mxu0 %v3720
    %3724 = vmatprep.subr.bf16.mxu0 0
    %3725 = vmatpush1.bf16.msra.mxu0 0
    %3726 = vmatprep.subr.bf16.mxu0 0
    %3727 = vmatpush1.bf16.msra.mxu0 0
    %3728 = vmatprep.subr.bf16.mxu0 0
    %3729 = vmatpush1.bf16.msra.mxu0 0
    %3730 = vmatprep.subr.bf16.mxu0 0
    %3731 = vmatpush1.bf16.msra.mxu0 0
    %3732 = vmatprep.subr.bf16.mxu0 0
    %3733 = vmatpush1.bf16.msra.mxu0 0
    %3734 = vmatprep.subr.bf16.mxu0 0
    %3735 = vmatpush1.bf16.msra.mxu0 0
    %3736 = vmatprep.subr.bf16.mxu0 0
    %3737 = vmatpush1.bf16.msra.mxu0 0
    %3738 = vmatprep.subr.bf16.mxu0 0
    %3739 = vmatpush1.bf16.msra.mxu0 0
    %3740 = vmatprep.subr.bf16.mxu0 0
    %3741 = vmatpush1.bf16.msra.mxu0 0
    %3742 = vmatprep.subr.bf16.mxu0 0
    %3743 = vmatpush1.bf16.msra.mxu0 0
    %3744 = vmatprep.subr.bf16.mxu0 0
    %3745 = vmatpush1.bf16.msra.mxu0 0
    %3746 = vmatprep.subr.bf16.mxu0 0
    %3747 = vmatpush1.bf16.msra.mxu0 0
    %3748 = vmatprep.subr.bf16.mxu0 0
    %3749 = vmatpush1.bf16.msra.mxu0 0
    %3750 = vmatprep.subr.bf16.mxu0 0
    %3751 = vmatpush1.bf16.msra.mxu0 0
    %3752 = vmatprep.subr.bf16.mxu0 0
    %3753 = vmatpush1.bf16.msra.mxu0 0
    %3754 = vmatprep.mubr.bf16.mxu0 0
    %3755 = vmatmul.mubr.bf16.gmra.mrb[0].mxu0 %v3717
    %v3756 = vpop.f32.mrb[0].mxu0
    %v3757 = vadd.f32 0.0, %v3756
    %v3758 = vpop.f32.mrb[0].mxu0
    %v3759 = vpop.f32.mrb[0].mxu0
    %v3760 = vpop.f32.mrb[0].mxu0
    %3761 = vdwg.mxu0
    %3762 = vrot.lane.b32.xlu0 %v2929, 64
    %v3763 = vpop.permute.xlu0 %3762
    %v3765 = vsel %vm194, %v3425, 0
    %v3768 = vsel %vm913, %v3763, 0
    %3770 = vmatprep.subr.bf16.mxu0 0
    %3771 = vmatpush1.bf16.msra.mxu0 %v3768
    %3772 = vmatprep.subr.bf16.mxu0 0
    %3773 = vmatpush1.bf16.msra.mxu0 0
    %3774 = vmatprep.subr.bf16.mxu0 0
    %3775 = vmatpush1.bf16.msra.mxu0 0
    %3776 = vmatprep.subr.bf16.mxu0 0
    %3777 = vmatpush1.bf16.msra.mxu0 0
    %3778 = vmatprep.subr.bf16.mxu0 0
    %3779 = vmatpush1.bf16.msra.mxu0 0
    %3780 = vmatprep.subr.bf16.mxu0 0
    %3781 = vmatpush1.bf16.msra.mxu0 0
    %3782 = vmatprep.subr.bf16.mxu0 0
    %3783 = vmatpush1.bf16.msra.mxu0 0
    %3784 = vmatprep.subr.bf16.mxu0 0
    %3785 = vmatpush1.bf16.msra.mxu0 0
    %3786 = vmatprep.subr.bf16.mxu0 0
    %3787 = vmatpush1.bf16.msra.mxu0 0
    %3788 = vmatprep.subr.bf16.mxu0 0
    %3789 = vmatpush1.bf16.msra.mxu0 0
    %3790 = vmatprep.subr.bf16.mxu0 0
    %3791 = vmatpush1.bf16.msra.mxu0 0
    %3792 = vmatprep.subr.bf16.mxu0 0
    %3793 = vmatpush1.bf16.msra.mxu0 0
    %3794 = vmatprep.subr.bf16.mxu0 0
    %3795 = vmatpush1.bf16.msra.mxu0 0
    %3796 = vmatprep.subr.bf16.mxu0 0
    %3797 = vmatpush1.bf16.msra.mxu0 0
    %3798 = vmatprep.subr.bf16.mxu0 0
    %3799 = vmatpush1.bf16.msra.mxu0 0
    %3800 = vmatprep.subr.bf16.mxu0 0
    %3801 = vmatpush1.bf16.msra.mxu0 0
    %3802 = vmatprep.mubr.bf16.mxu0 0
    %3803 = vmatmul.mubr.bf16.gmra.mrb[0].mxu0 %v3765
    %v3804 = vpop.f32.mrb[0].mxu0
    %v3805 = vadd.f32 0.0, %v3804
    %v3806 = vpop.f32.mrb[0].mxu0
    %v3807 = vpop.f32.mrb[0].mxu0
    %v3808 = vpop.f32.mrb[0].mxu0
    %3809 = vdwg.mxu0
    %3810 = vrot.lane.b32.xlu0 %v2922, 112
    %v3811 = vpop.permute.xlu0 %3810
    %3812 = vrot.lane.b32.xlu0 %v2922, 80
    %v3813 = vpop.permute.xlu0 %3812
    %v3815 = vsel %vm414, %v3811, 0
    %v3818 = vsel %vm414, %v3813, 0
    %3820 = vmatprep.subr.bf16.mxu0 0
    %3821 = vmatpush1.bf16.xpose.msra.mxu0 %v3818
    %3822 = vmatprep.subr.bf16.mxu0 0
    %3823 = vmatpush1.bf16.xpose.msra.mxu0 0
    %3824 = vmatprep.subr.bf16.mxu0 0
    %3825 = vmatpush1.bf16.xpose.msra.mxu0 0
    %3826 = vmatprep.subr.bf16.mxu0 0
    %3827 = vmatpush1.bf16.xpose.msra.mxu0 0
    %3828 = vmatprep.subr.bf16.mxu0 0
    %3829 = vmatpush1.bf16.xpose.msra.mxu0 0
    %3830 = vmatprep.subr.bf16.mxu0 0
    %3831 = vmatpush1.bf16.xpose.msra.mxu0 0
    %3832 = vmatprep.subr.bf16.mxu0 0
    %3833 = vmatpush1.bf16.xpose.msra.mxu0 0
    %3834 = vmatprep.subr.bf16.mxu0 0
    %3835 = vmatpush1.bf16.xpose.msra.mxu0 0
    %3836 = vmatprep.subr.bf16.mxu0 0
    %3837 = vmatpush1.bf16.xpose.msra.mxu0 0
    %3838 = vmatprep.subr.bf16.mxu0 0
    %3839 = vmatpush1.bf16.xpose.msra.mxu0 0
    %3840 = vmatprep.subr.bf16.mxu0 0
    %3841 = vmatpush1.bf16.xpose.msra.mxu0 0
    %3842 = vmatprep.subr.bf16.mxu0 0
    %3843 = vmatpush1.bf16.xpose.msra.mxu0 0
    %3844 = vmatprep.subr.bf16.mxu0 0
    %3845 = vmatpush1.bf16.xpose.msra.mxu0 0
    %3846 = vmatprep.subr.bf16.mxu0 0
    %3847 = vmatpush1.bf16.xpose.msra.mxu0 0
    %3848 = vmatprep.subr.bf16.mxu0 0
    %3849 = vmatpush1.bf16.xpose.msra.mxu0 0
    %3850 = vmatprep.subr.bf16.mxu0 0
    %3851 = vmatpush1.bf16.xpose.msra.mxu0 0
    %3852 = vmatprep.mubr.bf16.mxu0 0
    %3853 = vmatmul.mubr.bf16.gmra.mrb[0].mxu0 %v3815
    %v3854 = vpop.f32.mrb[0].mxu0
    %v3855 = vadd.f32 0.0, %v3854
    %v3856 = vpop.f32.mrb[0].mxu0
    %v3857 = vpop.f32.mrb[0].mxu0
    %v3858 = vpop.f32.mrb[0].mxu0
    %3859 = vdwg.mxu0
    %3860 = vrot.lane.b32.xlu0 %v2923, 112
    %v3861 = vpop.permute.xlu0 %3860
    %3862 = vrot.lane.b32.xlu0 %v2923, 80
    %v3863 = vpop.permute.xlu0 %3862
    %v3865 = vsel %vm414, %v3861, 0
    %v3868 = vsel %vm414, %v3863, 0
    %3870 = vmatprep.subr.bf16.mxu0 0
    %3871 = vmatpush1.bf16.xpose.msra.mxu0 %v3868
    %3872 = vmatprep.subr.bf16.mxu0 0
    %3873 = vmatpush1.bf16.xpose.msra.mxu0 0
    %3874 = vmatprep.subr.bf16.mxu0 0
    %3875 = vmatpush1.bf16.xpose.msra.mxu0 0
    %3876 = vmatprep.subr.bf16.mxu0 0
    %3877 = vmatpush1.bf16.xpose.msra.mxu0 0
    %3878 = vmatprep.subr.bf16.mxu0 0
    %3879 = vmatpush1.bf16.xpose.msra.mxu0 0
    %3880 = vmatprep.subr.bf16.mxu0 0
    %3881 = vmatpush1.bf16.xpose.msra.mxu0 0
    %3882 = vmatprep.subr.bf16.mxu0 0
    %3883 = vmatpush1.bf16.xpose.msra.mxu0 0
    %3884 = vmatprep.subr.bf16.mxu0 0
    %3885 = vmatpush1.bf16.xpose.msra.mxu0 0
    %3886 = vmatprep.subr.bf16.mxu0 0
    %3887 = vmatpush1.bf16.xpose.msra.mxu0 0
    %3888 = vmatprep.subr.bf16.mxu0 0
    %3889 = vmatpush1.bf16.xpose.msra.mxu0 0
    %3890 = vmatprep.subr.bf16.mxu0 0
    %3891 = vmatpush1.bf16.xpose.msra.mxu0 0
    %3892 = vmatprep.subr.bf16.mxu0 0
    %3893 = vmatpush1.bf16.xpose.msra.mxu0 0
    %3894 = vmatprep.subr.bf16.mxu0 0
    %3895 = vmatpush1.bf16.xpose.msra.mxu0 0
    %3896 = vmatprep.subr.bf16.mxu0 0
    %3897 = vmatpush1.bf16.xpose.msra.mxu0 0
    %3898 = vmatprep.subr.bf16.mxu0 0
    %3899 = vmatpush1.bf16.xpose.msra.mxu0 0
    %3900 = vmatprep.subr.bf16.mxu0 0
    %3901 = vmatpush1.bf16.xpose.msra.mxu0 0
    %3902 = vmatprep.mubr.bf16.mxu0 0
    %3903 = vmatmul.mubr.bf16.gmra.mrb[0].mxu0 %v3865
    %v3904 = vpop.f32.mrb[0].mxu0
    %v3905 = vadd.f32 0.0, %v3904
    %v3906 = vpop.f32.mrb[0].mxu0
    %v3907 = vpop.f32.mrb[0].mxu0
    %v3908 = vpop.f32.mrb[0].mxu0
    %3909 = vdwg.mxu0
    %3910 = vrot.lane.b32.xlu0 %v2924, 112
    %v3911 = vpop.permute.xlu0 %3910
    %3912 = vrot.lane.b32.xlu0 %v2924, 80
    %v3913 = vpop.permute.xlu0 %3912
    %v3915 = vsel %vm414, %v3911, 0
    %v3918 = vsel %vm414, %v3913, 0
    %3920 = vmatprep.subr.bf16.mxu0 0
    %3921 = vmatpush1.bf16.xpose.msra.mxu0 %v3918
    %3922 = vmatprep.subr.bf16.mxu0 0
    %3923 = vmatpush1.bf16.xpose.msra.mxu0 0
    %3924 = vmatprep.subr.bf16.mxu0 0
    %3925 = vmatpush1.bf16.xpose.msra.mxu0 0
    %3926 = vmatprep.subr.bf16.mxu0 0
    %3927 = vmatpush1.bf16.xpose.msra.mxu0 0
    %3928 = vmatprep.subr.bf16.mxu0 0
    %3929 = vmatpush1.bf16.xpose.msra.mxu0 0
    %3930 = vmatprep.subr.bf16.mxu0 0
    %3931 = vmatpush1.bf16.xpose.msra.mxu0 0
    %3932 = vmatprep.subr.bf16.mxu0 0
    %3933 = vmatpush1.bf16.xpose.msra.mxu0 0
    %3934 = vmatprep.subr.bf16.mxu0 0
    %3935 = vmatpush1.bf16.xpose.msra.mxu0 0
    %3936 = vmatprep.subr.bf16.mxu0 0
    %3937 = vmatpush1.bf16.xpose.msra.mxu0 0
    %3938 = vmatprep.subr.bf16.mxu0 0
    %3939 = vmatpush1.bf16.xpose.msra.mxu0 0
    %3940 = vmatprep.subr.bf16.mxu0 0
    %3941 = vmatpush1.bf16.xpose.msra.mxu0 0
    %3942 = vmatprep.subr.bf16.mxu0 0
    %3943 = vmatpush1.bf16.xpose.msra.mxu0 0
    %3944 = vmatprep.subr.bf16.mxu0 0
    %3945 = vmatpush1.bf16.xpose.msra.mxu0 0
    %3946 = vmatprep.subr.bf16.mxu0 0
    %3947 = vmatpush1.bf16.xpose.msra.mxu0 0
    %3948 = vmatprep.subr.bf16.mxu0 0
    %3949 = vmatpush1.bf16.xpose.msra.mxu0 0
    %3950 = vmatprep.subr.bf16.mxu0 0
    %3951 = vmatpush1.bf16.xpose.msra.mxu0 0
    %3952 = vmatprep.mubr.bf16.mxu0 0
    %3953 = vmatmul.mubr.bf16.gmra.mrb[0].mxu0 %v3915
    %v3954 = vpop.f32.mrb[0].mxu0
    %v3955 = vadd.f32 0.0, %v3954
    %v3956 = vpop.f32.mrb[0].mxu0
    %v3957 = vpop.f32.mrb[0].mxu0
    %v3958 = vpop.f32.mrb[0].mxu0
    %3959 = vdwg.mxu0
    %3960 = vrot.lane.b32.xlu0 %v2925, 112
    %v3961 = vpop.permute.xlu0 %3960
    %3962 = vrot.lane.b32.xlu0 %v2925, 80
    %v3963 = vpop.permute.xlu0 %3962
    %v3965 = vsel %vm414, %v3961, 0
    %v3968 = vsel %vm414, %v3963, 0
    %3970 = vmatprep.subr.bf16.mxu0 0
    %3971 = vmatpush1.bf16.xpose.msra.mxu0 %v3968
    %3972 = vmatprep.subr.bf16.mxu0 0
    %3973 = vmatpush1.bf16.xpose.msra.mxu0 0
    %3974 = vmatprep.subr.bf16.mxu0 0
    %3975 = vmatpush1.bf16.xpose.msra.mxu0 0
    %3976 = vmatprep.subr.bf16.mxu0 0
    %3977 = vmatpush1.bf16.xpose.msra.mxu0 0
    %3978 = vmatprep.subr.bf16.mxu0 0
    %3979 = vmatpush1.bf16.xpose.msra.mxu0 0
    %3980 = vmatprep.subr.bf16.mxu0 0
    %3981 = vmatpush1.bf16.xpose.msra.mxu0 0
    %3982 = vmatprep.subr.bf16.mxu0 0
    %3983 = vmatpush1.bf16.xpose.msra.mxu0 0
    %3984 = vmatprep.subr.bf16.mxu0 0
    %3985 = vmatpush1.bf16.xpose.msra.mxu0 0
    %3986 = vmatprep.subr.bf16.mxu0 0
    %3987 = vmatpush1.bf16.xpose.msra.mxu0 0
    %3988 = vmatprep.subr.bf16.mxu0 0
    %3989 = vmatpush1.bf16.xpose.msra.mxu0 0
    %3990 = vmatprep.subr.bf16.mxu0 0
    %3991 = vmatpush1.bf16.xpose.msra.mxu0 0
    %3992 = vmatprep.subr.bf16.mxu0 0
    %3993 = vmatpush1.bf16.xpose.msra.mxu0 0
    %3994 = vmatprep.subr.bf16.mxu0 0
    %3995 = vmatpush1.bf16.xpose.msra.mxu0 0
    %3996 = vmatprep.subr.bf16.mxu0 0
    %3997 = vmatpush1.bf16.xpose.msra.mxu0 0
    %3998 = vmatprep.subr.bf16.mxu0 0
    %3999 = vmatpush1.bf16.xpose.msra.mxu0 0
    %4000 = vmatprep.subr.bf16.mxu0 0
    %4001 = vmatpush1.bf16.xpose.msra.mxu0 0
    %4002 = vmatprep.mubr.bf16.mxu0 0
    %4003 = vmatmul.mubr.bf16.gmra.mrb[0].mxu0 %v3965
    %v4004 = vpop.f32.mrb[0].mxu0
    %v4005 = vadd.f32 0.0, %v4004
    %v4006 = vpop.f32.mrb[0].mxu0
    %v4007 = vpop.f32.mrb[0].mxu0
    %v4008 = vpop.f32.mrb[0].mxu0
    %4009 = vdwg.mxu0
    %4010 = vrot.lane.b32.xlu0 %v2926, 112
    %v4011 = vpop.permute.xlu0 %4010
    %4012 = vrot.lane.b32.xlu0 %v2926, 80
    %v4013 = vpop.permute.xlu0 %4012
    %v4015 = vsel %vm414, %v4011, 0
    %v4018 = vsel %vm414, %v4013, 0
    %4020 = vmatprep.subr.bf16.mxu0 0
    %4021 = vmatpush1.bf16.xpose.msra.mxu0 %v4018
    %4022 = vmatprep.subr.bf16.mxu0 0
    %4023 = vmatpush1.bf16.xpose.msra.mxu0 0
    %4024 = vmatprep.subr.bf16.mxu0 0
    %4025 = vmatpush1.bf16.xpose.msra.mxu0 0
    %4026 = vmatprep.subr.bf16.mxu0 0
    %4027 = vmatpush1.bf16.xpose.msra.mxu0 0
    %4028 = vmatprep.subr.bf16.mxu0 0
    %4029 = vmatpush1.bf16.xpose.msra.mxu0 0
    %4030 = vmatprep.subr.bf16.mxu0 0
    %4031 = vmatpush1.bf16.xpose.msra.mxu0 0
    %4032 = vmatprep.subr.bf16.mxu0 0
    %4033 = vmatpush1.bf16.xpose.msra.mxu0 0
    %4034 = vmatprep.subr.bf16.mxu0 0
    %4035 = vmatpush1.bf16.xpose.msra.mxu0 0
    %4036 = vmatprep.subr.bf16.mxu0 0
    %4037 = vmatpush1.bf16.xpose.msra.mxu0 0
    %4038 = vmatprep.subr.bf16.mxu0 0
    %4039 = vmatpush1.bf16.xpose.msra.mxu0 0
    %4040 = vmatprep.subr.bf16.mxu0 0
    %4041 = vmatpush1.bf16.xpose.msra.mxu0 0
    %4042 = vmatprep.subr.bf16.mxu0 0
    %4043 = vmatpush1.bf16.xpose.msra.mxu0 0
    %4044 = vmatprep.subr.bf16.mxu0 0
    %4045 = vmatpush1.bf16.xpose.msra.mxu0 0
    %4046 = vmatprep.subr.bf16.mxu0 0
    %4047 = vmatpush1.bf16.xpose.msra.mxu0 0
    %4048 = vmatprep.subr.bf16.mxu0 0
    %4049 = vmatpush1.bf16.xpose.msra.mxu0 0
    %4050 = vmatprep.subr.bf16.mxu0 0
    %4051 = vmatpush1.bf16.xpose.msra.mxu0 0
    %4052 = vmatprep.mubr.bf16.mxu0 0
    %4053 = vmatmul.mubr.bf16.gmra.mrb[0].mxu0 %v4015
    %v4054 = vpop.f32.mrb[0].mxu0
    %v4055 = vadd.f32 0.0, %v4054
    %v4056 = vpop.f32.mrb[0].mxu0
    %v4057 = vpop.f32.mrb[0].mxu0
    %v4058 = vpop.f32.mrb[0].mxu0
    %4059 = vdwg.mxu0
    %4060 = vrot.lane.b32.xlu0 %v2927, 112
    %v4061 = vpop.permute.xlu0 %4060
    %4062 = vrot.lane.b32.xlu0 %v2927, 80
    %v4063 = vpop.permute.xlu0 %4062
    %v4065 = vsel %vm414, %v4061, 0
    %v4068 = vsel %vm414, %v4063, 0
    %4070 = vmatprep.subr.bf16.mxu0 0
    %4071 = vmatpush1.bf16.xpose.msra.mxu0 %v4068
    %4072 = vmatprep.subr.bf16.mxu0 0
    %4073 = vmatpush1.bf16.xpose.msra.mxu0 0
    %4074 = vmatprep.subr.bf16.mxu0 0
    %4075 = vmatpush1.bf16.xpose.msra.mxu0 0
    %4076 = vmatprep.subr.bf16.mxu0 0
    %4077 = vmatpush1.bf16.xpose.msra.mxu0 0
    %4078 = vmatprep.subr.bf16.mxu0 0
    %4079 = vmatpush1.bf16.xpose.msra.mxu0 0
    %4080 = vmatprep.subr.bf16.mxu0 0
    %4081 = vmatpush1.bf16.xpose.msra.mxu0 0
    %4082 = vmatprep.subr.bf16.mxu0 0
    %4083 = vmatpush1.bf16.xpose.msra.mxu0 0
    %4084 = vmatprep.subr.bf16.mxu0 0
    %4085 = vmatpush1.bf16.xpose.msra.mxu0 0
    %4086 = vmatprep.subr.bf16.mxu0 0
    %4087 = vmatpush1.bf16.xpose.msra.mxu0 0
    %4088 = vmatprep.subr.bf16.mxu0 0
    %4089 = vmatpush1.bf16.xpose.msra.mxu0 0
    %4090 = vmatprep.subr.bf16.mxu0 0
    %4091 = vmatpush1.bf16.xpose.msra.mxu0 0
    %4092 = vmatprep.subr.bf16.mxu0 0
    %4093 = vmatpush1.bf16.xpose.msra.mxu0 0
    %4094 = vmatprep.subr.bf16.mxu0 0
    %4095 = vmatpush1.bf16.xpose.msra.mxu0 0
    %4096 = vmatprep.subr.bf16.mxu0 0
    %4097 = vmatpush1.bf16.xpose.msra.mxu0 0
    %4098 = vmatprep.subr.bf16.mxu0 0
    %4099 = vmatpush1.bf16.xpose.msra.mxu0 0
    %4100 = vmatprep.subr.bf16.mxu0 0
    %4101 = vmatpush1.bf16.xpose.msra.mxu0 0
    %4102 = vmatprep.mubr.bf16.mxu0 0
    %4103 = vmatmul.mubr.bf16.gmra.mrb[0].mxu0 %v4065
    %v4104 = vpop.f32.mrb[0].mxu0
    %v4105 = vadd.f32 0.0, %v4104
    %v4106 = vpop.f32.mrb[0].mxu0
    %v4107 = vpop.f32.mrb[0].mxu0
    %v4108 = vpop.f32.mrb[0].mxu0
    %4109 = vdwg.mxu0
    %4110 = vrot.lane.b32.xlu0 %v2928, 112
    %v4111 = vpop.permute.xlu0 %4110
    %4112 = vrot.lane.b32.xlu0 %v2928, 80
    %v4113 = vpop.permute.xlu0 %4112
    %v4115 = vsel %vm414, %v4111, 0
    %v4118 = vsel %vm414, %v4113, 0
    %4120 = vmatprep.subr.bf16.mxu0 0
    %4121 = vmatpush1.bf16.xpose.msra.mxu0 %v4118
    %4122 = vmatprep.subr.bf16.mxu0 0
    %4123 = vmatpush1.bf16.xpose.msra.mxu0 0
    %4124 = vmatprep.subr.bf16.mxu0 0
    %4125 = vmatpush1.bf16.xpose.msra.mxu0 0
    %4126 = vmatprep.subr.bf16.mxu0 0
    %4127 = vmatpush1.bf16.xpose.msra.mxu0 0
    %4128 = vmatprep.subr.bf16.mxu0 0
    %4129 = vmatpush1.bf16.xpose.msra.mxu0 0
    %4130 = vmatprep.subr.bf16.mxu0 0
    %4131 = vmatpush1.bf16.xpose.msra.mxu0 0
    %4132 = vmatprep.subr.bf16.mxu0 0
    %4133 = vmatpush1.bf16.xpose.msra.mxu0 0
    %4134 = vmatprep.subr.bf16.mxu0 0
    %4135 = vmatpush1.bf16.xpose.msra.mxu0 0
    %4136 = vmatprep.subr.bf16.mxu0 0
    %4137 = vmatpush1.bf16.xpose.msra.mxu0 0
    %4138 = vmatprep.subr.bf16.mxu0 0
    %4139 = vmatpush1.bf16.xpose.msra.mxu0 0
    %4140 = vmatprep.subr.bf16.mxu0 0
    %4141 = vmatpush1.bf16.xpose.msra.mxu0 0
    %4142 = vmatprep.subr.bf16.mxu0 0
    %4143 = vmatpush1.bf16.xpose.msra.mxu0 0
    %4144 = vmatprep.subr.bf16.mxu0 0
    %4145 = vmatpush1.bf16.xpose.msra.mxu0 0
    %4146 = vmatprep.subr.bf16.mxu0 0
    %4147 = vmatpush1.bf16.xpose.msra.mxu0 0
    %4148 = vmatprep.subr.bf16.mxu0 0
    %4149 = vmatpush1.bf16.xpose.msra.mxu0 0
    %4150 = vmatprep.subr.bf16.mxu0 0
    %4151 = vmatpush1.bf16.xpose.msra.mxu0 0
    %4152 = vmatprep.mubr.bf16.mxu0 0
    %4153 = vmatmul.mubr.bf16.gmra.mrb[0].mxu0 %v4115
    %v4154 = vpop.f32.mrb[0].mxu0
    %v4155 = vadd.f32 0.0, %v4154
    %v4156 = vpop.f32.mrb[0].mxu0
    %v4157 = vpop.f32.mrb[0].mxu0
    %v4158 = vpop.f32.mrb[0].mxu0
    %4159 = vdwg.mxu0
    %4160 = vrot.lane.b32.xlu0 %v2929, 112
    %v4161 = vpop.permute.xlu0 %4160
    %4162 = vrot.lane.b32.xlu0 %v2929, 80
    %v4163 = vpop.permute.xlu0 %4162
    %v4165 = vsel %vm414, %v4161, 0
    %v4168 = vsel %vm414, %v4163, 0
    %4170 = vmatprep.subr.bf16.mxu0 0
    %4171 = vmatpush1.bf16.xpose.msra.mxu0 %v4168
    %4172 = vmatprep.subr.bf16.mxu0 0
    %4173 = vmatpush1.bf16.xpose.msra.mxu0 0
    %4174 = vmatprep.subr.bf16.mxu0 0
    %4175 = vmatpush1.bf16.xpose.msra.mxu0 0
    %4176 = vmatprep.subr.bf16.mxu0 0
    %4177 = vmatpush1.bf16.xpose.msra.mxu0 0
    %4178 = vmatprep.subr.bf16.mxu0 0
    %4179 = vmatpush1.bf16.xpose.msra.mxu0 0
    %4180 = vmatprep.subr.bf16.mxu0 0
    %4181 = vmatpush1.bf16.xpose.msra.mxu0 0
    %4182 = vmatprep.subr.bf16.mxu0 0
    %4183 = vmatpush1.bf16.xpose.msra.mxu0 0
    %4184 = vmatprep.subr.bf16.mxu0 0
    %4185 = vmatpush1.bf16.xpose.msra.mxu0 0
    %4186 = vmatprep.subr.bf16.mxu0 0
    %4187 = vmatpush1.bf16.xpose.msra.mxu0 0
    %4188 = vmatprep.subr.bf16.mxu0 0
    %4189 = vmatpush1.bf16.xpose.msra.mxu0 0
    %4190 = vmatprep.subr.bf16.mxu0 0
    %4191 = vmatpush1.bf16.xpose.msra.mxu0 0
    %4192 = vmatprep.subr.bf16.mxu0 0
    %4193 = vmatpush1.bf16.xpose.msra.mxu0 0
    %4194 = vmatprep.subr.bf16.mxu0 0
    %4195 = vmatpush1.bf16.xpose.msra.mxu0 0
    %4196 = vmatprep.subr.bf16.mxu0 0
    %4197 = vmatpush1.bf16.xpose.msra.mxu0 0
    %4198 = vmatprep.subr.bf16.mxu0 0
    %4199 = vmatpush1.bf16.xpose.msra.mxu0 0
    %4200 = vmatprep.subr.bf16.mxu0 0
    %4201 = vmatpush1.bf16.xpose.msra.mxu0 0
    %4202 = vmatprep.mubr.bf16.mxu0 0
    %4203 = vmatmul.mubr.bf16.gmra.mrb[0].mxu0 %v4165
    %v4204 = vpop.f32.mrb[0].mxu0
    %v4205 = vadd.f32 0.0, %v4204
    %v4206 = vpop.f32.mrb[0].mxu0
    %v4207 = vpop.f32.mrb[0].mxu0
    %v4208 = vpop.f32.mrb[0].mxu0
    %4209 = vdwg.mxu0
    %v4210 = vmul.f32 %v3855, 0.25
    %v4211 = vmul.f32 %v3905, 0.25
    %v4212 = vmul.f32 %v3955, 0.25
    %v4213 = vmul.f32 %v4005, 0.25
    %v4214 = vmul.f32 %v4055, 0.25
    %v4215 = vmul.f32 %v4105, 0.25
    %v4216 = vmul.f32 %v4155, 0.25
    %v4217 = vmul.f32 %v4205, 0.25
    %v4218 = vsel %vm194, %v4210, -inf
    %4219 = vmax.xlane.f32.xlu0 %v4218
    %v4220 = vpop.xlane.xlu0 %4219
    %v4221 = vsel %vm194, %v4211, -inf
    %4222 = vmax.xlane.f32.xlu0 %v4221
    %v4223 = vpop.xlane.xlu0 %4222
    %v4224 = vsel %vm194, %v4212, -inf
    %4225 = vmax.xlane.f32.xlu0 %v4224
    %v4226 = vpop.xlane.xlu0 %4225
    %v4227 = vsel %vm194, %v4213, -inf
    %4228 = vmax.xlane.f32.xlu0 %v4227
    %v4229 = vpop.xlane.xlu0 %4228
    %v4230 = vsel %vm194, %v4214, -inf
    %4231 = vmax.xlane.f32.xlu0 %v4230
    %v4232 = vpop.xlane.xlu0 %4231
    %v4233 = vsel %vm194, %v4215, -inf
    %4234 = vmax.xlane.f32.xlu0 %v4233
    %v4235 = vpop.xlane.xlu0 %4234
    %v4236 = vsel %vm194, %v4216, -inf
    %4237 = vmax.xlane.f32.xlu0 %v4236
    %v4238 = vpop.xlane.xlu0 %4237
    %v4239 = vsel %vm194, %v4217, -inf
    %4240 = vmax.xlane.f32.xlu0 %v4239
    %v4241 = vpop.xlane.xlu0 %4240
    %v4242 = vsub.f32 %v4210, %v4220
    %v4243 = vsub.f32 %v4211, %v4223
    %v4244 = vsub.f32 %v4212, %v4226
    %v4245 = vsub.f32 %v4213, %v4229
    %v4246 = vsub.f32 %v4214, %v4232
    %v4247 = vsub.f32 %v4215, %v4235
    %v4248 = vsub.f32 %v4216, %v4238
    %v4249 = vsub.f32 %v4217, %v4241
    %v4250 = vmul.f32 %v4242, 1.442695
    %v4251 = vpow.pop %v4250
    %v4252 = vmul.f32 %v4243, 1.442695
    %v4253 = vpow.pop %v4252
    %v4254 = vmul.f32 %v4244, 1.442695
    %v4255 = vpow.pop %v4254
    %v4256 = vmul.f32 %v4245, 1.442695
    %v4257 = vpow.pop %v4256
    %v4258 = vmul.f32 %v4246, 1.442695
    %v4259 = vpow.pop %v4258
    %v4260 = vmul.f32 %v4247, 1.442695
    %v4261 = vpow.pop %v4260
    %v4262 = vmul.f32 %v4248, 1.442695
    %v4263 = vpow.pop %v4262
    %v4264 = vmul.f32 %v4249, 1.442695
    %v4265 = vpow.pop %v4264
    %v4266 = vsel %vm194, %v4251, 0.0
    %4267 = vadd.xlane.f32.xlu0 %v4266
    %v4268 = vpop.xlane.xlu0 %4267
    %v4269 = vsel %vm194, %v4253, 0.0
    %4270 = vadd.xlane.f32.xlu0 %v4269
    %v4271 = vpop.xlane.xlu0 %4270
    %v4272 = vsel %vm194, %v4255, 0.0
    %4273 = vadd.xlane.f32.xlu0 %v4272
    %v4274 = vpop.xlane.xlu0 %4273
    %v4275 = vsel %vm194, %v4257, 0.0
    %4276 = vadd.xlane.f32.xlu0 %v4275
    %v4277 = vpop.xlane.xlu0 %4276
    %v4278 = vsel %vm194, %v4259, 0.0
    %4279 = vadd.xlane.f32.xlu0 %v4278
    %v4280 = vpop.xlane.xlu0 %4279
    %v4281 = vsel %vm194, %v4261, 0.0
    %4282 = vadd.xlane.f32.xlu0 %v4281
    %v4283 = vpop.xlane.xlu0 %4282
    %v4284 = vsel %vm194, %v4263, 0.0
    %4285 = vadd.xlane.f32.xlu0 %v4284
    %v4286 = vpop.xlane.xlu0 %4285
    %v4287 = vsel %vm194, %v4265, 0.0
    %4288 = vadd.xlane.f32.xlu0 %v4287
    %v4289 = vpop.xlane.xlu0 %4288
    %v4290 = vrcp.pop %v4268
    %v4291 = vrcp.pop %v4271
    %v4292 = vrcp.pop %v4274
    %v4293 = vrcp.pop %v4277
    %v4294 = vrcp.pop %v4280
    %v4295 = vrcp.pop %v4283
    %v4296 = vrcp.pop %v4286
    %v4297 = vrcp.pop %v4289
    %v4298 = vmul.f32 %v4251, %v4290
    %v4299 = vmul.f32 %v4253, %v4291
    %v4300 = vmul.f32 %v4255, %v4292
    %v4301 = vmul.f32 %v4257, %v4293
    %v4302 = vmul.f32 %v4259, %v4294
    %v4303 = vmul.f32 %v4261, %v4295
    %v4304 = vmul.f32 %v4263, %v4296
    %v4305 = vmul.f32 %v4265, %v4297
    %v4306 = vpack.c.bf16 %v4298, %v4298
    %v4307 = vpack.c.bf16 %v4299, %v4299
    %v4308 = vpack.c.bf16 %v4300, %v4300
    %v4309 = vpack.c.bf16 %v4301, %v4301
    %v4310 = vpack.c.bf16 %v4302, %v4302
    %v4311 = vpack.c.bf16 %v4303, %v4303
    %v4312 = vpack.c.bf16 %v4304, %v4304
    %v4313 = vpack.c.bf16 %v4305, %v4305
    %4314 = vrot.lane.b32.xlu0 %v2922, 48
    %v4315 = vpop.permute.xlu0 %4314
    %v4317 = vsel %vm194, %v4306, 0
    %v4320 = vsel %vm913, %v4315, 0
    %4322 = vmatprep.subr.bf16.mxu0 0
    %4323 = vmatpush1.bf16.msra.mxu0 %v4320
    %4324 = vmatprep.subr.bf16.mxu0 0
    %4325 = vmatpush1.bf16.msra.mxu0 0
    %4326 = vmatprep.subr.bf16.mxu0 0
    %4327 = vmatpush1.bf16.msra.mxu0 0
    %4328 = vmatprep.subr.bf16.mxu0 0
    %4329 = vmatpush1.bf16.msra.mxu0 0
    %4330 = vmatprep.subr.bf16.mxu0 0
    %4331 = vmatpush1.bf16.msra.mxu0 0
    %4332 = vmatprep.subr.bf16.mxu0 0
    %4333 = vmatpush1.bf16.msra.mxu0 0
    %4334 = vmatprep.subr.bf16.mxu0 0
    %4335 = vmatpush1.bf16.msra.mxu0 0
    %4336 = vmatprep.subr.bf16.mxu0 0
    %4337 = vmatpush1.bf16.msra.mxu0 0
    %4338 = vmatprep.subr.bf16.mxu0 0
    %4339 = vmatpush1.bf16.msra.mxu0 0
    %4340 = vmatprep.subr.bf16.mxu0 0
    %4341 = vmatpush1.bf16.msra.mxu0 0
    %4342 = vmatprep.subr.bf16.mxu0 0
    %4343 = vmatpush1.bf16.msra.mxu0 0
    %4344 = vmatprep.subr.bf16.mxu0 0
    %4345 = vmatpush1.bf16.msra.mxu0 0
    %4346 = vmatprep.subr.bf16.mxu0 0
    %4347 = vmatpush1.bf16.msra.mxu0 0
    %4348 = vmatprep.subr.bf16.mxu0 0
    %4349 = vmatpush1.bf16.msra.mxu0 0
    %4350 = vmatprep.subr.bf16.mxu0 0
    %4351 = vmatpush1.bf16.msra.mxu0 0
    %4352 = vmatprep.subr.bf16.mxu0 0
    %4353 = vmatpush1.bf16.msra.mxu0 0
    %4354 = vmatprep.mubr.bf16.mxu0 0
    %4355 = vmatmul.mubr.bf16.gmra.mrb[0].mxu0 %v4317
    %v4356 = vpop.f32.mrb[0].mxu0
    %v4357 = vadd.f32 0.0, %v4356
    %v4358 = vpop.f32.mrb[0].mxu0
    %v4359 = vpop.f32.mrb[0].mxu0
    %v4360 = vpop.f32.mrb[0].mxu0
    %4361 = vdwg.mxu0
    %4362 = vrot.lane.b32.xlu0 %v2923, 48
    %v4363 = vpop.permute.xlu0 %4362
    %v4365 = vsel %vm194, %v4307, 0
    %v4368 = vsel %vm913, %v4363, 0
    %4370 = vmatprep.subr.bf16.mxu0 0
    %4371 = vmatpush1.bf16.msra.mxu0 %v4368
    %4372 = vmatprep.subr.bf16.mxu0 0
    %4373 = vmatpush1.bf16.msra.mxu0 0
    %4374 = vmatprep.subr.bf16.mxu0 0
    %4375 = vmatpush1.bf16.msra.mxu0 0
    %4376 = vmatprep.subr.bf16.mxu0 0
    %4377 = vmatpush1.bf16.msra.mxu0 0
    %4378 = vmatprep.subr.bf16.mxu0 0
    %4379 = vmatpush1.bf16.msra.mxu0 0
    %4380 = vmatprep.subr.bf16.mxu0 0
    %4381 = vmatpush1.bf16.msra.mxu0 0
    %4382 = vmatprep.subr.bf16.mxu0 0
    %4383 = vmatpush1.bf16.msra.mxu0 0
    %4384 = vmatprep.subr.bf16.mxu0 0
    %4385 = vmatpush1.bf16.msra.mxu0 0
    %4386 = vmatprep.subr.bf16.mxu0 0
    %4387 = vmatpush1.bf16.msra.mxu0 0
    %4388 = vmatprep.subr.bf16.mxu0 0
    %4389 = vmatpush1.bf16.msra.mxu0 0
    %4390 = vmatprep.subr.bf16.mxu0 0
    %4391 = vmatpush1.bf16.msra.mxu0 0
    %4392 = vmatprep.subr.bf16.mxu0 0
    %4393 = vmatpush1.bf16.msra.mxu0 0
    %4394 = vmatprep.subr.bf16.mxu0 0
    %4395 = vmatpush1.bf16.msra.mxu0 0
    %4396 = vmatprep.subr.bf16.mxu0 0
    %4397 = vmatpush1.bf16.msra.mxu0 0
    %4398 = vmatprep.subr.bf16.mxu0 0
    %4399 = vmatpush1.bf16.msra.mxu0 0
    %4400 = vmatprep.subr.bf16.mxu0 0
    %4401 = vmatpush1.bf16.msra.mxu0 0
    %4402 = vmatprep.mubr.bf16.mxu0 0
    %4403 = vmatmul.mubr.bf16.gmra.mrb[0].mxu0 %v4365
    %v4404 = vpop.f32.mrb[0].mxu0
    %v4405 = vadd.f32 0.0, %v4404
    %v4406 = vpop.f32.mrb[0].mxu0
    %v4407 = vpop.f32.mrb[0].mxu0
    %v4408 = vpop.f32.mrb[0].mxu0
    %4409 = vdwg.mxu0
    %4410 = vrot.lane.b32.xlu0 %v2924, 48
    %v4411 = vpop.permute.xlu0 %4410
    %v4413 = vsel %vm194, %v4308, 0
    %v4416 = vsel %vm913, %v4411, 0
    %4418 = vmatprep.subr.bf16.mxu0 0
    %4419 = vmatpush1.bf16.msra.mxu0 %v4416
    %4420 = vmatprep.subr.bf16.mxu0 0
    %4421 = vmatpush1.bf16.msra.mxu0 0
    %4422 = vmatprep.subr.bf16.mxu0 0
    %4423 = vmatpush1.bf16.msra.mxu0 0
    %4424 = vmatprep.subr.bf16.mxu0 0
    %4425 = vmatpush1.bf16.msra.mxu0 0
    %4426 = vmatprep.subr.bf16.mxu0 0
    %4427 = vmatpush1.bf16.msra.mxu0 0
    %4428 = vmatprep.subr.bf16.mxu0 0
    %4429 = vmatpush1.bf16.msra.mxu0 0
    %4430 = vmatprep.subr.bf16.mxu0 0
    %4431 = vmatpush1.bf16.msra.mxu0 0
    %4432 = vmatprep.subr.bf16.mxu0 0
    %4433 = vmatpush1.bf16.msra.mxu0 0
    %4434 = vmatprep.subr.bf16.mxu0 0
    %4435 = vmatpush1.bf16.msra.mxu0 0
    %4436 = vmatprep.subr.bf16.mxu0 0
    %4437 = vmatpush1.bf16.msra.mxu0 0
    %4438 = vmatprep.subr.bf16.mxu0 0
    %4439 = vmatpush1.bf16.msra.mxu0 0
    %4440 = vmatprep.subr.bf16.mxu0 0
    %4441 = vmatpush1.bf16.msra.mxu0 0
    %4442 = vmatprep.subr.bf16.mxu0 0
    %4443 = vmatpush1.bf16.msra.mxu0 0
    %4444 = vmatprep.subr.bf16.mxu0 0
    %4445 = vmatpush1.bf16.msra.mxu0 0
    %4446 = vmatprep.subr.bf16.mxu0 0
    %4447 = vmatpush1.bf16.msra.mxu0 0
    %4448 = vmatprep.subr.bf16.mxu0 0
    %4449 = vmatpush1.bf16.msra.mxu0 0
    %4450 = vmatprep.mubr.bf16.mxu0 0
    %4451 = vmatmul.mubr.bf16.gmra.mrb[0].mxu0 %v4413
    %v4452 = vpop.f32.mrb[0].mxu0
    %v4453 = vadd.f32 0.0, %v4452
    %v4454 = vpop.f32.mrb[0].mxu0
    %v4455 = vpop.f32.mrb[0].mxu0
    %v4456 = vpop.f32.mrb[0].mxu0
    %4457 = vdwg.mxu0
    %4458 = vrot.lane.b32.xlu0 %v2925, 48
    %v4459 = vpop.permute.xlu0 %4458
    %v4461 = vsel %vm194, %v4309, 0
    %v4464 = vsel %vm913, %v4459, 0
    %4466 = vmatprep.subr.bf16.mxu0 0
    %4467 = vmatpush1.bf16.msra.mxu0 %v4464
    %4468 = vmatprep.subr.bf16.mxu0 0
    %4469 = vmatpush1.bf16.msra.mxu0 0
    %4470 = vmatprep.subr.bf16.mxu0 0
    %4471 = vmatpush1.bf16.msra.mxu0 0
    %4472 = vmatprep.subr.bf16.mxu0 0
    %4473 = vmatpush1.bf16.msra.mxu0 0
    %4474 = vmatprep.subr.bf16.mxu0 0
    %4475 = vmatpush1.bf16.msra.mxu0 0
    %4476 = vmatprep.subr.bf16.mxu0 0
    %4477 = vmatpush1.bf16.msra.mxu0 0
    %4478 = vmatprep.subr.bf16.mxu0 0
    %4479 = vmatpush1.bf16.msra.mxu0 0
    %4480 = vmatprep.subr.bf16.mxu0 0
    %4481 = vmatpush1.bf16.msra.mxu0 0
    %4482 = vmatprep.subr.bf16.mxu0 0
    %4483 = vmatpush1.bf16.msra.mxu0 0
    %4484 = vmatprep.subr.bf16.mxu0 0
    %4485 = vmatpush1.bf16.msra.mxu0 0
    %4486 = vmatprep.subr.bf16.mxu0 0
    %4487 = vmatpush1.bf16.msra.mxu0 0
    %4488 = vmatprep.subr.bf16.mxu0 0
    %4489 = vmatpush1.bf16.msra.mxu0 0
    %4490 = vmatprep.subr.bf16.mxu0 0
    %4491 = vmatpush1.bf16.msra.mxu0 0
    %4492 = vmatprep.subr.bf16.mxu0 0
    %4493 = vmatpush1.bf16.msra.mxu0 0
    %4494 = vmatprep.subr.bf16.mxu0 0
    %4495 = vmatpush1.bf16.msra.mxu0 0
    %4496 = vmatprep.subr.bf16.mxu0 0
    %4497 = vmatpush1.bf16.msra.mxu0 0
    %4498 = vmatprep.mubr.bf16.mxu0 0
    %4499 = vmatmul.mubr.bf16.gmra.mrb[0].mxu0 %v4461
    %v4500 = vpop.f32.mrb[0].mxu0
    %v4501 = vadd.f32 0.0, %v4500
    %v4502 = vpop.f32.mrb[0].mxu0
    %v4503 = vpop.f32.mrb[0].mxu0
    %v4504 = vpop.f32.mrb[0].mxu0
    %4505 = vdwg.mxu0
    %4506 = vrot.lane.b32.xlu0 %v2926, 48
    %v4507 = vpop.permute.xlu0 %4506
    %v4509 = vsel %vm194, %v4310, 0
    %v4512 = vsel %vm913, %v4507, 0
    %4514 = vmatprep.subr.bf16.mxu0 0
    %4515 = vmatpush1.bf16.msra.mxu0 %v4512
    %4516 = vmatprep.subr.bf16.mxu0 0
    %4517 = vmatpush1.bf16.msra.mxu0 0
    %4518 = vmatprep.subr.bf16.mxu0 0
    %4519 = vmatpush1.bf16.msra.mxu0 0
    %4520 = vmatprep.subr.bf16.mxu0 0
    %4521 = vmatpush1.bf16.msra.mxu0 0
    %4522 = vmatprep.subr.bf16.mxu0 0
    %4523 = vmatpush1.bf16.msra.mxu0 0
    %4524 = vmatprep.subr.bf16.mxu0 0
    %4525 = vmatpush1.bf16.msra.mxu0 0
    %4526 = vmatprep.subr.bf16.mxu0 0
    %4527 = vmatpush1.bf16.msra.mxu0 0
    %4528 = vmatprep.subr.bf16.mxu0 0
    %4529 = vmatpush1.bf16.msra.mxu0 0
    %4530 = vmatprep.subr.bf16.mxu0 0
    %4531 = vmatpush1.bf16.msra.mxu0 0
    %4532 = vmatprep.subr.bf16.mxu0 0
    %4533 = vmatpush1.bf16.msra.mxu0 0
    %4534 = vmatprep.subr.bf16.mxu0 0
    %4535 = vmatpush1.bf16.msra.mxu0 0
    %4536 = vmatprep.subr.bf16.mxu0 0
    %4537 = vmatpush1.bf16.msra.mxu0 0
    %4538 = vmatprep.subr.bf16.mxu0 0
    %4539 = vmatpush1.bf16.msra.mxu0 0
    %4540 = vmatprep.subr.bf16.mxu0 0
    %4541 = vmatpush1.bf16.msra.mxu0 0
    %4542 = vmatprep.subr.bf16.mxu0 0
    %4543 = vmatpush1.bf16.msra.mxu0 0
    %4544 = vmatprep.subr.bf16.mxu0 0
    %4545 = vmatpush1.bf16.msra.mxu0 0
    %4546 = vmatprep.mubr.bf16.mxu0 0
    %4547 = vmatmul.mubr.bf16.gmra.mrb[0].mxu0 %v4509
    %v4548 = vpop.f32.mrb[0].mxu0
    %v4549 = vadd.f32 0.0, %v4548
    %v4550 = vpop.f32.mrb[0].mxu0
    %v4551 = vpop.f32.mrb[0].mxu0
    %v4552 = vpop.f32.mrb[0].mxu0
    %4553 = vdwg.mxu0
    %4554 = vrot.lane.b32.xlu0 %v2927, 48
    %v4555 = vpop.permute.xlu0 %4554
    %v4557 = vsel %vm194, %v4311, 0
    %v4560 = vsel %vm913, %v4555, 0
    %4562 = vmatprep.subr.bf16.mxu0 0
    %4563 = vmatpush1.bf16.msra.mxu0 %v4560
    %4564 = vmatprep.subr.bf16.mxu0 0
    %4565 = vmatpush1.bf16.msra.mxu0 0
    %4566 = vmatprep.subr.bf16.mxu0 0
    %4567 = vmatpush1.bf16.msra.mxu0 0
    %4568 = vmatprep.subr.bf16.mxu0 0
    %4569 = vmatpush1.bf16.msra.mxu0 0
    %4570 = vmatprep.subr.bf16.mxu0 0
    %4571 = vmatpush1.bf16.msra.mxu0 0
    %4572 = vmatprep.subr.bf16.mxu0 0
    %4573 = vmatpush1.bf16.msra.mxu0 0
    %4574 = vmatprep.subr.bf16.mxu0 0
    %4575 = vmatpush1.bf16.msra.mxu0 0
    %4576 = vmatprep.subr.bf16.mxu0 0
    %4577 = vmatpush1.bf16.msra.mxu0 0
    %4578 = vmatprep.subr.bf16.mxu0 0
    %4579 = vmatpush1.bf16.msra.mxu0 0
    %4580 = vmatprep.subr.bf16.mxu0 0
    %4581 = vmatpush1.bf16.msra.mxu0 0
    %4582 = vmatprep.subr.bf16.mxu0 0
    %4583 = vmatpush1.bf16.msra.mxu0 0
    %4584 = vmatprep.subr.bf16.mxu0 0
    %4585 = vmatpush1.bf16.msra.mxu0 0
    %4586 = vmatprep.subr.bf16.mxu0 0
    %4587 = vmatpush1.bf16.msra.mxu0 0
    %4588 = vmatprep.subr.bf16.mxu0 0
    %4589 = vmatpush1.bf16.msra.mxu0 0
    %4590 = vmatprep.subr.bf16.mxu0 0
    %4591 = vmatpush1.bf16.msra.mxu0 0
    %4592 = vmatprep.subr.bf16.mxu0 0
    %4593 = vmatpush1.bf16.msra.mxu0 0
    %4594 = vmatprep.mubr.bf16.mxu0 0
    %4595 = vmatmul.mubr.bf16.gmra.mrb[0].mxu0 %v4557
    %v4596 = vpop.f32.mrb[0].mxu0
    %v4597 = vadd.f32 0.0, %v4596
    %v4598 = vpop.f32.mrb[0].mxu0
    %v4599 = vpop.f32.mrb[0].mxu0
    %v4600 = vpop.f32.mrb[0].mxu0
    %4601 = vdwg.mxu0
    %4602 = vrot.lane.b32.xlu0 %v2928, 48
    %v4603 = vpop.permute.xlu0 %4602
    %v4605 = vsel %vm194, %v4312, 0
    %v4608 = vsel %vm913, %v4603, 0
    %4610 = vmatprep.subr.bf16.mxu0 0
    %4611 = vmatpush1.bf16.msra.mxu0 %v4608
    %4612 = vmatprep.subr.bf16.mxu0 0
    %4613 = vmatpush1.bf16.msra.mxu0 0
    %4614 = vmatprep.subr.bf16.mxu0 0
    %4615 = vmatpush1.bf16.msra.mxu0 0
    %4616 = vmatprep.subr.bf16.mxu0 0
    %4617 = vmatpush1.bf16.msra.mxu0 0
    %4618 = vmatprep.subr.bf16.mxu0 0
    %4619 = vmatpush1.bf16.msra.mxu0 0
    %4620 = vmatprep.subr.bf16.mxu0 0
    %4621 = vmatpush1.bf16.msra.mxu0 0
    %4622 = vmatprep.subr.bf16.mxu0 0
    %4623 = vmatpush1.bf16.msra.mxu0 0
    %4624 = vmatprep.subr.bf16.mxu0 0
    %4625 = vmatpush1.bf16.msra.mxu0 0
    %4626 = vmatprep.subr.bf16.mxu0 0
    %4627 = vmatpush1.bf16.msra.mxu0 0
    %4628 = vmatprep.subr.bf16.mxu0 0
    %4629 = vmatpush1.bf16.msra.mxu0 0
    %4630 = vmatprep.subr.bf16.mxu0 0
    %4631 = vmatpush1.bf16.msra.mxu0 0
    %4632 = vmatprep.subr.bf16.mxu0 0
    %4633 = vmatpush1.bf16.msra.mxu0 0
    %4634 = vmatprep.subr.bf16.mxu0 0
    %4635 = vmatpush1.bf16.msra.mxu0 0
    %4636 = vmatprep.subr.bf16.mxu0 0
    %4637 = vmatpush1.bf16.msra.mxu0 0
    %4638 = vmatprep.subr.bf16.mxu0 0
    %4639 = vmatpush1.bf16.msra.mxu0 0
    %4640 = vmatprep.subr.bf16.mxu0 0
    %4641 = vmatpush1.bf16.msra.mxu0 0
    %4642 = vmatprep.mubr.bf16.mxu0 0
    %4643 = vmatmul.mubr.bf16.gmra.mrb[0].mxu0 %v4605
    %v4644 = vpop.f32.mrb[0].mxu0
    %v4645 = vadd.f32 0.0, %v4644
    %v4646 = vpop.f32.mrb[0].mxu0
    %v4647 = vpop.f32.mrb[0].mxu0
    %v4648 = vpop.f32.mrb[0].mxu0
    %4649 = vdwg.mxu0
    %4650 = vrot.lane.b32.xlu0 %v2929, 48
    %v4651 = vpop.permute.xlu0 %4650
    %v4653 = vsel %vm194, %v4313, 0
    %v4656 = vsel %vm913, %v4651, 0
    %4658 = vmatprep.subr.bf16.mxu0 0
    %4659 = vmatpush1.bf16.msra.mxu0 %v4656
    %4660 = vmatprep.subr.bf16.mxu0 0
    %4661 = vmatpush1.bf16.msra.mxu0 0
    %4662 = vmatprep.subr.bf16.mxu0 0
    %4663 = vmatpush1.bf16.msra.mxu0 0
    %4664 = vmatprep.subr.bf16.mxu0 0
    %4665 = vmatpush1.bf16.msra.mxu0 0
    %4666 = vmatprep.subr.bf16.mxu0 0
    %4667 = vmatpush1.bf16.msra.mxu0 0
    %4668 = vmatprep.subr.bf16.mxu0 0
    %4669 = vmatpush1.bf16.msra.mxu0 0
    %4670 = vmatprep.subr.bf16.mxu0 0
    %4671 = vmatpush1.bf16.msra.mxu0 0
    %4672 = vmatprep.subr.bf16.mxu0 0
    %4673 = vmatpush1.bf16.msra.mxu0 0
    %4674 = vmatprep.subr.bf16.mxu0 0
    %4675 = vmatpush1.bf16.msra.mxu0 0
    %4676 = vmatprep.subr.bf16.mxu0 0
    %4677 = vmatpush1.bf16.msra.mxu0 0
    %4678 = vmatprep.subr.bf16.mxu0 0
    %4679 = vmatpush1.bf16.msra.mxu0 0
    %4680 = vmatprep.subr.bf16.mxu0 0
    %4681 = vmatpush1.bf16.msra.mxu0 0
    %4682 = vmatprep.subr.bf16.mxu0 0
    %4683 = vmatpush1.bf16.msra.mxu0 0
    %4684 = vmatprep.subr.bf16.mxu0 0
    %4685 = vmatpush1.bf16.msra.mxu0 0
    %4686 = vmatprep.subr.bf16.mxu0 0
    %4687 = vmatpush1.bf16.msra.mxu0 0
    %4688 = vmatprep.subr.bf16.mxu0 0
    %4689 = vmatpush1.bf16.msra.mxu0 0
    %4690 = vmatprep.mubr.bf16.mxu0 0
    %4691 = vmatmul.mubr.bf16.gmra.mrb[0].mxu0 %v4653
    %v4692 = vpop.f32.mrb[0].mxu0
    %v4693 = vadd.f32 0.0, %v4692
    %v4694 = vpop.f32.mrb[0].mxu0
    %v4695 = vpop.f32.mrb[0].mxu0
    %v4696 = vpop.f32.mrb[0].mxu0
    %4697 = vdwg.mxu0
    %4706 = vrot.lane.b32.xlu0 %v4357, 16
    %v4707 = vpop.permute.xlu0 %4706
    %4708 = vrot.lane.b32.xlu0 %v4405, 16
    %v4709 = vpop.permute.xlu0 %4708
    %4710 = vrot.lane.b32.xlu0 %v4453, 16
    %v4711 = vpop.permute.xlu0 %4710
    %4712 = vrot.lane.b32.xlu0 %v4501, 16
    %v4713 = vpop.permute.xlu0 %4712
    %4714 = vrot.lane.b32.xlu0 %v4549, 16
    %v4715 = vpop.permute.xlu0 %4714
    %4716 = vrot.lane.b32.xlu0 %v4597, 16
    %v4717 = vpop.permute.xlu0 %4716
    %4718 = vrot.lane.b32.xlu0 %v4645, 16
    %v4719 = vpop.permute.xlu0 %4718
    %4720 = vrot.lane.b32.xlu0 %v4693, 16
    %v4721 = vpop.permute.xlu0 %4720
    %v4730 = vsel %vm414, %v3469, %v4707
    %v4731 = vsel %vm414, %v3517, %v4709
    %v4732 = vsel %vm414, %v3565, %v4711
    %v4733 = vsel %vm414, %v3613, %v4713
    %v4734 = vsel %vm414, %v3661, %v4715
    %v4735 = vsel %vm414, %v3709, %v4717
    %v4736 = vsel %vm414, %v3757, %v4719
    %v4737 = vsel %vm414, %v3805, %v4721
    %v4738 = vpack.c.bf16 %v4731, %v4730
    %v4739 = vpack.c.bf16 %v4733, %v4732
    %v4740 = vpack.c.bf16 %v4735, %v4734
    %v4741 = vpack.c.bf16 %v4737, %v4736
    %s4742 = scalar_lea.vmem [#allocation5], 16
    %v4743 = vld [vmem:[%s4742] sm:$0xf]
    %v4744 = vld [vmem:[%s4742 + $0x4] sm:$0xf]
    %v4745 = vld [vmem:[%s4742 + $0x8] sm:$0xf]
    %v4746 = vld [vmem:[%s4742 + $0xc] sm:$0xf]
    %v4751 = vunpack.c.l.b16 %v4743
    %v4752 = vunpack.c.l.b16 %v4744
    %v4753 = vunpack.c.l.b16 %v4745
    %v4754 = vunpack.c.l.b16 %v4746
    %v4755 = vpack.c.b16 %v4752, %v4751
    %v4756 = vpack.c.b16 %v4754, %v4753
    %v4760 = vsel %vm325, %v4738, 0
    %v4763 = vsel %vm325, %v4739, 0
    %v4766 = vsel %vm325, %v4740, 0
    %v4769 = vsel %vm325, %v4741, 0
    %4771 = vmatprep.subr.bf16.mxu0 0
    %4772 = vmatpush1.bf16.msra.mxu0 %v4755
    %4773 = vmatprep.subr.bf16.mxu0 0
    %4774 = vmatpush1.bf16.msra.mxu0 %v4756
    %4775 = vmatprep.subr.bf16.mxu0 0
    %4776 = vmatpush1.bf16.msra.mxu0 0
    %4777 = vmatprep.subr.bf16.mxu0 0
    %4778 = vmatpush1.bf16.msra.mxu0 0
    %4779 = vmatprep.subr.bf16.mxu0 0
    %4780 = vmatpush1.bf16.msra.mxu0 0
    %4781 = vmatprep.subr.bf16.mxu0 0
    %4782 = vmatpush1.bf16.msra.mxu0 0
    %4783 = vmatprep.subr.bf16.mxu0 0
    %4784 = vmatpush1.bf16.msra.mxu0 0
    %4785 = vmatprep.subr.bf16.mxu0 0
    %4786 = vmatpush1.bf16.msra.mxu0 0
    %4787 = vmatprep.subr.bf16.mxu0 0
    %4788 = vmatpush1.bf16.msra.mxu0 0
    %4789 = vmatprep.subr.bf16.mxu0 0
    %4790 = vmatpush1.bf16.msra.mxu0 0
    %4791 = vmatprep.subr.bf16.mxu0 0
    %4792 = vmatpush1.bf16.msra.mxu0 0
    %4793 = vmatprep.subr.bf16.mxu0 0
    %4794 = vmatpush1.bf16.msra.mxu0 0
    %4795 = vmatprep.subr.bf16.mxu0 0
    %4796 = vmatpush1.bf16.msra.mxu0 0
    %4797 = vmatprep.subr.bf16.mxu0 0
    %4798 = vmatpush1.bf16.msra.mxu0 0
    %4799 = vmatprep.subr.bf16.mxu0 0
    %4800 = vmatpush1.bf16.msra.mxu0 0
    %4801 = vmatprep.subr.bf16.mxu0 0
    %4802 = vmatpush1.bf16.msra.mxu0 0
    %4803 = vmatprep.mubr.bf16.mxu0 0
    %4804 = vmatmul.mubr.bf16.gmra.mrb[0].mxu0 %v4760
    %v4805 = vpop.f32.mrb[0].mxu0
    %v4806 = vadd.f32 0.0, %v4805
    %v4807 = vpop.f32.mrb[0].mxu0
    %v4808 = vpop.f32.mrb[0].mxu0
    %v4809 = vadd.f32 0.0, %v4808
    %v4810 = vpop.f32.mrb[0].mxu0
    %4811 = vmatprep.mubr.bf16.mxu0 0
    %4812 = vmatmul.mubr.bf16.gmra.mrb[0].mxu0 %v4763
    %v4813 = vpop.f32.mrb[0].mxu0
    %v4814 = vadd.f32 0.0, %v4813
    %v4815 = vpop.f32.mrb[0].mxu0
    %v4816 = vpop.f32.mrb[0].mxu0
    %v4817 = vadd.f32 0.0, %v4816
    %v4818 = vpop.f32.mrb[0].mxu0
    %4819 = vmatprep.mubr.bf16.mxu0 0
    %4820 = vmatmul.mubr.bf16.gmra.mrb[0].mxu0 %v4766
    %v4821 = vpop.f32.mrb[0].mxu0
    %v4822 = vadd.f32 0.0, %v4821
    %v4823 = vpop.f32.mrb[0].mxu0
    %v4824 = vpop.f32.mrb[0].mxu0
    %v4825 = vadd.f32 0.0, %v4824
    %v4826 = vpop.f32.mrb[0].mxu0
    %4827 = vmatprep.mubr.bf16.mxu0 0
    %4828 = vmatmul.mubr.bf16.gmra.mrb[0].mxu0 %v4769
    %v4829 = vpop.f32.mrb[0].mxu0
    %v4830 = vadd.f32 0.0, %v4829
    %v4831 = vpop.f32.mrb[0].mxu0
    %v4832 = vpop.f32.mrb[0].mxu0
    %v4833 = vadd.f32 0.0, %v4832
    %v4834 = vpop.f32.mrb[0].mxu0
    %4835 = vdwg.mxu0
    %v4836 = vadd.f32 %v2816, %v4806
    %v4837 = vadd.f32 %v2817, %v4809
    %v4838 = vadd.f32 %v2818, %v4814
    %v4839 = vadd.f32 %v2819, %v4817
    %v4840 = vadd.f32 %v2820, %v4822
    %v4841 = vadd.f32 %v2821, %v4825
    %v4842 = vadd.f32 %v2822, %v4830
    %v4843 = vadd.f32 %v2823, %v4833
    %v4844 = vld [vmem:[%s9 + $0x1] sm:$0x1]
    %v4845 = vld [vmem:[%s10 + $0x1] sm:$0x1]
    %v4846 = vsel %vm325, %v4836, 0.0
    %4847 = vadd.xlane.f32.xlu0 %v4846
    %v4848 = vpop.xlane.xlu0 %4847
    %v4849 = vsel %vm325, %v4837, 0.0
    %4850 = vadd.xlane.f32.xlu0 %v4849
    %v4851 = vpop.xlane.xlu0 %4850
    %v4852 = vsel %vm325, %v4838, 0.0
    %4853 = vadd.xlane.f32.xlu0 %v4852
    %v4854 = vpop.xlane.xlu0 %4853
    %v4855 = vsel %vm325, %v4839, 0.0
    %4856 = vadd.xlane.f32.xlu0 %v4855
    %v4857 = vpop.xlane.xlu0 %4856
    %v4858 = vsel %vm325, %v4840, 0.0
    %4859 = vadd.xlane.f32.xlu0 %v4858
    %v4860 = vpop.xlane.xlu0 %4859
    %v4861 = vsel %vm325, %v4841, 0.0
    %4862 = vadd.xlane.f32.xlu0 %v4861
    %v4863 = vpop.xlane.xlu0 %4862
    %v4864 = vsel %vm325, %v4842, 0.0
    %4865 = vadd.xlane.f32.xlu0 %v4864
    %v4866 = vpop.xlane.xlu0 %4865
    %v4867 = vsel %vm325, %v4843, 0.0
    %4868 = vadd.xlane.f32.xlu0 %v4867
    %v4869 = vpop.xlane.xlu0 %4868
    %v4870 = vmul.f32 %v4848, %v2352
    %v4871 = vmul.f32 %v4851, %v2352
    %v4872 = vmul.f32 %v4854, %v2352
    %v4873 = vmul.f32 %v4857, %v2352
    %v4874 = vmul.f32 %v4860, %v2352
    %v4875 = vmul.f32 %v4863, %v2352
    %v4876 = vmul.f32 %v4866, %v2352
    %v4877 = vmul.f32 %v4869, %v2352
    %v4878 = vsub.f32 %v4836, %v4870
    %v4879 = vsub.f32 %v4837, %v4871
    %v4880 = vsub.f32 %v4838, %v4872
    %v4881 = vsub.f32 %v4839, %v4873
    %v4882 = vsub.f32 %v4840, %v4874
    %v4883 = vsub.f32 %v4841, %v4875
    %v4884 = vsub.f32 %v4842, %v4876
    %v4885 = vsub.f32 %v4843, %v4877
    %v4886 = vmul.f32 %v4878, %v4878
    %v4887 = vmul.f32 %v4879, %v4879
    %v4888 = vmul.f32 %v4880, %v4880
    %v4889 = vmul.f32 %v4881, %v4881
    %v4890 = vmul.f32 %v4882, %v4882
    %v4891 = vmul.f32 %v4883, %v4883
    %v4892 = vmul.f32 %v4884, %v4884
    %v4893 = vmul.f32 %v4885, %v4885
    %v4894 = vsel %vm325, %v4886, 0.0
    %4895 = vadd.xlane.f32.xlu0 %v4894
    %v4896 = vpop.xlane.xlu0 %4895
    %v4897 = vsel %vm325, %v4887, 0.0
    %4898 = vadd.xlane.f32.xlu0 %v4897
    %v4899 = vpop.xlane.xlu0 %4898
    %v4900 = vsel %vm325, %v4888, 0.0
    %4901 = vadd.xlane.f32.xlu0 %v4900
    %v4902 = vpop.xlane.xlu0 %4901
    %v4903 = vsel %vm325, %v4889, 0.0
    %4904 = vadd.xlane.f32.xlu0 %v4903
    %v4905 = vpop.xlane.xlu0 %4904
    %v4906 = vsel %vm325, %v4890, 0.0
    %4907 = vadd.xlane.f32.xlu0 %v4906
    %v4908 = vpop.xlane.xlu0 %4907
    %v4909 = vsel %vm325, %v4891, 0.0
    %4910 = vadd.xlane.f32.xlu0 %v4909
    %v4911 = vpop.xlane.xlu0 %4910
    %v4912 = vsel %vm325, %v4892, 0.0
    %4913 = vadd.xlane.f32.xlu0 %v4912
    %v4914 = vpop.xlane.xlu0 %4913
    %v4915 = vsel %vm325, %v4893, 0.0
    %4916 = vadd.xlane.f32.xlu0 %v4915
    %v4917 = vpop.xlane.xlu0 %4916
    %v4918 = vmul.f32 %v4896, %v2352
    %v4919 = vmul.f32 %v4899, %v2352
    %v4920 = vmul.f32 %v4902, %v2352
    %v4921 = vmul.f32 %v4905, %v2352
    %v4922 = vmul.f32 %v4908, %v2352
    %v4923 = vmul.f32 %v4911, %v2352
    %v4924 = vmul.f32 %v4914, %v2352
    %v4925 = vmul.f32 %v4917, %v2352
    %v4926 = vadd.f32 %v4918, 1e-05
    %v4927 = vadd.f32 %v4919, 1e-05
    %v4928 = vadd.f32 %v4920, 1e-05
    %v4929 = vadd.f32 %v4921, 1e-05
    %v4930 = vadd.f32 %v4922, 1e-05
    %v4931 = vadd.f32 %v4923, 1e-05
    %v4932 = vadd.f32 %v4924, 1e-05
    %v4933 = vadd.f32 %v4925, 1e-05
    %v4934 = vrsqrt.pop %v4926
    %v4935 = vrsqrt.pop %v4927
    %v4936 = vrsqrt.pop %v4928
    %v4937 = vrsqrt.pop %v4929
    %v4938 = vrsqrt.pop %v4930
    %v4939 = vrsqrt.pop %v4931
    %v4940 = vrsqrt.pop %v4932
    %v4941 = vrsqrt.pop %v4933
    %v4942 = vmul.f32 %v4878, %v4934
    %v4943 = vmul.f32 %v4879, %v4935
    %v4944 = vmul.f32 %v4880, %v4936
    %v4945 = vmul.f32 %v4881, %v4937
    %v4946 = vmul.f32 %v4882, %v4938
    %v4947 = vmul.f32 %v4883, %v4939
    %v4948 = vmul.f32 %v4884, %v4940
    %v4949 = vmul.f32 %v4885, %v4941
    %v4950 = vlaneseq
    %v4951 = vshrl.u32 %v4950, 7
    %v4952 = vsub.s32 0, %v4951
    %v4953 = vrot.slane %v4844, %v4952
    %v4954 = vmul.f32 %v4942, %v4953
    %v4955 = vmul.f32 %v4943, %v4953
    %v4956 = vmul.f32 %v4944, %v4953
    %v4957 = vmul.f32 %v4945, %v4953
    %v4958 = vmul.f32 %v4946, %v4953
    %v4959 = vmul.f32 %v4947, %v4953
    %v4960 = vmul.f32 %v4948, %v4953
    %v4961 = vmul.f32 %v4949, %v4953
    %v4962 = vlaneseq
    %v4963 = vshrl.u32 %v4962, 7
    %v4964 = vsub.s32 0, %v4963
    %v4965 = vrot.slane %v4845, %v4964
    %v4966 = vadd.f32 %v4954, %v4965
    %v4967 = vadd.f32 %v4955, %v4965
    %v4968 = vadd.f32 %v4956, %v4965
    %v4969 = vadd.f32 %v4957, %v4965
    %v4970 = vadd.f32 %v4958, %v4965
    %v4971 = vadd.f32 %v4959, %v4965
    %v4972 = vadd.f32 %v4960, %v4965
    %v4973 = vadd.f32 %v4961, %v4965
    %v4974 = vpack.c.bf16 %v4967, %v4966
    %v4975 = vpack.c.bf16 %v4969, %v4968
    %v4976 = vpack.c.bf16 %v4971, %v4970
    %v4977 = vpack.c.bf16 %v4973, %v4972
    %s4978 = scalar_lea.vmem [#allocation7], 16
    %v4979 = vld [vmem:[%s4978] sm:$0xf]
    %v4980 = vld [vmem:[%s4978 + $0x4] sm:$0xf]
    %v4981 = vld [vmem:[%s4978 + $0x8] sm:$0xf]
    %v4982 = vld [vmem:[%s4978 + $0xc] sm:$0xf]
    %v4983 = vld [vmem:[%s6 + $0x1] sm:$0x1]
    %v4984 = vlaneseq
    %v4985 = vshrl.u32 %v4984, 7
    %v4986 = vsub.s32 0, %v4985
    %v4987 = vrot.slane %v4983, %v4986
    %v4992 = vunpack.c.l.b16 %v4979
    %v4993 = vunpack.c.l.b16 %v4980
    %v4994 = vunpack.c.l.b16 %v4981
    %v4995 = vunpack.c.l.b16 %v4982
    %v4996 = vpack.c.b16 %v4993, %v4992
    %v4997 = vpack.c.b16 %v4995, %v4994
    %v5001 = vsel %vm325, %v4974, 0
    %v5004 = vsel %vm325, %v4975, 0
    %v5007 = vsel %vm325, %v4976, 0
    %v5010 = vsel %vm325, %v4977, 0
    %5012 = vmatprep.subr.bf16.mxu0 0
    %5013 = vmatpush1.bf16.msra.mxu0 %v4996
    %5014 = vmatprep.subr.bf16.mxu0 0
    %5015 = vmatpush1.bf16.msra.mxu0 %v4997
    %5016 = vmatprep.subr.bf16.mxu0 0
    %5017 = vmatpush1.bf16.msra.mxu0 0
    %5018 = vmatprep.subr.bf16.mxu0 0
    %5019 = vmatpush1.bf16.msra.mxu0 0
    %5020 = vmatprep.subr.bf16.mxu0 0
    %5021 = vmatpush1.bf16.msra.mxu0 0
    %5022 = vmatprep.subr.bf16.mxu0 0
    %5023 = vmatpush1.bf16.msra.mxu0 0
    %5024 = vmatprep.subr.bf16.mxu0 0
    %5025 = vmatpush1.bf16.msra.mxu0 0
    %5026 = vmatprep.subr.bf16.mxu0 0
    %5027 = vmatpush1.bf16.msra.mxu0 0
    %5028 = vmatprep.subr.bf16.mxu0 0
    %5029 = vmatpush1.bf16.msra.mxu0 0
    %5030 = vmatprep.subr.bf16.mxu0 0
    %5031 = vmatpush1.bf16.msra.mxu0 0
    %5032 = vmatprep.subr.bf16.mxu0 0
    %5033 = vmatpush1.bf16.msra.mxu0 0
    %5034 = vmatprep.subr.bf16.mxu0 0
    %5035 = vmatpush1.bf16.msra.mxu0 0
    %5036 = vmatprep.subr.bf16.mxu0 0
    %5037 = vmatpush1.bf16.msra.mxu0 0
    %5038 = vmatprep.subr.bf16.mxu0 0
    %5039 = vmatpush1.bf16.msra.mxu0 0
    %5040 = vmatprep.subr.bf16.mxu0 0
    %5041 = vmatpush1.bf16.msra.mxu0 0
    %5042 = vmatprep.subr.bf16.mxu0 0
    %5043 = vmatpush1.bf16.msra.mxu0 0
    %5044 = vmatprep.mubr.bf16.mxu0 0
    %5045 = vmatmul.mubr.bf16.gmra.mrb[0].mxu0 %v5001
    %v5046 = vpop.f32.mrb[0].mxu0
    %v5047 = vadd.f32 %v4987, %v5046
    %v5048 = vpop.f32.mrb[0].mxu0
    %v5049 = vpop.f32.mrb[0].mxu0
    %v5050 = vadd.f32 %v4987, %v5049
    %v5051 = vpop.f32.mrb[0].mxu0
    %5052 = vmatprep.mubr.bf16.mxu0 0
    %5053 = vmatmul.mubr.bf16.gmra.mrb[0].mxu0 %v5004
    %v5054 = vpop.f32.mrb[0].mxu0
    %v5055 = vadd.f32 %v4987, %v5054
    %v5056 = vpop.f32.mrb[0].mxu0
    %v5057 = vpop.f32.mrb[0].mxu0
    %v5058 = vadd.f32 %v4987, %v5057
    %v5059 = vpop.f32.mrb[0].mxu0
    %5060 = vmatprep.mubr.bf16.mxu0 0
    %5061 = vmatmul.mubr.bf16.gmra.mrb[0].mxu0 %v5007
    %v5062 = vpop.f32.mrb[0].mxu0
    %v5063 = vadd.f32 %v4987, %v5062
    %v5064 = vpop.f32.mrb[0].mxu0
    %v5065 = vpop.f32.mrb[0].mxu0
    %v5066 = vadd.f32 %v4987, %v5065
    %v5067 = vpop.f32.mrb[0].mxu0
    %5068 = vmatprep.mubr.bf16.mxu0 0
    %5069 = vmatmul.mubr.bf16.gmra.mrb[0].mxu0 %v5010
    %v5070 = vpop.f32.mrb[0].mxu0
    %v5071 = vadd.f32 %v4987, %v5070
    %v5072 = vpop.f32.mrb[0].mxu0
    %v5073 = vpop.f32.mrb[0].mxu0
    %v5074 = vadd.f32 %v4987, %v5073
    %v5075 = vpop.f32.mrb[0].mxu0
    %5076 = vdwg.mxu0
    %v5077 = vmax.f32 %v5047, 0.0
    %v5078 = vmax.f32 %v5050, 0.0
    %v5079 = vmax.f32 %v5055, 0.0
    %v5080 = vmax.f32 %v5058, 0.0
    %v5081 = vmax.f32 %v5063, 0.0
    %v5082 = vmax.f32 %v5066, 0.0
    %v5083 = vmax.f32 %v5071, 0.0
    %v5084 = vmax.f32 %v5074, 0.0
    %v5085 = vpack.c.bf16 %v5078, %v5077
    %v5086 = vpack.c.bf16 %v5080, %v5079
    %v5087 = vpack.c.bf16 %v5082, %v5081
    %v5088 = vpack.c.bf16 %v5084, %v5083
    %s5089 = scalar_lea.vmem %s7, 32
    %v5090 = vld [vmem:[%s5089] sm:$0xf]
    %v5091 = vld [vmem:[%s5089 + $0x4] sm:$0xf]
    %v5092 = vld [vmem:[%s5089 + $0x8] sm:$0xf]
    %v5093 = vld [vmem:[%s5089 + $0xc] sm:$0xf]
    %v5094 = vld [vmem:[%s5089 + $0x10] sm:$0xf]
    %v5095 = vld [vmem:[%s5089 + $0x14] sm:$0xf]
    %v5096 = vld [vmem:[%s5089 + $0x18] sm:$0xf]
    %v5097 = vld [vmem:[%s5089 + $0x1c] sm:$0xf]
    %v5098 = vld [vmem:[%s8 + $0x1] sm:$0x1]
    %v5099 = vlaneseq
    %v5100 = vshrl.u32 %v5099, 7
    %v5101 = vsub.s32 0, %v5100
    %v5102 = vrot.slane %v5098, %v5101
    %v5111 = vunpack.c.l.b16 %v5090
    %v5112 = vunpack.c.l.b16 %v5091
    %v5113 = vunpack.c.l.b16 %v5092
    %v5114 = vunpack.c.l.b16 %v5093
    %v5115 = vunpack.c.l.b16 %v5094
    %v5116 = vunpack.c.l.b16 %v5095
    %v5117 = vunpack.c.l.b16 %v5096
    %v5118 = vunpack.c.l.b16 %v5097
    %v5119 = vpack.c.b16 %v5112, %v5111
    %v5120 = vpack.c.b16 %v5114, %v5113
    %v5121 = vpack.c.b16 %v5116, %v5115
    %v5122 = vpack.c.b16 %v5118, %v5117
    %v5128 = vsel %vm2608, %v5085, 0
    %v5131 = vsel %vm2608, %v5086, 0
    %v5134 = vsel %vm2608, %v5087, 0
    %v5137 = vsel %vm2608, %v5088, 0
    %5139 = vmatprep.subr.bf16.mxu0 0
    %5140 = vmatpush1.bf16.msra.mxu0 %v5119
    %5141 = vmatprep.subr.bf16.mxu0 0
    %5142 = vmatpush1.bf16.msra.mxu0 %v5120
    %5143 = vmatprep.subr.bf16.mxu0 0
    %5144 = vmatpush1.bf16.msra.mxu0 %v5121
    %5145 = vmatprep.subr.bf16.mxu0 0
    %5146 = vmatpush1.bf16.msra.mxu0 %v5122
    %5147 = vmatprep.subr.bf16.mxu0 0
    %5148 = vmatpush1.bf16.msra.mxu0 0
    %5149 = vmatprep.subr.bf16.mxu0 0
    %5150 = vmatpush1.bf16.msra.mxu0 0
    %5151 = vmatprep.subr.bf16.mxu0 0
    %5152 = vmatpush1.bf16.msra.mxu0 0
    %5153 = vmatprep.subr.bf16.mxu0 0
    %5154 = vmatpush1.bf16.msra.mxu0 0
    %5155 = vmatprep.subr.bf16.mxu0 0
    %5156 = vmatpush1.bf16.msra.mxu0 0
    %5157 = vmatprep.subr.bf16.mxu0 0
    %5158 = vmatpush1.bf16.msra.mxu0 0
    %5159 = vmatprep.subr.bf16.mxu0 0
    %5160 = vmatpush1.bf16.msra.mxu0 0
    %5161 = vmatprep.subr.bf16.mxu0 0
    %5162 = vmatpush1.bf16.msra.mxu0 0
    %5163 = vmatprep.subr.bf16.mxu0 0
    %5164 = vmatpush1.bf16.msra.mxu0 0
    %5165 = vmatprep.subr.bf16.mxu0 0
    %5166 = vmatpush1.bf16.msra.mxu0 0
    %5167 = vmatprep.subr.bf16.mxu0 0
    %5168 = vmatpush1.bf16.msra.mxu0 0
    %5169 = vmatprep.subr.bf16.mxu0 0
    %5170 = vmatpush1.bf16.msra.mxu0 0
    %5171 = vmatprep.mubr.bf16.mxu0 0
    %5172 = vmatmul.mubr.bf16.gmra.mrb[0].mxu0 %v5128
    %v5173 = vpop.f32.mrb[0].mxu0
    %v5174 = vadd.f32 %v5102, %v5173
    %v5175 = vpop.f32.mrb[0].mxu0
    %v5176 = vpop.f32.mrb[0].mxu0
    %v5177 = vadd.f32 %v5102, %v5176
    %v5178 = vpop.f32.mrb[0].mxu0
    %5179 = vmatprep.mubr.bf16.mxu0 0
    %5180 = vmatmul.mubr.bf16.gmra.mrb[0].mxu0 %v5131
    %v5181 = vpop.f32.mrb[0].mxu0
    %v5182 = vadd.f32 %v5102, %v5181
    %v5183 = vpop.f32.mrb[0].mxu0
    %v5184 = vpop.f32.mrb[0].mxu0
    %v5185 = vadd.f32 %v5102, %v5184
    %v5186 = vpop.f32.mrb[0].mxu0
    %5187 = vmatprep.mubr.bf16.mxu0 0
    %5188 = vmatmul.mubr.bf16.gmra.mrb[0].mxu0 %v5134
    %v5189 = vpop.f32.mrb[0].mxu0
    %v5190 = vadd.f32 %v5102, %v5189
    %v5191 = vpop.f32.mrb[0].mxu0
    %v5192 = vpop.f32.mrb[0].mxu0
    %v5193 = vadd.f32 %v5102, %v5192
    %v5194 = vpop.f32.mrb[0].mxu0
    %5195 = vmatprep.mubr.bf16.mxu0 0
    %5196 = vmatmul.mubr.bf16.gmra.mrb[0].mxu0 %v5137
    %v5197 = vpop.f32.mrb[0].mxu0
    %v5198 = vadd.f32 %v5102, %v5197
    %v5199 = vpop.f32.mrb[0].mxu0
    %v5200 = vpop.f32.mrb[0].mxu0
    %v5201 = vadd.f32 %v5102, %v5200
    %v5202 = vpop.f32.mrb[0].mxu0
    %5203 = vdwg.mxu0
    %v5204 = vadd.f32 %v4966, %v5174
    %v5205 = vadd.f32 %v4967, %v5177
    %v5206 = vadd.f32 %v4968, %v5182
    %v5207 = vadd.f32 %v4969, %v5185
    %v5208 = vadd.f32 %v4970, %v5190
    %v5209 = vadd.f32 %v4971, %v5193
    %v5210 = vadd.f32 %v4972, %v5198
    %v5211 = vadd.f32 %v4973, %v5201
    %v5212 = vld [vmem:[%s11 + $0x1] sm:$0x1]
    %v5213 = vld [vmem:[%s12 + $0x1] sm:$0x1]
    %v5214 = vsel %vm325, %v5204, 0.0
    %5215 = vadd.xlane.f32.xlu0 %v5214
    %v5216 = vpop.xlane.xlu0 %5215
    %v5217 = vsel %vm325, %v5205, 0.0
    %5218 = vadd.xlane.f32.xlu0 %v5217
    %v5219 = vpop.xlane.xlu0 %5218
    %v5220 = vsel %vm325, %v5206, 0.0
    %5221 = vadd.xlane.f32.xlu0 %v5220
    %v5222 = vpop.xlane.xlu0 %5221
    %v5223 = vsel %vm325, %v5207, 0.0
    %5224 = vadd.xlane.f32.xlu0 %v5223
    %v5225 = vpop.xlane.xlu0 %5224
    %v5226 = vsel %vm325, %v5208, 0.0
    %5227 = vadd.xlane.f32.xlu0 %v5226
    %v5228 = vpop.xlane.xlu0 %5227
    %v5229 = vsel %vm325, %v5209, 0.0
    %5230 = vadd.xlane.f32.xlu0 %v5229
    %v5231 = vpop.xlane.xlu0 %5230
    %v5232 = vsel %vm325, %v5210, 0.0
    %5233 = vadd.xlane.f32.xlu0 %v5232
    %v5234 = vpop.xlane.xlu0 %5233
    %v5235 = vsel %vm325, %v5211, 0.0
    %5236 = vadd.xlane.f32.xlu0 %v5235
    %v5237 = vpop.xlane.xlu0 %5236
    %v5238 = vmul.f32 %v5216, %v2352
    %v5239 = vmul.f32 %v5219, %v2352
    %v5240 = vmul.f32 %v5222, %v2352
    %v5241 = vmul.f32 %v5225, %v2352
    %v5242 = vmul.f32 %v5228, %v2352
    %v5243 = vmul.f32 %v5231, %v2352
    %v5244 = vmul.f32 %v5234, %v2352
    %v5245 = vmul.f32 %v5237, %v2352
    %v5246 = vsub.f32 %v5204, %v5238
    %v5247 = vsub.f32 %v5205, %v5239
    %v5248 = vsub.f32 %v5206, %v5240
    %v5249 = vsub.f32 %v5207, %v5241
    %v5250 = vsub.f32 %v5208, %v5242
    %v5251 = vsub.f32 %v5209, %v5243
    %v5252 = vsub.f32 %v5210, %v5244
    %v5253 = vsub.f32 %v5211, %v5245
    %v5254 = vmul.f32 %v5246, %v5246
    %v5255 = vmul.f32 %v5247, %v5247
    %v5256 = vmul.f32 %v5248, %v5248
    %v5257 = vmul.f32 %v5249, %v5249
    %v5258 = vmul.f32 %v5250, %v5250
    %v5259 = vmul.f32 %v5251, %v5251
    %v5260 = vmul.f32 %v5252, %v5252
    %v5261 = vmul.f32 %v5253, %v5253
    %v5262 = vsel %vm325, %v5254, 0.0
    %5263 = vadd.xlane.f32.xlu0 %v5262
    %v5264 = vpop.xlane.xlu0 %5263
    %v5265 = vsel %vm325, %v5255, 0.0
    %5266 = vadd.xlane.f32.xlu0 %v5265
    %v5267 = vpop.xlane.xlu0 %5266
    %v5268 = vsel %vm325, %v5256, 0.0
    %5269 = vadd.xlane.f32.xlu0 %v5268
    %v5270 = vpop.xlane.xlu0 %5269
    %v5271 = vsel %vm325, %v5257, 0.0
    %5272 = vadd.xlane.f32.xlu0 %v5271
    %v5273 = vpop.xlane.xlu0 %5272
    %v5274 = vsel %vm325, %v5258, 0.0
    %5275 = vadd.xlane.f32.xlu0 %v5274
    %v5276 = vpop.xlane.xlu0 %5275
    %v5277 = vsel %vm325, %v5259, 0.0
    %5278 = vadd.xlane.f32.xlu0 %v5277
    %v5279 = vpop.xlane.xlu0 %5278
    %v5280 = vsel %vm325, %v5260, 0.0
    %5281 = vadd.xlane.f32.xlu0 %v5280
    %v5282 = vpop.xlane.xlu0 %5281
    %v5283 = vsel %vm325, %v5261, 0.0
    %5284 = vadd.xlane.f32.xlu0 %v5283
    %v5285 = vpop.xlane.xlu0 %5284
    %v5286 = vmul.f32 %v5264, %v2352
    %v5287 = vmul.f32 %v5267, %v2352
    %v5288 = vmul.f32 %v5270, %v2352
    %v5289 = vmul.f32 %v5273, %v2352
    %v5290 = vmul.f32 %v5276, %v2352
    %v5291 = vmul.f32 %v5279, %v2352
    %v5292 = vmul.f32 %v5282, %v2352
    %v5293 = vmul.f32 %v5285, %v2352
    %v5294 = vadd.f32 %v5286, 1e-05
    %v5295 = vadd.f32 %v5287, 1e-05
    %v5296 = vadd.f32 %v5288, 1e-05
    %v5297 = vadd.f32 %v5289, 1e-05
    %v5298 = vadd.f32 %v5290, 1e-05
    %v5299 = vadd.f32 %v5291, 1e-05
    %v5300 = vadd.f32 %v5292, 1e-05
    %v5301 = vadd.f32 %v5293, 1e-05
    %v5302 = vrsqrt.pop %v5294
    %v5303 = vrsqrt.pop %v5295
    %v5304 = vrsqrt.pop %v5296
    %v5305 = vrsqrt.pop %v5297
    %v5306 = vrsqrt.pop %v5298
    %v5307 = vrsqrt.pop %v5299
    %v5308 = vrsqrt.pop %v5300
    %v5309 = vrsqrt.pop %v5301
    %v5310 = vmul.f32 %v5246, %v5302
    %v5311 = vmul.f32 %v5247, %v5303
    %v5312 = vmul.f32 %v5248, %v5304
    %v5313 = vmul.f32 %v5249, %v5305
    %v5314 = vmul.f32 %v5250, %v5306
    %v5315 = vmul.f32 %v5251, %v5307
    %v5316 = vmul.f32 %v5252, %v5308
    %v5317 = vmul.f32 %v5253, %v5309
    %v5318 = vlaneseq
    %v5319 = vshrl.u32 %v5318, 7
    %v5320 = vsub.s32 0, %v5319
    %v5321 = vrot.slane %v5212, %v5320
    %v5322 = vmul.f32 %v5310, %v5321
    %v5323 = vmul.f32 %v5311, %v5321
    %v5324 = vmul.f32 %v5312, %v5321
    %v5325 = vmul.f32 %v5313, %v5321
    %v5326 = vmul.f32 %v5314, %v5321
    %v5327 = vmul.f32 %v5315, %v5321
    %v5328 = vmul.f32 %v5316, %v5321
    %v5329 = vmul.f32 %v5317, %v5321
    %v5330 = vlaneseq
    %v5331 = vshrl.u32 %v5330, 7
    %v5332 = vsub.s32 0, %v5331
    %v5333 = vrot.slane %v5213, %v5332
    %v5334 = vadd.f32 %v5322, %v5333
    %v5335 = vadd.f32 %v5323, %v5333
    %v5336 = vadd.f32 %v5324, %v5333
    %v5337 = vadd.f32 %v5325, %v5333
    %v5338 = vadd.f32 %v5326, %v5333
    %v5339 = vadd.f32 %v5327, %v5333
    %v5340 = vadd.f32 %v5328, %v5333
    %v5341 = vadd.f32 %v5329, %v5333
    %v5342 = vld [vmem:[%s13] sm:$0x1]
    %v5343 = vld [vmem:[%s14] sm:$0x1]
    %v5344 = vsel %vm325, %v5334, 0.0
    %5345 = vadd.xlane.f32.xlu0 %v5344
    %v5346 = vpop.xlane.xlu0 %5345
    %v5347 = vsel %vm325, %v5335, 0.0
    %5348 = vadd.xlane.f32.xlu0 %v5347
    %v5349 = vpop.xlane.xlu0 %5348
    %v5350 = vsel %vm325, %v5336, 0.0
    %5351 = vadd.xlane.f32.xlu0 %v5350
    %v5352 = vpop.xlane.xlu0 %5351
    %v5353 = vsel %vm325, %v5337, 0.0
    %5354 = vadd.xlane.f32.xlu0 %v5353
    %v5355 = vpop.xlane.xlu0 %5354
    %v5356 = vsel %vm325, %v5338, 0.0
    %5357 = vadd.xlane.f32.xlu0 %v5356
    %v5358 = vpop.xlane.xlu0 %5357
    %v5359 = vsel %vm325, %v5339, 0.0
    %5360 = vadd.xlane.f32.xlu0 %v5359
    %v5361 = vpop.xlane.xlu0 %5360
    %v5362 = vsel %vm325, %v5340, 0.0
    %5363 = vadd.xlane.f32.xlu0 %v5362
    %v5364 = vpop.xlane.xlu0 %5363
    %v5365 = vsel %vm325, %v5341, 0.0
    %5366 = vadd.xlane.f32.xlu0 %v5365
    %v5367 = vpop.xlane.xlu0 %5366
    %v5368 = vmul.f32 %v5346, %v2352
    %v5369 = vmul.f32 %v5349, %v2352
    %v5370 = vmul.f32 %v5352, %v2352
    %v5371 = vmul.f32 %v5355, %v2352
    %v5372 = vmul.f32 %v5358, %v2352
    %v5373 = vmul.f32 %v5361, %v2352
    %v5374 = vmul.f32 %v5364, %v2352
    %v5375 = vmul.f32 %v5367, %v2352
    %v5376 = vsub.f32 %v5334, %v5368
    %v5377 = vsub.f32 %v5335, %v5369
    %v5378 = vsub.f32 %v5336, %v5370
    %v5379 = vsub.f32 %v5337, %v5371
    %v5380 = vsub.f32 %v5338, %v5372
    %v5381 = vsub.f32 %v5339, %v5373
    %v5382 = vsub.f32 %v5340, %v5374
    %v5383 = vsub.f32 %v5341, %v5375
    %v5384 = vmul.f32 %v5376, %v5376
    %v5385 = vmul.f32 %v5377, %v5377
    %v5386 = vmul.f32 %v5378, %v5378
    %v5387 = vmul.f32 %v5379, %v5379
    %v5388 = vmul.f32 %v5380, %v5380
    %v5389 = vmul.f32 %v5381, %v5381
    %v5390 = vmul.f32 %v5382, %v5382
    %v5391 = vmul.f32 %v5383, %v5383
    %v5392 = vsel %vm325, %v5384, 0.0
    %5393 = vadd.xlane.f32.xlu0 %v5392
    %v5394 = vpop.xlane.xlu0 %5393
    %v5395 = vsel %vm325, %v5385, 0.0
    %5396 = vadd.xlane.f32.xlu0 %v5395
    %v5397 = vpop.xlane.xlu0 %5396
    %v5398 = vsel %vm325, %v5386, 0.0
    %5399 = vadd.xlane.f32.xlu0 %v5398
    %v5400 = vpop.xlane.xlu0 %5399
    %v5401 = vsel %vm325, %v5387, 0.0
    %5402 = vadd.xlane.f32.xlu0 %v5401
    %v5403 = vpop.xlane.xlu0 %5402
    %v5404 = vsel %vm325, %v5388, 0.0
    %5405 = vadd.xlane.f32.xlu0 %v5404
    %v5406 = vpop.xlane.xlu0 %5405
    %v5407 = vsel %vm325, %v5389, 0.0
    %5408 = vadd.xlane.f32.xlu0 %v5407
    %v5409 = vpop.xlane.xlu0 %5408
    %v5410 = vsel %vm325, %v5390, 0.0
    %5411 = vadd.xlane.f32.xlu0 %v5410
    %v5412 = vpop.xlane.xlu0 %5411
    %v5413 = vsel %vm325, %v5391, 0.0
    %5414 = vadd.xlane.f32.xlu0 %v5413
    %v5415 = vpop.xlane.xlu0 %5414
    %v5416 = vmul.f32 %v5394, %v2352
    %v5417 = vmul.f32 %v5397, %v2352
    %v5418 = vmul.f32 %v5400, %v2352
    %v5419 = vmul.f32 %v5403, %v2352
    %v5420 = vmul.f32 %v5406, %v2352
    %v5421 = vmul.f32 %v5409, %v2352
    %v5422 = vmul.f32 %v5412, %v2352
    %v5423 = vmul.f32 %v5415, %v2352
    %v5424 = vadd.f32 %v5416, 1e-05
    %v5425 = vadd.f32 %v5417, 1e-05
    %v5426 = vadd.f32 %v5418, 1e-05
    %v5427 = vadd.f32 %v5419, 1e-05
    %v5428 = vadd.f32 %v5420, 1e-05
    %v5429 = vadd.f32 %v5421, 1e-05
    %v5430 = vadd.f32 %v5422, 1e-05
    %v5431 = vadd.f32 %v5423, 1e-05
    %v5432 = vrsqrt.pop %v5424
    %v5433 = vrsqrt.pop %v5425
    %v5434 = vrsqrt.pop %v5426
    %v5435 = vrsqrt.pop %v5427
    %v5436 = vrsqrt.pop %v5428
    %v5437 = vrsqrt.pop %v5429
    %v5438 = vrsqrt.pop %v5430
    %v5439 = vrsqrt.pop %v5431
    %v5440 = vmul.f32 %v5376, %v5432
    %v5441 = vmul.f32 %v5377, %v5433
    %v5442 = vmul.f32 %v5378, %v5434
    %v5443 = vmul.f32 %v5379, %v5435
    %v5444 = vmul.f32 %v5380, %v5436
    %v5445 = vmul.f32 %v5381, %v5437
    %v5446 = vmul.f32 %v5382, %v5438
    %v5447 = vmul.f32 %v5383, %v5439
    %v5449 = vlaneseq
    %v5450 = vshrl.u32 %v5449, 7
    %v5451 = vsub.s32 0, %v5450
    %v5452 = vrot.slane %v5342, %v5451
    %v5454 = vmul.f32 %v5440, %v5452
    %v5455 = vmul.f32 %v5441, %v5452
    %v5456 = vmul.f32 %v5442, %v5452
    %v5457 = vmul.f32 %v5443, %v5452
    %v5458 = vmul.f32 %v5444, %v5452
    %v5459 = vmul.f32 %v5445, %v5452
    %v5460 = vmul.f32 %v5446, %v5452
    %v5461 = vmul.f32 %v5447, %v5452
    %v5463 = vlaneseq
    %v5464 = vshrl.u32 %v5463, 7
    %v5465 = vsub.s32 0, %v5464
    %v5466 = vrot.slane %v5343, %v5465
    %v5468 = vadd.f32 %v5454, %v5466
    %v5469 = vadd.f32 %v5455, %v5466
    %v5470 = vadd.f32 %v5456, %v5466
    %v5471 = vadd.f32 %v5457, %v5466
    %v5472 = vadd.f32 %v5458, %v5466
    %v5473 = vadd.f32 %v5459, %v5466
    %v5474 = vadd.f32 %v5460, %v5466
    %v5475 = vadd.f32 %v5461, %v5466
    %v5476 = vpack.c.bf16 %v5469, %v5468
    %v5477 = vpack.c.bf16 %v5471, %v5470
    %v5478 = vpack.c.bf16 %v5473, %v5472
    %v5479 = vpack.c.bf16 %v5475, %v5474
    %v5480 = vld [vmem:[%s15] sm:$0xf]
    %v5481 = vld [vmem:[%s15 + $0x4] sm:$0xf]
    %v5482 = vld [vmem:[%s15 + $0x8] sm:$0xf]
    %v5483 = vld [vmem:[%s15 + $0xc] sm:$0xf]
    %v5484 = vld [vmem:[%s16] sm:$0x1]
    %v5486 = vlaneseq
    %v5487 = vshrl.u32 %v5486, 7
    %v5488 = vsub.s32 0, %v5487
    %v5489 = vrot.slane %v5484, %v5488
    %v5495 = vunpack.c.l.b16 %v5480
    %v5496 = vunpack.c.l.b16 %v5481
    %v5497 = vunpack.c.l.b16 %v5482
    %v5498 = vunpack.c.l.b16 %v5483
    %v5499 = vpack.c.b16 %v5496, %v5495
    %v5500 = vpack.c.b16 %v5498, %v5497
    %v5504 = vsel %vm325, %v5476, 0
    %v5507 = vsel %vm325, %v5477, 0
    %v5510 = vsel %vm325, %v5478, 0
    %v5513 = vsel %vm325, %v5479, 0
    %5515 = vmatprep.subr.bf16.mxu0 0
    %5516 = vmatpush1.bf16.msra.mxu0 %v5499
    %5517 = vmatprep.subr.bf16.mxu0 0
    %5518 = vmatpush1.bf16.msra.mxu0 %v5500
    %5519 = vmatprep.subr.bf16.mxu0 0
    %5520 = vmatpush1.bf16.msra.mxu0 0
    %5521 = vmatprep.subr.bf16.mxu0 0
    %5522 = vmatpush1.bf16.msra.mxu0 0
    %5523 = vmatprep.subr.bf16.mxu0 0
    %5524 = vmatpush1.bf16.msra.mxu0 0
    %5525 = vmatprep.subr.bf16.mxu0 0
    %5526 = vmatpush1.bf16.msra.mxu0 0
    %5527 = vmatprep.subr.bf16.mxu0 0
    %5528 = vmatpush1.bf16.msra.mxu0 0
    %5529 = vmatprep.subr.bf16.mxu0 0
    %5530 = vmatpush1.bf16.msra.mxu0 0
    %5531 = vmatprep.subr.bf16.mxu0 0
    %5532 = vmatpush1.bf16.msra.mxu0 0
    %5533 = vmatprep.subr.bf16.mxu0 0
    %5534 = vmatpush1.bf16.msra.mxu0 0
    %5535 = vmatprep.subr.bf16.mxu0 0
    %5536 = vmatpush1.bf16.msra.mxu0 0
    %5537 = vmatprep.subr.bf16.mxu0 0
    %5538 = vmatpush1.bf16.msra.mxu0 0
    %5539 = vmatprep.subr.bf16.mxu0 0
    %5540 = vmatpush1.bf16.msra.mxu0 0
    %5541 = vmatprep.subr.bf16.mxu0 0
    %5542 = vmatpush1.bf16.msra.mxu0 0
    %5543 = vmatprep.subr.bf16.mxu0 0
    %5544 = vmatpush1.bf16.msra.mxu0 0
    %5545 = vmatprep.subr.bf16.mxu0 0
    %5546 = vmatpush1.bf16.msra.mxu0 0
    %5547 = vmatprep.mubr.bf16.mxu0 0
    %5548 = vmatmul.mubr.bf16.gmra.mrb[0].mxu0 %v5504
    %v5549 = vpop.f32.mrb[0].mxu0
    %v5550 = vadd.f32 %v5489, %v5549
    %v5551 = vpop.f32.mrb[0].mxu0
    %v5552 = vpop.f32.mrb[0].mxu0
    %v5553 = vadd.f32 %v5489, %v5552
    %v5554 = vpop.f32.mrb[0].mxu0
    %5555 = vmatprep.mubr.bf16.mxu0 0
    %5556 = vmatmul.mubr.bf16.gmra.mrb[0].mxu0 %v5507
    %v5557 = vpop.f32.mrb[0].mxu0
    %v5558 = vadd.f32 %v5489, %v5557
    %v5559 = vpop.f32.mrb[0].mxu0
    %v5560 = vpop.f32.mrb[0].mxu0
    %v5561 = vadd.f32 %v5489, %v5560
    %v5562 = vpop.f32.mrb[0].mxu0
    %5563 = vmatprep.mubr.bf16.mxu0 0
    %5564 = vmatmul.mubr.bf16.gmra.mrb[0].mxu0 %v5510
    %v5565 = vpop.f32.mrb[0].mxu0
    %v5566 = vadd.f32 %v5489, %v5565
    %v5567 = vpop.f32.mrb[0].mxu0
    %v5568 = vpop.f32.mrb[0].mxu0
    %v5569 = vadd.f32 %v5489, %v5568
    %v5570 = vpop.f32.mrb[0].mxu0
    %5571 = vmatprep.mubr.bf16.mxu0 0
    %5572 = vmatmul.mubr.bf16.gmra.mrb[0].mxu0 %v5513
    %v5573 = vpop.f32.mrb[0].mxu0
    %v5574 = vadd.f32 %v5489, %v5573
    %v5575 = vpop.f32.mrb[0].mxu0
    %v5576 = vpop.f32.mrb[0].mxu0
    %v5577 = vadd.f32 %v5489, %v5576
    %v5578 = vpop.f32.mrb[0].mxu0
    %5579 = vdwg.mxu0
    %v5580 = vmul.f32 %v97, %v130
    %v5581 = vmul.f32 %v98, %v132
    %v5582 = vmul.f32 %v99, %v134
    %v5583 = vmul.f32 %v100, %v136
    %v5584 = vmul.f32 %v101, %v138
    %v5585 = vmul.f32 %v102, %v140
    %v5586 = vmul.f32 %v103, %v142
    %v5587 = vmul.f32 %v104, %v144
    %v5588 = vsub.f32 1.0, %v97
    %v5589 = vsub.f32 1.0, %v98
    %v5590 = vsub.f32 1.0, %v99
    %v5591 = vsub.f32 1.0, %v100
    %v5592 = vsub.f32 1.0, %v101
    %v5593 = vsub.f32 1.0, %v102
    %v5594 = vsub.f32 1.0, %v103
    %v5595 = vsub.f32 1.0, %v104
    %5604 = vrot.lane.b32.xlu0 %v5550, 4
    %v5605 = vpop.permute.xlu0 %5604
    %5606 = vrot.lane.b32.xlu0 %v5553, 4
    %v5607 = vpop.permute.xlu0 %5606
    %5608 = vrot.lane.b32.xlu0 %v5558, 4
    %v5609 = vpop.permute.xlu0 %5608
    %5610 = vrot.lane.b32.xlu0 %v5561, 4
    %v5611 = vpop.permute.xlu0 %5610
    %5612 = vrot.lane.b32.xlu0 %v5566, 4
    %v5613 = vpop.permute.xlu0 %5612
    %5614 = vrot.lane.b32.xlu0 %v5569, 4
    %v5615 = vpop.permute.xlu0 %5614
    %5616 = vrot.lane.b32.xlu0 %v5574, 4
    %v5617 = vpop.permute.xlu0 %5616
    %5618 = vrot.lane.b32.xlu0 %v5577, 4
    %v5619 = vpop.permute.xlu0 %5618
    %v5628 = vmul.f32 %v5588, %v5605
    %v5629 = vmul.f32 %v5589, %v5607
    %v5630 = vmul.f32 %v5590, %v5609
    %v5631 = vmul.f32 %v5591, %v5611
    %v5632 = vmul.f32 %v5592, %v5613
    %v5633 = vmul.f32 %v5593, %v5615
    %v5634 = vmul.f32 %v5594, %v5617
    %v5635 = vmul.f32 %v5595, %v5619
    %v5636 = vadd.f32 %v5580, %v5628
    %v5637 = vadd.f32 %v5581, %v5629
    %v5638 = vadd.f32 %v5582, %v5630
    %v5639 = vadd.f32 %v5583, %v5631
    %v5640 = vadd.f32 %v5584, %v5632
    %v5641 = vadd.f32 %v5585, %v5633
    %v5642 = vadd.f32 %v5586, %v5634
    %v5643 = vadd.f32 %v5587, %v5635
    %5652 = vrot.lane.b32.xlu0 %v5636, 124
    %v5653 = vpop.permute.xlu0 %5652
    %5654 = vrot.lane.b32.xlu0 %v5637, 124
    %v5655 = vpop.permute.xlu0 %5654
    %5656 = vrot.lane.b32.xlu0 %v5638, 124
    %v5657 = vpop.permute.xlu0 %5656
    %5658 = vrot.lane.b32.xlu0 %v5639, 124
    %v5659 = vpop.permute.xlu0 %5658
    %5660 = vrot.lane.b32.xlu0 %v5640, 124
    %v5661 = vpop.permute.xlu0 %5660
    %5662 = vrot.lane.b32.xlu0 %v5641, 124
    %v5663 = vpop.permute.xlu0 %5662
    %5664 = vrot.lane.b32.xlu0 %v5642, 124
    %v5665 = vpop.permute.xlu0 %5664
    %5666 = vrot.lane.b32.xlu0 %v5643, 124
    %v5667 = vpop.permute.xlu0 %5666
    %v5676 = vsel %vm185, %v5653, %v5605
    %v5677 = vsel %vm185, %v5655, %v5607
    %v5678 = vsel %vm185, %v5657, %v5609
    %v5679 = vsel %vm185, %v5659, %v5611
    %v5680 = vsel %vm185, %v5661, %v5613
    %v5681 = vsel %vm185, %v5663, %v5615
    %v5682 = vsel %vm185, %v5665, %v5617
    %v5683 = vsel %vm185, %v5667, %v5619
    %5684 = vst.msk [vmem:[#allocation8] sm:$0xff] %vm194, %v5676
    %5685 = vst.msk [vmem:[#allocation8 + $0x8] sm:$0xff] %vm194, %v5677
    %5686 = vst.msk [vmem:[#allocation8 + $0x10] sm:$0xff] %vm194, %v5678
    %5687 = vst.msk [vmem:[#allocation8 + $0x18] sm:$0xff] %vm194, %v5679
    %5688 = vst.msk [vmem:[#allocation8 + $0x20] sm:$0xff] %vm194, %v5680
    %5689 = vst.msk [vmem:[#allocation8 + $0x28] sm:$0xff] %vm194, %v5681
    %5690 = vst.msk [vmem:[#allocation8 + $0x30] sm:$0xff] %vm194, %v5682
    %5691 = vst.msk [vmem:[#allocation8 + $0x38] sm:$0xff] %vm194, %v5683
    // Predicated region
    $region82: #{tpu_custom_call.1} parent=1 // pred_check
      _
    $region83: #{tpu_custom_call.1} parent=1 // pred_check_branch
      %5693 = sbr.rel (0) target = $region85
    $region84: #{tpu_custom_call.1} parent=1 // pred_region
      %s5695 = ssub.s32 1024, 1024
      %5696 = vsyncadd [#allocation4], %s5695
      %s5697 = sshll.u32 [#allocation8], 4
      %s5698 = int_to_ptr.vmem [resolvable:$true] %s5697
      %5703 = dma.vmem_to_hbm [thread:$0]  %s5698, 1024, %s17, [#allocation4], 128, 128, 8
    $region85: #{tpu_custom_call.1} parent=1 // pred_fallthru
      _
    // Predicated region
    $region86: #{tpu_custom_call.1} parent=1 // pred_check
      _
    $region87: #{tpu_custom_call.1} parent=1 // pred_check_branch
      %5705 = sbr.rel (0) target = $region89
    $region88: #{tpu_custom_call.1} parent=1 // pred_region
      %5706 = dma.done [#allocation4], 1024
    $region89: #{tpu_custom_call.1} parent=1 // pred_fallthru
      _
    %5707 = vsyncpa [#allocation3], 1
    %5708 = vsyncpa [#allocation6], 1
    %5709 = vsyncpa [#allocation4], 1

</llo_original>
